<compile_context>
chip_gen: v7x
topology: tpu7x:2x2x1
jax: 0.10.0
libtpu: 0.0.40
codegen_flags: <defaults>
</compile_context>

<pallas_src>
import jax
import jax.numpy as jnp
from jax import lax
from jax.experimental import pallas as pl
from jax.experimental.pallas import tpu as pltpu


def _lstm_cell_ifog(g_pre, h, c, whh, H):
    """LSTM cell with gates pre-permuted to [i, f, o, g] order."""
    g = g_pre + jnp.dot(h, whh, preferred_element_type=jnp.float32)
    s = 0.5 * jnp.tanh(0.5 * g[:, :3 * H]) + 0.5   # sigmoid(i|f|o) in one EUP push
    i = s[:, 0 * H:1 * H]
    f = s[:, 1 * H:2 * H]
    o = s[:, 2 * H:3 * H]
    gg = jnp.tanh(g[:, 3 * H:])
    c_new = f * c + i * gg
    h_new = o * jnp.tanh(c_new)
    return h_new, c_new


# --------------------------- fused CVAE kernel ------------------------------
def cvae_kernel(x_ref, cv_ref, len_ref, eps_ref, sel_ref, selt_ref,
                w0x_ref, w0c_ref, b0_ref, gamma_ref, beta_ref,
                wihfb_ref, bfb_ref, whhf_ref, whhb_ref,
                wmv1f_ref, wmv1b_ref, bmv1_ref, wmv2_ref, bmv2_ref,
                wd0z_ref, wd0c_ref, bd0_ref,
                wihd_ref, whhd_ref, bd_ref,
                w1_ref, b1_ref, w2_ref, b2_ref,
                recon_ref, mulv_ref, z_ref,
                gbuf_ref, hbuf_ref):
    f32 = jnp.float32
    TB = x_ref.shape[0]
    B = cv_ref.shape[0]
    T = TB // B
    dim_z = eps_ref.shape[1]
    H = 2 * dim_z
    Din = b0_ref.shape[1]
    n = float(T * Din)

    x = x_ref[...]                     # (T*B, dim), time-major rows r = t*B + b
    cv = cv_ref[...]                   # (B, C)
    sel = sel_ref[...]                 # (B, T*B) one-hot row->batch selector
    selt = selt_ref[...]               # (T*B, B)

    # ---- encoder input Linear + ReLU (lane concat split into two matmuls) --
    cvw = jnp.dot(cv, w0c_ref[...], preferred_element_type=f32) + b0_ref[...]
    h1 = (jnp.dot(x, w0x_ref[...], preferred_element_type=f32)
          + jnp.dot(selt, cvw, preferred_element_type=f32))
    h1 = jnp.maximum(h1, 0.0)                                       # (T*B, Din)

    # ---- LayerNorm over (T, Din) per batch element (selection matmuls) ----
    row_sums = jnp.dot(sel, h1, preferred_element_type=f32)         # (B, Din)
    mean = jnp.sum(jnp.dot(selt, row_sums, preferred_element_type=f32),
                   axis=1, keepdims=True) / n                       # (T*B, 1)
    d = h1 - mean
    sq_sums = jnp.dot(sel, d * d, preferred_element_type=f32)       # (B, Din)
    var = jnp.sum(jnp.dot(selt, sq_sums, preferred_element_type=f32),
                  axis=1, keepdims=True) / n                        # (T*B, 1)
    hn = d * lax.rsqrt(var + 1e-5) * gamma_ref[...] + beta_ref[...]

    # ---- fused fwd|bwd LSTM input-gate preactivations (one matmul) ----
    gbuf_ref[...] = (jnp.dot(hn, wihfb_ref[...], preferred_element_type=f32)
                     + bfb_ref[...])                                # (T*B, 8H)

    lens = len_ref[...]                # (B, 1) int32
    inv_len = 1.0 / lens.astype(f32)
    whhf = whhf_ref[...]
    whhb = whhb_ref[...]
    zeros = jnp.zeros((B, H), f32)

    # forward direction (packed-sequence semantics: only t < len updates/emits)
    h = c = acc_f = zeros
    for t in range(T):
        g_t = gbuf_ref[t * B:(t + 1) * B, 0:4 * H]
        h_new, c_new = _lstm_cell_ifog(g_t, h, c, whhf, H)
        mask = t < lens
        h = jnp.where(mask, h_new, h)
        c = jnp.where(mask, c_new, c)
        acc_f = acc_f + jnp.where(mask, h_new, 0.0)

    # backward direction (starts at t = len-1 with zero state, like packed LSTM)
    h = c = acc_b = zeros
    for t in range(T - 1, -1, -1):
        g_t = gbuf_ref[t * B:(t + 1) * B, 4 * H:8 * H]
        h_new, c_new = _lstm_cell_ifog(g_t, h, c, whhb, H)
        mask = t < lens
        h = jnp.where(mask, h_new, h)
        c = jnp.where(mask, c_new, c)
        acc_b = acc_b + jnp.where(mask, h_new, 0.0)

    # sum over valid timesteps / lengths
    out_f = acc_f * inv_len
    out_b = acc_b * inv_len

    # ---- fused mu / log_var heads -> one (B, 2*dim_z) store ----
    head = jnp.maximum(
        jnp.dot(out_f, wmv1f_ref[...], preferred_element_type=f32)
        + jnp.dot(out_b, wmv1b_ref[...], preferred_element_type=f32)
        + bmv1_ref[...], 0.0)                                       # (B, 2H)
    mulv = (jnp.dot(head, wmv2_ref[...], preferred_element_type=f32)
            + bmv2_ref[...])                                        # (B, 2*dz)
    mulv_ref[...] = mulv
    mu = mulv[:, :dim_z]
    log_var = mulv[:, dim_z:]

    # ---- reparametrize (eps supplied by the wrapper) ----
    z = eps_ref[...] * jnp.exp(0.5 * log_var) + mu
    z_ref[...] = z

    # ---- decoder ----
    y = jnp.maximum(
        jnp.dot(z, wd0z_ref[...], preferred_element_type=f32)
        + jnp.dot(cv, wd0c_ref[...], preferred_element_type=f32)
        + bd0_ref[...], 0.0)                                        # (B, Dzc)
    gx = (jnp.dot(y, wihd_ref[...], preferred_element_type=f32)
          + bd_ref[...])                                            # (B, 4H)
    whhd = whhd_ref[...]

    h = c = zeros
    for t in range(T):                  # recurrence only; projection hoisted
        h, c = _lstm_cell_ifog(gx, h, c, whhd, H)
        hbuf_ref[t * B:(t + 1) * B, :] = h

    hcat = hbuf_ref[...]                                            # (T*B, H)
    hid = jnp.maximum(jnp.dot(hcat, w1_ref[...], preferred_element_type=f32)
                      + b1_ref[...], 0.0)                           # (T*B, dz)
    recon_ref[...] = (jnp.dot(hid, w2_ref[...], preferred_element_type=f32)
                      + b2_ref[...])                                # (T*B, dim)


# ------------------------------- wrapper ------------------------------------
def _perm_gates(w, H):
    # PyTorch LSTM gate order [i, f, g, o] -> kernel order [i, f, o, g]
    return jnp.concatenate(
        [w[:, :2 * H], w[:, 3 * H:4 * H], w[:, 2 * H:3 * H]], axis=1)


def _vmem_spec():
    return pl.BlockSpec(memory_space=pltpu.MemorySpace.VMEM)


def lstm_cvae_forward(params, x, x_lengths, class_vector, eps):
    B, T, dim = x.shape
    dim_z = params['wm2'].shape[1]
    H = 2 * dim_z
    TB = T * B

    x_flat = jnp.transpose(x, (1, 0, 2)).reshape(TB, dim).astype(jnp.float32)
    lens = x_lengths.reshape(B, 1).astype(jnp.int32)
    cv = class_vector.astype(jnp.float32)
    eps = eps.astype(jnp.float32)

    # one-hot row -> batch selection matrices (time-major rows: r = t*B + b)
    row_b = jnp.arange(TB, dtype=jnp.int32) % B
    sel = (row_b[None, :] == jnp.arange(B, dtype=jnp.int32)[:, None]
           ).astype(jnp.float32)                                    # (B, TB)
    selt = sel.T                                                    # (TB, B)

    # --- one-time weight prep: gate permutation / fusion (tiny XLA ops) ---
    wihf = _perm_gates(params['wihf'], H)
    whhf = _perm_gates(params['whhf'], H)
    bf = _perm_gates(params['bf'], H)
    wihb = _perm_gates(params['wihb'], H)
    whhb = _perm_gates(params['whhb'], H)
    bb = _perm_gates(params['bb'], H)
    wihd = _perm_gates(params['wihd'], H)
    whhd = _perm_gates(params['whhd'], H)
    bd = _perm_gates(params['bd'], H)
    wihfb = jnp.concatenate([wihf, wihb], axis=1)                   # (Din, 8H)
    bfb = jnp.concatenate([bf, bb], axis=1)                         # (1, 8H)

    w0x, w0c = params['w0'][:dim], params['w0'][dim:]
    wd0z, wd0c = params['wd0'][:dim_z], params['wd0'][dim_z:]

    wmv1f = jnp.concatenate([params['wm1'][:H], params['wv1'][:H]], axis=1)
    wmv1b = jnp.concatenate([params['wm1'][H:], params['wv1'][H:]], axis=1)
    bmv1 = jnp.concatenate([params['bm1'], params['bv1']], axis=1)
    zpad = jnp.zeros((H, dim_z), jnp.float32)
    wmv2 = jnp.concatenate(
        [jnp.concatenate([params['wm2'], zpad], axis=1),
         jnp.concatenate([zpad, params['wv2']], axis=1)], axis=0)   # block-diag
    bmv2 = jnp.concatenate([params['bm2'], params['bv2']], axis=1)

    gamma_r = jnp.repeat(params['gamma'], B, axis=0)                # (TB, Din)
    beta_r = jnp.repeat(params['beta'], B, axis=0)

    inputs = (x_flat, cv, lens, eps, sel, selt,
              w0x, w0c, params['b0'], gamma_r, beta_r,
              wihfb, bfb, whhf, whhb,
              wmv1f, wmv1b, bmv1, wmv2, bmv2,
              wd0z, wd0c, params['bd0'],
              wihd, whhd, bd,
              params['w1'], params['b1'], params['w2'], params['b2'])

    recon_flat, mulv, z = pl.pallas_call(
        cvae_kernel,
        out_shape=(jax.ShapeDtypeStruct((TB, dim), jnp.float32),
                   jax.ShapeDtypeStruct((B, 2 * dim_z), jnp.float32),
                   jax.ShapeDtypeStruct((B, dim_z), jnp.float32)),
        in_specs=[_vmem_spec() for _ in inputs],
        out_specs=(_vmem_spec(), _vmem_spec(), _vmem_spec()),
        scratch_shapes=[pltpu.VMEM((TB, 8 * H), jnp.float32),   # gate preacts
                        pltpu.VMEM((TB, H), jnp.float32)],      # decoder h's
    )(*inputs)

    mu = mulv[:, :dim_z]
    log_var = mulv[:, dim_z:]
    recon = jnp.transpose(recon_flat.reshape(T, B, dim), (1, 0, 2))  # (B,T,dim)
    return [x, recon, x_lengths, mu, log_var, z]


def init_params(key, input_len, dim, dim_z, class_num):
    Din = dim + class_num
    H = 2 * dim_z
    Dzc = dim_z + class_num
    shapes = dict(
        w0=(Din, Din), b0=(1, Din),
        wihf=(Din, 4 * H), whhf=(H, 4 * H), bf=(1, 4 * H),
        wihb=(Din, 4 * H), whhb=(H, 4 * H), bb=(1, 4 * H),
        wm1=(2 * H, H), bm1=(1, H), wm2=(H, dim_z), bm2=(1, dim_z),
        wv1=(2 * H, H), bv1=(1, H), wv2=(H, dim_z), bv2=(1, dim_z),
        wd0=(Dzc, Dzc), bd0=(1, Dzc),
        wihd=(Dzc, 4 * H), whhd=(H, 4 * H), bd=(1, 4 * H),
        w1=(H, dim_z), b1=(1, dim_z), w2=(dim_z, dim), b2=(1, dim),
    )
    params = {}
    keys = jax.random.split(key, len(shapes))
    for k_rng, (name, shp) in zip(keys, sorted(shapes.items())):
        params[name] = 0.1 * jax.random.normal(k_rng, shp, jnp.float32)
    # LayerNorm affine params (PyTorch default: ones / zeros)
    params['gamma'] = jnp.ones((input_len, Din), jnp.float32)
    params['beta'] = jnp.zeros((input_len, Din), jnp.float32)
    return params


if __name__ == "__main__":
    input_len, dim, dim_z, class_num, batch = 8, 12, 8, 4, 2

    key = jax.random.PRNGKey(0)
    kp, kx, ke = jax.random.split(key, 3)
    params = init_params(kp, input_len, dim, dim_z, class_num)

    x = jax.random.normal(kx, (batch, input_len, dim), jnp.float32)
    x_lengths = jnp.array([input_len, 5], jnp.int32)
    class_vector = jnp.eye(class_num, dtype=jnp.float32)[jnp.array([1, 3])]
    # TODO(synk): torch.randn_like(mu) draws fresh noise each call; here eps is
    # drawn in the wrapper (refresh the key per call for new noise).
    eps = jax.random.normal(ke, (batch, dim_z), jnp.float32)

    fwd = jax.jit(lstm_cvae_forward)
    outs = jax.block_until_ready(fwd(params, x, x_lengths, class_vector, eps))
    x_out, recon, lens_out, mu, log_var, z = outs

    assert recon.shape == (batch, input_len, dim)
    assert mu.shape == (batch, dim_z)
    assert log_var.shape == (batch, dim_z)
    assert z.shape == (batch, dim_z)
    assert bool(jnp.all(jnp.isfinite(recon)))
    assert bool(jnp.all(jnp.isfinite(mu)))
    assert bool(jnp.all(jnp.isfinite(log_var)))
    assert bool(jnp.all(jnp.isfinite(z)))
    print("KERNEL_OK")
</pallas_src>

<mosaic_0001>
module attributes {stable_mosaic.version = 11 : i64} {
  func.func @cvae_kernel(%arg0: memref<16x12xf32, #tpu.memory_space<vmem>>, %arg1: memref<2x4xf32, #tpu.memory_space<vmem>>, %arg2: memref<2x1xi32, #tpu.memory_space<vmem>>, %arg3: memref<2x8xf32, #tpu.memory_space<vmem>>, %arg4: memref<2x16xf32, #tpu.memory_space<vmem>>, %arg5: memref<16x2xf32, #tpu.memory_space<vmem>>, %arg6: memref<12x16xf32, #tpu.memory_space<vmem>>, %arg7: memref<4x16xf32, #tpu.memory_space<vmem>>, %arg8: memref<1x16xf32, #tpu.memory_space<vmem>>, %arg9: memref<16x16xf32, #tpu.memory_space<vmem>>, %arg10: memref<16x16xf32, #tpu.memory_space<vmem>>, %arg11: memref<16x128xf32, #tpu.memory_space<vmem>>, %arg12: memref<1x128xf32, #tpu.memory_space<vmem>>, %arg13: memref<16x64xf32, #tpu.memory_space<vmem>>, %arg14: memref<16x64xf32, #tpu.memory_space<vmem>>, %arg15: memref<16x32xf32, #tpu.memory_space<vmem>>, %arg16: memref<16x32xf32, #tpu.memory_space<vmem>>, %arg17: memref<1x32xf32, #tpu.memory_space<vmem>>, %arg18: memref<32x16xf32, #tpu.memory_space<vmem>>, %arg19: memref<1x16xf32, #tpu.memory_space<vmem>>, %arg20: memref<8x12xf32, #tpu.memory_space<vmem>>, %arg21: memref<4x12xf32, #tpu.memory_space<vmem>>, %arg22: memref<1x12xf32, #tpu.memory_space<vmem>>, %arg23: memref<12x64xf32, #tpu.memory_space<vmem>>, %arg24: memref<16x64xf32, #tpu.memory_space<vmem>>, %arg25: memref<1x64xf32, #tpu.memory_space<vmem>>, %arg26: memref<16x8xf32, #tpu.memory_space<vmem>>, %arg27: memref<1x8xf32, #tpu.memory_space<vmem>>, %arg28: memref<8x12xf32, #tpu.memory_space<vmem>>, %arg29: memref<1x12xf32, #tpu.memory_space<vmem>>, %arg30: memref<16x12xf32, #tpu.memory_space<vmem>>, %arg31: memref<2x16xf32, #tpu.memory_space<vmem>>, %arg32: memref<2x8xf32, #tpu.memory_space<vmem>>, %arg33: memref<16x128xf32, #tpu.memory_space<vmem>>, %arg34: memref<16x16xf32, #tpu.memory_space<vmem>>) attributes {dimension_semantics = [], scalar_prefetch = 0 : i64, scratch_operands = 2 : i64, tpu.core_type = #tpu.core_type<tc>} {
    %c0 = arith.constant 0 : index
    %c0_0 = arith.constant 0 : index
    %0 = vector.load %arg0[%c0, %c0_0] : memref<16x12xf32, #tpu.memory_space<vmem>>, vector<16x12xf32>
    %c0_1 = arith.constant 0 : index
    %c0_2 = arith.constant 0 : index
    %1 = vector.load %arg1[%c0_1, %c0_2] : memref<2x4xf32, #tpu.memory_space<vmem>>, vector<2x4xf32>
    %c0_3 = arith.constant 0 : index
    %c0_4 = arith.constant 0 : index
    %2 = vector.load %arg4[%c0_3, %c0_4] : memref<2x16xf32, #tpu.memory_space<vmem>>, vector<2x16xf32>
    %c0_5 = arith.constant 0 : index
    %c0_6 = arith.constant 0 : index
    %3 = vector.load %arg5[%c0_5, %c0_6] : memref<16x2xf32, #tpu.memory_space<vmem>>, vector<16x2xf32>
    %c0_7 = arith.constant 0 : index
    %c0_8 = arith.constant 0 : index
    %4 = vector.load %arg7[%c0_7, %c0_8] : memref<4x16xf32, #tpu.memory_space<vmem>>, vector<4x16xf32>
    %cst = arith.constant dense<0.000000e+00> : vector<2x16xf32>
    %5 = tpu.matmul %1, %4, %cst {dimension_numbers = #tpu.dot_dimension_numbers<[1], [0], [0], [1], [0, 0, 1, 1], [], []>} : vector<2x4xf32>, vector<4x16xf32>, vector<2x16xf32> -> vector<2x16xf32>
    %c0_9 = arith.constant 0 : index
    %c0_10 = arith.constant 0 : index
    %6 = vector.load %arg8[%c0_9, %c0_10] : memref<1x16xf32, #tpu.memory_space<vmem>>, vector<1x16xf32>
    %7 = vector.broadcast %6 : vector<1x16xf32> to vector<2x16xf32>
    %8 = arith.addf %5, %7 : vector<2x16xf32>
    %c0_11 = arith.constant 0 : index
    %c0_12 = arith.constant 0 : index
    %9 = vector.load %arg6[%c0_11, %c0_12] : memref<12x16xf32, #tpu.memory_space<vmem>>, vector<12x16xf32>
    %cst_13 = arith.constant dense<0.000000e+00> : vector<16x16xf32>
    %10 = tpu.matmul %0, %9, %cst_13 {dimension_numbers = #tpu.dot_dimension_numbers<[1], [0], [0], [1], [0, 0, 1, 1], [], []>} : vector<16x12xf32>, vector<12x16xf32>, vector<16x16xf32> -> vector<16x16xf32>
    %cst_14 = arith.constant dense<0.000000e+00> : vector<16x16xf32>
    %11 = tpu.matmul %3, %8, %cst_14 {dimension_numbers = #tpu.dot_dimension_numbers<[1], [0], [0], [1], [0, 0, 1, 1], [], []>} : vector<16x2xf32>, vector<2x16xf32>, vector<16x16xf32> -> vector<16x16xf32>
    %12 = arith.addf %10, %11 : vector<16x16xf32>
    %cst_15 = arith.constant 0.000000e+00 : f32
    %13 = vector.broadcast %cst_15 : f32 to vector<16x16xf32>
    %14 = arith.maximumf %12, %13 : vector<16x16xf32>
    %cst_16 = arith.constant dense<0.000000e+00> : vector<2x16xf32>
    %15 = tpu.matmul %2, %14, %cst_16 {dimension_numbers = #tpu.dot_dimension_numbers<[1], [0], [0], [1], [0, 0, 1, 1], [], []>} : vector<2x16xf32>, vector<16x16xf32>, vector<2x16xf32> -> vector<2x16xf32>
    %cst_17 = arith.constant dense<0.000000e+00> : vector<16x16xf32>
    %16 = tpu.matmul %3, %15, %cst_17 {dimension_numbers = #tpu.dot_dimension_numbers<[1], [0], [0], [1], [0, 0, 1, 1], [], []>} : vector<16x2xf32>, vector<2x16xf32>, vector<16x16xf32> -> vector<16x16xf32>
    %cst_18 = arith.constant dense<0.000000e+00> : vector<16xf32>
    %17 = vector.multi_reduction <add>, %16, %cst_18 [1] : vector<16x16xf32> to vector<16xf32>
    %18 = vector.shape_cast %17 : vector<16xf32> to vector<16x1xf32>
    %cst_19 = arith.constant 1.280000e+02 : f32
    %19 = vector.broadcast %cst_19 : f32 to vector<16x1xf32>
    %20 = arith.divf %18, %19 : vector<16x1xf32>
    %21 = vector.broadcast %20 : vector<16x1xf32> to vector<16x16xf32>
    %22 = arith.subf %14, %21 : vector<16x16xf32>
    %23 = arith.mulf %22, %22 : vector<16x16xf32>
    %cst_20 = arith.constant dense<0.000000e+00> : vector<2x16xf32>
    %24 = tpu.matmul %2, %23, %cst_20 {dimension_numbers = #tpu.dot_dimension_numbers<[1], [0], [0], [1], [0, 0, 1, 1], [], []>} : vector<2x16xf32>, vector<16x16xf32>, vector<2x16xf32> -> vector<2x16xf32>
    %cst_21 = arith.constant dense<0.000000e+00> : vector<16x16xf32>
    %25 = tpu.matmul %3, %24, %cst_21 {dimension_numbers = #tpu.dot_dimension_numbers<[1], [0], [0], [1], [0, 0, 1, 1], [], []>} : vector<16x2xf32>, vector<2x16xf32>, vector<16x16xf32> -> vector<16x16xf32>
    %cst_22 = arith.constant dense<0.000000e+00> : vector<16xf32>
    %26 = vector.multi_reduction <add>, %25, %cst_22 [1] : vector<16x16xf32> to vector<16xf32>
    %27 = vector.shape_cast %26 : vector<16xf32> to vector<16x1xf32>
    %cst_23 = arith.constant 1.280000e+02 : f32
    %28 = vector.broadcast %cst_23 : f32 to vector<16x1xf32>
    %29 = arith.divf %27, %28 : vector<16x1xf32>
    %cst_24 = arith.constant 9.99999974E-6 : f32
    %30 = vector.broadcast %cst_24 : f32 to vector<16x1xf32>
    %31 = arith.addf %29, %30 : vector<16x1xf32>
    %32 = math.rsqrt %31 : vector<16x1xf32>
    %33 = vector.broadcast %32 : vector<16x1xf32> to vector<16x16xf32>
    %34 = arith.mulf %22, %33 : vector<16x16xf32>
    %c0_25 = arith.constant 0 : index
    %c0_26 = arith.constant 0 : index
    %35 = vector.load %arg9[%c0_25, %c0_26] : memref<16x16xf32, #tpu.memory_space<vmem>>, vector<16x16xf32>
    %36 = arith.mulf %34, %35 : vector<16x16xf32>
    %c0_27 = arith.constant 0 : index
    %c0_28 = arith.constant 0 : index
    %37 = vector.load %arg10[%c0_27, %c0_28] : memref<16x16xf32, #tpu.memory_space<vmem>>, vector<16x16xf32>
    %38 = arith.addf %36, %37 : vector<16x16xf32>
    %c0_29 = arith.constant 0 : index
    %c0_30 = arith.constant 0 : index
    %39 = vector.load %arg11[%c0_29, %c0_30] : memref<16x128xf32, #tpu.memory_space<vmem>>, vector<16x128xf32>
    %cst_31 = arith.constant dense<0.000000e+00> : vector<16x128xf32>
    %40 = tpu.matmul %38, %39, %cst_31 {dimension_numbers = #tpu.dot_dimension_numbers<[1], [0], [0], [1], [0, 0, 1, 1], [], []>} : vector<16x16xf32>, vector<16x128xf32>, vector<16x128xf32> -> vector<16x128xf32>
    %c0_32 = arith.constant 0 : index
    %c0_33 = arith.constant 0 : index
    %41 = vector.load %arg12[%c0_32, %c0_33] : memref<1x128xf32, #tpu.memory_space<vmem>>, vector<1x128xf32>
    %42 = vector.broadcast %41 : vector<1x128xf32> to vector<16x128xf32>
    %43 = arith.addf %40, %42 : vector<16x128xf32>
    %c0_34 = arith.constant 0 : index
    %c0_35 = arith.constant 0 : index
    %44 = vector.load %arg33[%c0_34, %c0_35] : memref<16x128xf32, #tpu.memory_space<vmem>>, vector<16x128xf32>
    tpu.vector_store %arg33[%c0_34, %c0_35], %43 {strides = array<i32>} : memref<16x128xf32, #tpu.memory_space<vmem>>, vector<16x128xf32>,
    %c0_36 = arith.constant 0 : index
    %c0_37 = arith.constant 0 : index
    %45 = vector.load %arg2[%c0_36, %c0_37] : memref<2x1xi32, #tpu.memory_space<vmem>>, vector<2x1xi32>
    %46 = arith.sitofp %45 : vector<2x1xi32> to vector<2x1xf32>
    %cst_38 = arith.constant 1.000000e+00 : f32
    %47 = vector.broadcast %cst_38 : f32 to vector<2x1xf32>
    %48 = arith.divf %47, %46 : vector<2x1xf32>
    %c0_39 = arith.constant 0 : index
    %c0_40 = arith.constant 0 : index
    %49 = vector.load %arg13[%c0_39, %c0_40] : memref<16x64xf32, #tpu.memory_space<vmem>>, vector<16x64xf32>
    %c0_41 = arith.constant 0 : index
    %c0_42 = arith.constant 0 : index
    %50 = vector.load %arg14[%c0_41, %c0_42] : memref<16x64xf32, #tpu.memory_space<vmem>>, vector<16x64xf32>
    %cst_43 = arith.constant 0.000000e+00 : f32
    %51 = vector.broadcast %cst_43 : f32 to vector<2x16xf32>
    %c0_44 = arith.constant 0 : index
    %c0_45 = arith.constant 0 : index
    %52 = vector.load %arg33[%c0_44, %c0_45] : memref<16x128xf32, #tpu.memory_space<vmem>>, vector<2x64xf32>
    %cst_46 = arith.constant dense<0.000000e+00> : vector<2x64xf32>
    %53 = tpu.matmul %51, %49, %cst_46 {dimension_numbers = #tpu.dot_dimension_numbers<[1], [0], [0], [1], [0, 0, 1, 1], [], []>} : vector<2x16xf32>, vector<16x64xf32>, vector<2x64xf32> -> vector<2x64xf32>
    %54 = arith.addf %52, %53 : vector<2x64xf32>
    %55 = vector.extract_strided_slice %54 {offsets = [0, 0], sizes = [2, 48], strides = [1, 1]} : vector<2x64xf32> to vector<2x48xf32>
    %cst_47 = arith.constant 5.000000e-01 : f32
    %56 = vector.broadcast %cst_47 : f32 to vector<2x48xf32>
    %57 = arith.mulf %56, %55 : vector<2x48xf32>
    %58 = math.tanh %57 : vector<2x48xf32>
    %cst_48 = arith.constant 5.000000e-01 : f32
    %59 = vector.broadcast %cst_48 : f32 to vector<2x48xf32>
    %60 = arith.mulf %59, %58 : vector<2x48xf32>
    %cst_49 = arith.constant 5.000000e-01 : f32
    %61 = vector.broadcast %cst_49 : f32 to vector<2x48xf32>
    %62 = arith.addf %60, %61 : vector<2x48xf32>
    %63 = vector.extract_strided_slice %62 {offsets = [0, 0], sizes = [2, 16], strides = [1, 1]} : vector<2x48xf32> to vector<2x16xf32>
    %64 = vector.extract_strided_slice %62 {offsets = [0, 16], sizes = [2, 16], strides = [1, 1]} : vector<2x48xf32> to vector<2x16xf32>
    %65 = vector.extract_strided_slice %62 {offsets = [0, 32], sizes = [2, 16], strides = [1, 1]} : vector<2x48xf32> to vector<2x16xf32>
    %66 = vector.extract_strided_slice %54 {offsets = [0, 48], sizes = [2, 16], strides = [1, 1]} : vector<2x64xf32> to vector<2x16xf32>
    %67 = math.tanh %66 : vector<2x16xf32>
    %68 = arith.mulf %64, %51 : vector<2x16xf32>
    %69 = arith.mulf %63, %67 : vector<2x16xf32>
    %70 = arith.addf %68, %69 : vector<2x16xf32>
    %71 = math.tanh %70 : vector<2x16xf32>
    %72 = arith.mulf %65, %71 : vector<2x16xf32>
    %c0_i32 = arith.constant 0 : i32
    %73 = vector.broadcast %c0_i32 : i32 to vector<2x1xi32>
    %74 = arith.cmpi sgt, %45, %73 : vector<2x1xi32>
    %75 = vector.shape_cast %74 : vector<2x1xi1> to vector<2x1xi1>
    %76 = vector.broadcast %75 : vector<2x1xi1> to vector<2x16xi1>
    %77 = arith.select %76, %72, %51 : vector<2x16xi1>, vector<2x16xf32>
    %78 = vector.shape_cast %74 : vector<2x1xi1> to vector<2x1xi1>
    %79 = vector.broadcast %78 : vector<2x1xi1> to vector<2x16xi1>
    %80 = arith.select %79, %70, %51 : vector<2x16xi1>, vector<2x16xf32>
    %cst_50 = arith.constant 0.000000e+00 : f32
    %81 = vector.shape_cast %74 : vector<2x1xi1> to vector<2x1xi1>
    %82 = vector.broadcast %81 : vector<2x1xi1> to vector<2x16xi1>
    %83 = vector.broadcast %cst_50 : f32 to vector<2x16xf32>
    %84 = arith.select %82, %72, %83 : vector<2x16xi1>, vector<2x16xf32>
    %85 = arith.addf %51, %84 : vector<2x16xf32>
    %c2 = arith.constant 2 : index
    %c0_51 = arith.constant 0 : index
    %86 = vector.load %arg33[%c2, %c0_51] : memref<16x128xf32, #tpu.memory_space<vmem>>, vector<2x64xf32>
    %cst_52 = arith.constant dense<0.000000e+00> : vector<2x64xf32>
    %87 = tpu.matmul %77, %49, %cst_52 {dimension_numbers = #tpu.dot_dimension_numbers<[1], [0], [0], [1], [0, 0, 1, 1], [], []>} : vector<2x16xf32>, vector<16x64xf32>, vector<2x64xf32> -> vector<2x64xf32>
    %88 = arith.addf %86, %87 : vector<2x64xf32>
    %89 = vector.extract_strided_slice %88 {offsets = [0, 0], sizes = [2, 48], strides = [1, 1]} : vector<2x64xf32> to vector<2x48xf32>
    %cst_53 = arith.constant 5.000000e-01 : f32
    %90 = vector.broadcast %cst_53 : f32 to vector<2x48xf32>
    %91 = arith.mulf %90, %89 : vector<2x48xf32>
    %92 = math.tanh %91 : vector<2x48xf32>
    %cst_54 = arith.constant 5.000000e-01 : f32
    %93 = vector.broadcast %cst_54 : f32 to vector<2x48xf32>
    %94 = arith.mulf %93, %92 : vector<2x48xf32>
    %cst_55 = arith.constant 5.000000e-01 : f32
    %95 = vector.broadcast %cst_55 : f32 to vector<2x48xf32>
    %96 = arith.addf %94, %95 : vector<2x48xf32>
    %97 = vector.extract_strided_slice %96 {offsets = [0, 0], sizes = [2, 16], strides = [1, 1]} : vector<2x48xf32> to vector<2x16xf32>
    %98 = vector.extract_strided_slice %96 {offsets = [0, 16], sizes = [2, 16], strides = [1, 1]} : vector<2x48xf32> to vector<2x16xf32>
    %99 = vector.extract_strided_slice %96 {offsets = [0, 32], sizes = [2, 16], strides = [1, 1]} : vector<2x48xf32> to vector<2x16xf32>
    %100 = vector.extract_strided_slice %88 {offsets = [0, 48], sizes = [2, 16], strides = [1, 1]} : vector<2x64xf32> to vector<2x16xf32>
    %101 = math.tanh %100 : vector<2x16xf32>
    %102 = arith.mulf %98, %80 : vector<2x16xf32>
    %103 = arith.mulf %97, %101 : vector<2x16xf32>
    %104 = arith.addf %102, %103 : vector<2x16xf32>
    %105 = math.tanh %104 : vector<2x16xf32>
    %106 = arith.mulf %99, %105 : vector<2x16xf32>
    %c1_i32 = arith.constant 1 : i32
    %107 = vector.broadcast %c1_i32 : i32 to vector<2x1xi32>
    %108 = arith.cmpi sgt, %45, %107 : vector<2x1xi32>
    %109 = vector.shape_cast %108 : vector<2x1xi1> to vector<2x1xi1>
    %110 = vector.broadcast %109 : vector<2x1xi1> to vector<2x16xi1>
    %111 = arith.select %110, %106, %77 : vector<2x16xi1>, vector<2x16xf32>
    %112 = vector.shape_cast %108 : vector<2x1xi1> to vector<2x1xi1>
    %113 = vector.broadcast %112 : vector<2x1xi1> to vector<2x16xi1>
    %114 = arith.select %113, %104, %80 : vector<2x16xi1>, vector<2x16xf32>
    %cst_56 = arith.constant 0.000000e+00 : f32
    %115 = vector.shape_cast %108 : vector<2x1xi1> to vector<2x1xi1>
    %116 = vector.broadcast %115 : vector<2x1xi1> to vector<2x16xi1>
    %117 = vector.broadcast %cst_56 : f32 to vector<2x16xf32>
    %118 = arith.select %116, %106, %117 : vector<2x16xi1>, vector<2x16xf32>
    %119 = arith.addf %85, %118 : vector<2x16xf32>
    %c4 = arith.constant 4 : index
    %c0_57 = arith.constant 0 : index
    %120 = vector.load %arg33[%c4, %c0_57] : memref<16x128xf32, #tpu.memory_space<vmem>>, vector<2x64xf32>
    %cst_58 = arith.constant dense<0.000000e+00> : vector<2x64xf32>
    %121 = tpu.matmul %111, %49, %cst_58 {dimension_numbers = #tpu.dot_dimension_numbers<[1], [0], [0], [1], [0, 0, 1, 1], [], []>} : vector<2x16xf32>, vector<16x64xf32>, vector<2x64xf32> -> vector<2x64xf32>
    %122 = arith.addf %120, %121 : vector<2x64xf32>
    %123 = vector.extract_strided_slice %122 {offsets = [0, 0], sizes = [2, 48], strides = [1, 1]} : vector<2x64xf32> to vector<2x48xf32>
    %cst_59 = arith.constant 5.000000e-01 : f32
    %124 = vector.broadcast %cst_59 : f32 to vector<2x48xf32>
    %125 = arith.mulf %124, %123 : vector<2x48xf32>
    %126 = math.tanh %125 : vector<2x48xf32>
    %cst_60 = arith.constant 5.000000e-01 : f32
    %127 = vector.broadcast %cst_60 : f32 to vector<2x48xf32>
    %128 = arith.mulf %127, %126 : vector<2x48xf32>
    %cst_61 = arith.constant 5.000000e-01 : f32
    %129 = vector.broadcast %cst_61 : f32 to vector<2x48xf32>
    %130 = arith.addf %128, %129 : vector<2x48xf32>
    %131 = vector.extract_strided_slice %130 {offsets = [0, 0], sizes = [2, 16], strides = [1, 1]} : vector<2x48xf32> to vector<2x16xf32>
    %132 = vector.extract_strided_slice %130 {offsets = [0, 16], sizes = [2, 16], strides = [1, 1]} : vector<2x48xf32> to vector<2x16xf32>
    %133 = vector.extract_strided_slice %130 {offsets = [0, 32], sizes = [2, 16], strides = [1, 1]} : vector<2x48xf32> to vector<2x16xf32>
    %134 = vector.extract_strided_slice %122 {offsets = [0, 48], sizes = [2, 16], strides = [1, 1]} : vector<2x64xf32> to vector<2x16xf32>
    %135 = math.tanh %134 : vector<2x16xf32>
    %136 = arith.mulf %132, %114 : vector<2x16xf32>
    %137 = arith.mulf %131, %135 : vector<2x16xf32>
    %138 = arith.addf %136, %137 : vector<2x16xf32>
    %139 = math.tanh %138 : vector<2x16xf32>
    %140 = arith.mulf %133, %139 : vector<2x16xf32>
    %c2_i32 = arith.constant 2 : i32
    %141 = vector.broadcast %c2_i32 : i32 to vector<2x1xi32>
    %142 = arith.cmpi sgt, %45, %141 : vector<2x1xi32>
    %143 = vector.shape_cast %142 : vector<2x1xi1> to vector<2x1xi1>
    %144 = vector.broadcast %143 : vector<2x1xi1> to vector<2x16xi1>
    %145 = arith.select %144, %140, %111 : vector<2x16xi1>, vector<2x16xf32>
    %146 = vector.shape_cast %142 : vector<2x1xi1> to vector<2x1xi1>
    %147 = vector.broadcast %146 : vector<2x1xi1> to vector<2x16xi1>
    %148 = arith.select %147, %138, %114 : vector<2x16xi1>, vector<2x16xf32>
    %cst_62 = arith.constant 0.000000e+00 : f32
    %149 = vector.shape_cast %142 : vector<2x1xi1> to vector<2x1xi1>
    %150 = vector.broadcast %149 : vector<2x1xi1> to vector<2x16xi1>
    %151 = vector.broadcast %cst_62 : f32 to vector<2x16xf32>
    %152 = arith.select %150, %140, %151 : vector<2x16xi1>, vector<2x16xf32>
    %153 = arith.addf %119, %152 : vector<2x16xf32>
    %c6 = arith.constant 6 : index
    %c0_63 = arith.constant 0 : index
    %154 = vector.load %arg33[%c6, %c0_63] : memref<16x128xf32, #tpu.memory_space<vmem>>, vector<2x64xf32>
    %cst_64 = arith.constant dense<0.000000e+00> : vector<2x64xf32>
    %155 = tpu.matmul %145, %49, %cst_64 {dimension_numbers = #tpu.dot_dimension_numbers<[1], [0], [0], [1], [0, 0, 1, 1], [], []>} : vector<2x16xf32>, vector<16x64xf32>, vector<2x64xf32> -> vector<2x64xf32>
    %156 = arith.addf %154, %155 : vector<2x64xf32>
    %157 = vector.extract_strided_slice %156 {offsets = [0, 0], sizes = [2, 48], strides = [1, 1]} : vector<2x64xf32> to vector<2x48xf32>
    %cst_65 = arith.constant 5.000000e-01 : f32
    %158 = vector.broadcast %cst_65 : f32 to vector<2x48xf32>
    %159 = arith.mulf %158, %157 : vector<2x48xf32>
    %160 = math.tanh %159 : vector<2x48xf32>
    %cst_66 = arith.constant 5.000000e-01 : f32
    %161 = vector.broadcast %cst_66 : f32 to vector<2x48xf32>
    %162 = arith.mulf %161, %160 : vector<2x48xf32>
    %cst_67 = arith.constant 5.000000e-01 : f32
    %163 = vector.broadcast %cst_67 : f32 to vector<2x48xf32>
    %164 = arith.addf %162, %163 : vector<2x48xf32>
    %165 = vector.extract_strided_slice %164 {offsets = [0, 0], sizes = [2, 16], strides = [1, 1]} : vector<2x48xf32> to vector<2x16xf32>
    %166 = vector.extract_strided_slice %164 {offsets = [0, 16], sizes = [2, 16], strides = [1, 1]} : vector<2x48xf32> to vector<2x16xf32>
    %167 = vector.extract_strided_slice %164 {offsets = [0, 32], sizes = [2, 16], strides = [1, 1]} : vector<2x48xf32> to vector<2x16xf32>
    %168 = vector.extract_strided_slice %156 {offsets = [0, 48], sizes = [2, 16], strides = [1, 1]} : vector<2x64xf32> to vector<2x16xf32>
    %169 = math.tanh %168 : vector<2x16xf32>
    %170 = arith.mulf %166, %148 : vector<2x16xf32>
    %171 = arith.mulf %165, %169 : vector<2x16xf32>
    %172 = arith.addf %170, %171 : vector<2x16xf32>
    %173 = math.tanh %172 : vector<2x16xf32>
    %174 = arith.mulf %167, %173 : vector<2x16xf32>
    %c3_i32 = arith.constant 3 : i32
    %175 = vector.broadcast %c3_i32 : i32 to vector<2x1xi32>
    %176 = arith.cmpi sgt, %45, %175 : vector<2x1xi32>
    %177 = vector.shape_cast %176 : vector<2x1xi1> to vector<2x1xi1>
    %178 = vector.broadcast %177 : vector<2x1xi1> to vector<2x16xi1>
    %179 = arith.select %178, %174, %145 : vector<2x16xi1>, vector<2x16xf32>
    %180 = vector.shape_cast %176 : vector<2x1xi1> to vector<2x1xi1>
    %181 = vector.broadcast %180 : vector<2x1xi1> to vector<2x16xi1>
    %182 = arith.select %181, %172, %148 : vector<2x16xi1>, vector<2x16xf32>
    %cst_68 = arith.constant 0.000000e+00 : f32
    %183 = vector.shape_cast %176 : vector<2x1xi1> to vector<2x1xi1>
    %184 = vector.broadcast %183 : vector<2x1xi1> to vector<2x16xi1>
    %185 = vector.broadcast %cst_68 : f32 to vector<2x16xf32>
    %186 = arith.select %184, %174, %185 : vector<2x16xi1>, vector<2x16xf32>
    %187 = arith.addf %153, %186 : vector<2x16xf32>
    %c8 = arith.constant 8 : index
    %c0_69 = arith.constant 0 : index
    %188 = vector.load %arg33[%c8, %c0_69] : memref<16x128xf32, #tpu.memory_space<vmem>>, vector<2x64xf32>
    %cst_70 = arith.constant dense<0.000000e+00> : vector<2x64xf32>
    %189 = tpu.matmul %179, %49, %cst_70 {dimension_numbers = #tpu.dot_dimension_numbers<[1], [0], [0], [1], [0, 0, 1, 1], [], []>} : vector<2x16xf32>, vector<16x64xf32>, vector<2x64xf32> -> vector<2x64xf32>
    %190 = arith.addf %188, %189 : vector<2x64xf32>
    %191 = vector.extract_strided_slice %190 {offsets = [0, 0], sizes = [2, 48], strides = [1, 1]} : vector<2x64xf32> to vector<2x48xf32>
    %cst_71 = arith.constant 5.000000e-01 : f32
    %192 = vector.broadcast %cst_71 : f32 to vector<2x48xf32>
    %193 = arith.mulf %192, %191 : vector<2x48xf32>
    %194 = math.tanh %193 : vector<2x48xf32>
    %cst_72 = arith.constant 5.000000e-01 : f32
    %195 = vector.broadcast %cst_72 : f32 to vector<2x48xf32>
    %196 = arith.mulf %195, %194 : vector<2x48xf32>
    %cst_73 = arith.constant 5.000000e-01 : f32
    %197 = vector.broadcast %cst_73 : f32 to vector<2x48xf32>
    %198 = arith.addf %196, %197 : vector<2x48xf32>
    %199 = vector.extract_strided_slice %198 {offsets = [0, 0], sizes = [2, 16], strides = [1, 1]} : vector<2x48xf32> to vector<2x16xf32>
    %200 = vector.extract_strided_slice %198 {offsets = [0, 16], sizes = [2, 16], strides = [1, 1]} : vector<2x48xf32> to vector<2x16xf32>
    %201 = vector.extract_strided_slice %198 {offsets = [0, 32], sizes = [2, 16], strides = [1, 1]} : vector<2x48xf32> to vector<2x16xf32>
    %202 = vector.extract_strided_slice %190 {offsets = [0, 48], sizes = [2, 16], strides = [1, 1]} : vector<2x64xf32> to vector<2x16xf32>
    %203 = math.tanh %202 : vector<2x16xf32>
    %204 = arith.mulf %200, %182 : vector<2x16xf32>
    %205 = arith.mulf %199, %203 : vector<2x16xf32>
    %206 = arith.addf %204, %205 : vector<2x16xf32>
    %207 = math.tanh %206 : vector<2x16xf32>
    %208 = arith.mulf %201, %207 : vector<2x16xf32>
    %c4_i32 = arith.constant 4 : i32
    %209 = vector.broadcast %c4_i32 : i32 to vector<2x1xi32>
    %210 = arith.cmpi sgt, %45, %209 : vector<2x1xi32>
    %211 = vector.shape_cast %210 : vector<2x1xi1> to vector<2x1xi1>
    %212 = vector.broadcast %211 : vector<2x1xi1> to vector<2x16xi1>
    %213 = arith.select %212, %208, %179 : vector<2x16xi1>, vector<2x16xf32>
    %214 = vector.shape_cast %210 : vector<2x1xi1> to vector<2x1xi1>
    %215 = vector.broadcast %214 : vector<2x1xi1> to vector<2x16xi1>
    %216 = arith.select %215, %206, %182 : vector<2x16xi1>, vector<2x16xf32>
    %cst_74 = arith.constant 0.000000e+00 : f32
    %217 = vector.shape_cast %210 : vector<2x1xi1> to vector<2x1xi1>
    %218 = vector.broadcast %217 : vector<2x1xi1> to vector<2x16xi1>
    %219 = vector.broadcast %cst_74 : f32 to vector<2x16xf32>
    %220 = arith.select %218, %208, %219 : vector<2x16xi1>, vector<2x16xf32>
    %221 = arith.addf %187, %220 : vector<2x16xf32>
    %c10 = arith.constant 10 : index
    %c0_75 = arith.constant 0 : index
    %222 = vector.load %arg33[%c10, %c0_75] : memref<16x128xf32, #tpu.memory_space<vmem>>, vector<2x64xf32>
    %cst_76 = arith.constant dense<0.000000e+00> : vector<2x64xf32>
    %223 = tpu.matmul %213, %49, %cst_76 {dimension_numbers = #tpu.dot_dimension_numbers<[1], [0], [0], [1], [0, 0, 1, 1], [], []>} : vector<2x16xf32>, vector<16x64xf32>, vector<2x64xf32> -> vector<2x64xf32>
    %224 = arith.addf %222, %223 : vector<2x64xf32>
    %225 = vector.extract_strided_slice %224 {offsets = [0, 0], sizes = [2, 48], strides = [1, 1]} : vector<2x64xf32> to vector<2x48xf32>
    %cst_77 = arith.constant 5.000000e-01 : f32
    %226 = vector.broadcast %cst_77 : f32 to vector<2x48xf32>
    %227 = arith.mulf %226, %225 : vector<2x48xf32>
    %228 = math.tanh %227 : vector<2x48xf32>
    %cst_78 = arith.constant 5.000000e-01 : f32
    %229 = vector.broadcast %cst_78 : f32 to vector<2x48xf32>
    %230 = arith.mulf %229, %228 : vector<2x48xf32>
    %cst_79 = arith.constant 5.000000e-01 : f32
    %231 = vector.broadcast %cst_79 : f32 to vector<2x48xf32>
    %232 = arith.addf %230, %231 : vector<2x48xf32>
    %233 = vector.extract_strided_slice %232 {offsets = [0, 0], sizes = [2, 16], strides = [1, 1]} : vector<2x48xf32> to vector<2x16xf32>
    %234 = vector.extract_strided_slice %232 {offsets = [0, 16], sizes = [2, 16], strides = [1, 1]} : vector<2x48xf32> to vector<2x16xf32>
    %235 = vector.extract_strided_slice %232 {offsets = [0, 32], sizes = [2, 16], strides = [1, 1]} : vector<2x48xf32> to vector<2x16xf32>
    %236 = vector.extract_strided_slice %224 {offsets = [0, 48], sizes = [2, 16], strides = [1, 1]} : vector<2x64xf32> to vector<2x16xf32>
    %237 = math.tanh %236 : vector<2x16xf32>
    %238 = arith.mulf %234, %216 : vector<2x16xf32>
    %239 = arith.mulf %233, %237 : vector<2x16xf32>
    %240 = arith.addf %238, %239 : vector<2x16xf32>
    %241 = math.tanh %240 : vector<2x16xf32>
    %242 = arith.mulf %235, %241 : vector<2x16xf32>
    %c5_i32 = arith.constant 5 : i32
    %243 = vector.broadcast %c5_i32 : i32 to vector<2x1xi32>
    %244 = arith.cmpi sgt, %45, %243 : vector<2x1xi32>
    %245 = vector.shape_cast %244 : vector<2x1xi1> to vector<2x1xi1>
    %246 = vector.broadcast %245 : vector<2x1xi1> to vector<2x16xi1>
    %247 = arith.select %246, %242, %213 : vector<2x16xi1>, vector<2x16xf32>
    %248 = vector.shape_cast %244 : vector<2x1xi1> to vector<2x1xi1>
    %249 = vector.broadcast %248 : vector<2x1xi1> to vector<2x16xi1>
    %250 = arith.select %249, %240, %216 : vector<2x16xi1>, vector<2x16xf32>
    %cst_80 = arith.constant 0.000000e+00 : f32
    %251 = vector.shape_cast %244 : vector<2x1xi1> to vector<2x1xi1>
    %252 = vector.broadcast %251 : vector<2x1xi1> to vector<2x16xi1>
    %253 = vector.broadcast %cst_80 : f32 to vector<2x16xf32>
    %254 = arith.select %252, %242, %253 : vector<2x16xi1>, vector<2x16xf32>
    %255 = arith.addf %221, %254 : vector<2x16xf32>
    %c12 = arith.constant 12 : index
    %c0_81 = arith.constant 0 : index
    %256 = vector.load %arg33[%c12, %c0_81] : memref<16x128xf32, #tpu.memory_space<vmem>>, vector<2x64xf32>
    %cst_82 = arith.constant dense<0.000000e+00> : vector<2x64xf32>
    %257 = tpu.matmul %247, %49, %cst_82 {dimension_numbers = #tpu.dot_dimension_numbers<[1], [0], [0], [1], [0, 0, 1, 1], [], []>} : vector<2x16xf32>, vector<16x64xf32>, vector<2x64xf32> -> vector<2x64xf32>
    %258 = arith.addf %256, %257 : vector<2x64xf32>
    %259 = vector.extract_strided_slice %258 {offsets = [0, 0], sizes = [2, 48], strides = [1, 1]} : vector<2x64xf32> to vector<2x48xf32>
    %cst_83 = arith.constant 5.000000e-01 : f32
    %260 = vector.broadcast %cst_83 : f32 to vector<2x48xf32>
    %261 = arith.mulf %260, %259 : vector<2x48xf32>
    %262 = math.tanh %261 : vector<2x48xf32>
    %cst_84 = arith.constant 5.000000e-01 : f32
    %263 = vector.broadcast %cst_84 : f32 to vector<2x48xf32>
    %264 = arith.mulf %263, %262 : vector<2x48xf32>
    %cst_85 = arith.constant 5.000000e-01 : f32
    %265 = vector.broadcast %cst_85 : f32 to vector<2x48xf32>
    %266 = arith.addf %264, %265 : vector<2x48xf32>
    %267 = vector.extract_strided_slice %266 {offsets = [0, 0], sizes = [2, 16], strides = [1, 1]} : vector<2x48xf32> to vector<2x16xf32>
    %268 = vector.extract_strided_slice %266 {offsets = [0, 16], sizes = [2, 16], strides = [1, 1]} : vector<2x48xf32> to vector<2x16xf32>
    %269 = vector.extract_strided_slice %266 {offsets = [0, 32], sizes = [2, 16], strides = [1, 1]} : vector<2x48xf32> to vector<2x16xf32>
    %270 = vector.extract_strided_slice %258 {offsets = [0, 48], sizes = [2, 16], strides = [1, 1]} : vector<2x64xf32> to vector<2x16xf32>
    %271 = math.tanh %270 : vector<2x16xf32>
    %272 = arith.mulf %268, %250 : vector<2x16xf32>
    %273 = arith.mulf %267, %271 : vector<2x16xf32>
    %274 = arith.addf %272, %273 : vector<2x16xf32>
    %275 = math.tanh %274 : vector<2x16xf32>
    %276 = arith.mulf %269, %275 : vector<2x16xf32>
    %c6_i32 = arith.constant 6 : i32
    %277 = vector.broadcast %c6_i32 : i32 to vector<2x1xi32>
    %278 = arith.cmpi sgt, %45, %277 : vector<2x1xi32>
    %279 = vector.shape_cast %278 : vector<2x1xi1> to vector<2x1xi1>
    %280 = vector.broadcast %279 : vector<2x1xi1> to vector<2x16xi1>
    %281 = arith.select %280, %276, %247 : vector<2x16xi1>, vector<2x16xf32>
    %282 = vector.shape_cast %278 : vector<2x1xi1> to vector<2x1xi1>
    %283 = vector.broadcast %282 : vector<2x1xi1> to vector<2x16xi1>
    %284 = arith.select %283, %274, %250 : vector<2x16xi1>, vector<2x16xf32>
    %cst_86 = arith.constant 0.000000e+00 : f32
    %285 = vector.shape_cast %278 : vector<2x1xi1> to vector<2x1xi1>
    %286 = vector.broadcast %285 : vector<2x1xi1> to vector<2x16xi1>
    %287 = vector.broadcast %cst_86 : f32 to vector<2x16xf32>
    %288 = arith.select %286, %276, %287 : vector<2x16xi1>, vector<2x16xf32>
    %289 = arith.addf %255, %288 : vector<2x16xf32>
    %c14 = arith.constant 14 : index
    %c0_87 = arith.constant 0 : index
    %290 = vector.load %arg33[%c14, %c0_87] : memref<16x128xf32, #tpu.memory_space<vmem>>, vector<2x64xf32>
    %cst_88 = arith.constant dense<0.000000e+00> : vector<2x64xf32>
    %291 = tpu.matmul %281, %49, %cst_88 {dimension_numbers = #tpu.dot_dimension_numbers<[1], [0], [0], [1], [0, 0, 1, 1], [], []>} : vector<2x16xf32>, vector<16x64xf32>, vector<2x64xf32> -> vector<2x64xf32>
    %292 = arith.addf %290, %291 : vector<2x64xf32>
    %293 = vector.extract_strided_slice %292 {offsets = [0, 0], sizes = [2, 48], strides = [1, 1]} : vector<2x64xf32> to vector<2x48xf32>
    %cst_89 = arith.constant 5.000000e-01 : f32
    %294 = vector.broadcast %cst_89 : f32 to vector<2x48xf32>
    %295 = arith.mulf %294, %293 : vector<2x48xf32>
    %296 = math.tanh %295 : vector<2x48xf32>
    %cst_90 = arith.constant 5.000000e-01 : f32
    %297 = vector.broadcast %cst_90 : f32 to vector<2x48xf32>
    %298 = arith.mulf %297, %296 : vector<2x48xf32>
    %cst_91 = arith.constant 5.000000e-01 : f32
    %299 = vector.broadcast %cst_91 : f32 to vector<2x48xf32>
    %300 = arith.addf %298, %299 : vector<2x48xf32>
    %301 = vector.extract_strided_slice %300 {offsets = [0, 0], sizes = [2, 16], strides = [1, 1]} : vector<2x48xf32> to vector<2x16xf32>
    %302 = vector.extract_strided_slice %300 {offsets = [0, 16], sizes = [2, 16], strides = [1, 1]} : vector<2x48xf32> to vector<2x16xf32>
    %303 = vector.extract_strided_slice %300 {offsets = [0, 32], sizes = [2, 16], strides = [1, 1]} : vector<2x48xf32> to vector<2x16xf32>
    %304 = vector.extract_strided_slice %292 {offsets = [0, 48], sizes = [2, 16], strides = [1, 1]} : vector<2x64xf32> to vector<2x16xf32>
    %305 = math.tanh %304 : vector<2x16xf32>
    %306 = arith.mulf %302, %284 : vector<2x16xf32>
    %307 = arith.mulf %301, %305 : vector<2x16xf32>
    %308 = arith.addf %306, %307 : vector<2x16xf32>
    %309 = math.tanh %308 : vector<2x16xf32>
    %310 = arith.mulf %303, %309 : vector<2x16xf32>
    %c7_i32 = arith.constant 7 : i32
    %311 = vector.broadcast %c7_i32 : i32 to vector<2x1xi32>
    %312 = arith.cmpi sgt, %45, %311 : vector<2x1xi32>
    %cst_92 = arith.constant 0.000000e+00 : f32
    %313 = vector.shape_cast %312 : vector<2x1xi1> to vector<2x1xi1>
    %314 = vector.broadcast %313 : vector<2x1xi1> to vector<2x16xi1>
    %315 = vector.broadcast %cst_92 : f32 to vector<2x16xf32>
    %316 = arith.select %314, %310, %315 : vector<2x16xi1>, vector<2x16xf32>
    %317 = arith.addf %289, %316 : vector<2x16xf32>
    %c14_93 = arith.constant 14 : index
    %c64 = arith.constant 64 : index
    %318 = vector.load %arg33[%c14_93, %c64] : memref<16x128xf32, #tpu.memory_space<vmem>>, vector<2x64xf32>
    %cst_94 = arith.constant dense<0.000000e+00> : vector<2x64xf32>
    %319 = tpu.matmul %51, %50, %cst_94 {dimension_numbers = #tpu.dot_dimension_numbers<[1], [0], [0], [1], [0, 0, 1, 1], [], []>} : vector<2x16xf32>, vector<16x64xf32>, vector<2x64xf32> -> vector<2x64xf32>
    %320 = arith.addf %318, %319 : vector<2x64xf32>
    %321 = vector.extract_strided_slice %320 {offsets = [0, 0], sizes = [2, 48], strides = [1, 1]} : vector<2x64xf32> to vector<2x48xf32>
    %cst_95 = arith.constant 5.000000e-01 : f32
    %322 = vector.broadcast %cst_95 : f32 to vector<2x48xf32>
    %323 = arith.mulf %322, %321 : vector<2x48xf32>
    %324 = math.tanh %323 : vector<2x48xf32>
    %cst_96 = arith.constant 5.000000e-01 : f32
    %325 = vector.broadcast %cst_96 : f32 to vector<2x48xf32>
    %326 = arith.mulf %325, %324 : vector<2x48xf32>
    %cst_97 = arith.constant 5.000000e-01 : f32
    %327 = vector.broadcast %cst_97 : f32 to vector<2x48xf32>
    %328 = arith.addf %326, %327 : vector<2x48xf32>
    %329 = vector.extract_strided_slice %328 {offsets = [0, 0], sizes = [2, 16], strides = [1, 1]} : vector<2x48xf32> to vector<2x16xf32>
    %330 = vector.extract_strided_slice %328 {offsets = [0, 16], sizes = [2, 16], strides = [1, 1]} : vector<2x48xf32> to vector<2x16xf32>
    %331 = vector.extract_strided_slice %328 {offsets = [0, 32], sizes = [2, 16], strides = [1, 1]} : vector<2x48xf32> to vector<2x16xf32>
    %332 = vector.extract_strided_slice %320 {offsets = [0, 48], sizes = [2, 16], strides = [1, 1]} : vector<2x64xf32> to vector<2x16xf32>
    %333 = math.tanh %332 : vector<2x16xf32>
    %334 = arith.mulf %330, %51 : vector<2x16xf32>
    %335 = arith.mulf %329, %333 : vector<2x16xf32>
    %336 = arith.addf %334, %335 : vector<2x16xf32>
    %337 = math.tanh %336 : vector<2x16xf32>
    %338 = arith.mulf %331, %337 : vector<2x16xf32>
    %c7_i32_98 = arith.constant 7 : i32
    %339 = vector.broadcast %c7_i32_98 : i32 to vector<2x1xi32>
    %340 = arith.cmpi sgt, %45, %339 : vector<2x1xi32>
    %341 = vector.shape_cast %340 : vector<2x1xi1> to vector<2x1xi1>
    %342 = vector.broadcast %341 : vector<2x1xi1> to vector<2x16xi1>
    %343 = arith.select %342, %338, %51 : vector<2x16xi1>, vector<2x16xf32>
    %344 = vector.shape_cast %340 : vector<2x1xi1> to vector<2x1xi1>
    %345 = vector.broadcast %344 : vector<2x1xi1> to vector<2x16xi1>
    %346 = arith.select %345, %336, %51 : vector<2x16xi1>, vector<2x16xf32>
    %cst_99 = arith.constant 0.000000e+00 : f32
    %347 = vector.shape_cast %340 : vector<2x1xi1> to vector<2x1xi1>
    %348 = vector.broadcast %347 : vector<2x1xi1> to vector<2x16xi1>
    %349 = vector.broadcast %cst_99 : f32 to vector<2x16xf32>
    %350 = arith.select %348, %338, %349 : vector<2x16xi1>, vector<2x16xf32>
    %351 = arith.addf %51, %350 : vector<2x16xf32>
    %c12_100 = arith.constant 12 : index
    %c64_101 = arith.constant 64 : index
    %352 = vector.load %arg33[%c12_100, %c64_101] : memref<16x128xf32, #tpu.memory_space<vmem>>, vector<2x64xf32>
    %cst_102 = arith.constant dense<0.000000e+00> : vector<2x64xf32>
    %353 = tpu.matmul %343, %50, %cst_102 {dimension_numbers = #tpu.dot_dimension_numbers<[1], [0], [0], [1], [0, 0, 1, 1], [], []>} : vector<2x16xf32>, vector<16x64xf32>, vector<2x64xf32> -> vector<2x64xf32>
    %354 = arith.addf %352, %353 : vector<2x64xf32>
    %355 = vector.extract_strided_slice %354 {offsets = [0, 0], sizes = [2, 48], strides = [1, 1]} : vector<2x64xf32> to vector<2x48xf32>
    %cst_103 = arith.constant 5.000000e-01 : f32
    %356 = vector.broadcast %cst_103 : f32 to vector<2x48xf32>
    %357 = arith.mulf %356, %355 : vector<2x48xf32>
    %358 = math.tanh %357 : vector<2x48xf32>
    %cst_104 = arith.constant 5.000000e-01 : f32
    %359 = vector.broadcast %cst_104 : f32 to vector<2x48xf32>
    %360 = arith.mulf %359, %358 : vector<2x48xf32>
    %cst_105 = arith.constant 5.000000e-01 : f32
    %361 = vector.broadcast %cst_105 : f32 to vector<2x48xf32>
    %362 = arith.addf %360, %361 : vector<2x48xf32>
    %363 = vector.extract_strided_slice %362 {offsets = [0, 0], sizes = [2, 16], strides = [1, 1]} : vector<2x48xf32> to vector<2x16xf32>
    %364 = vector.extract_strided_slice %362 {offsets = [0, 16], sizes = [2, 16], strides = [1, 1]} : vector<2x48xf32> to vector<2x16xf32>
    %365 = vector.extract_strided_slice %362 {offsets = [0, 32], sizes = [2, 16], strides = [1, 1]} : vector<2x48xf32> to vector<2x16xf32>
    %366 = vector.extract_strided_slice %354 {offsets = [0, 48], sizes = [2, 16], strides = [1, 1]} : vector<2x64xf32> to vector<2x16xf32>
    %367 = math.tanh %366 : vector<2x16xf32>
    %368 = arith.mulf %364, %346 : vector<2x16xf32>
    %369 = arith.mulf %363, %367 : vector<2x16xf32>
    %370 = arith.addf %368, %369 : vector<2x16xf32>
    %371 = math.tanh %370 : vector<2x16xf32>
    %372 = arith.mulf %365, %371 : vector<2x16xf32>
    %c6_i32_106 = arith.constant 6 : i32
    %373 = vector.broadcast %c6_i32_106 : i32 to vector<2x1xi32>
    %374 = arith.cmpi sgt, %45, %373 : vector<2x1xi32>
    %375 = vector.shape_cast %374 : vector<2x1xi1> to vector<2x1xi1>
    %376 = vector.broadcast %375 : vector<2x1xi1> to vector<2x16xi1>
    %377 = arith.select %376, %372, %343 : vector<2x16xi1>, vector<2x16xf32>
    %378 = vector.shape_cast %374 : vector<2x1xi1> to vector<2x1xi1>
    %379 = vector.broadcast %378 : vector<2x1xi1> to vector<2x16xi1>
    %380 = arith.select %379, %370, %346 : vector<2x16xi1>, vector<2x16xf32>
    %cst_107 = arith.constant 0.000000e+00 : f32
    %381 = vector.shape_cast %374 : vector<2x1xi1> to vector<2x1xi1>
    %382 = vector.broadcast %381 : vector<2x1xi1> to vector<2x16xi1>
    %383 = vector.broadcast %cst_107 : f32 to vector<2x16xf32>
    %384 = arith.select %382, %372, %383 : vector<2x16xi1>, vector<2x16xf32>
    %385 = arith.addf %351, %384 : vector<2x16xf32>
    %c10_108 = arith.constant 10 : index
    %c64_109 = arith.constant 64 : index
    %386 = vector.load %arg33[%c10_108, %c64_109] : memref<16x128xf32, #tpu.memory_space<vmem>>, vector<2x64xf32>
    %cst_110 = arith.constant dense<0.000000e+00> : vector<2x64xf32>
    %387 = tpu.matmul %377, %50, %cst_110 {dimension_numbers = #tpu.dot_dimension_numbers<[1], [0], [0], [1], [0, 0, 1, 1], [], []>} : vector<2x16xf32>, vector<16x64xf32>, vector<2x64xf32> -> vector<2x64xf32>
    %388 = arith.addf %386, %387 : vector<2x64xf32>
    %389 = vector.extract_strided_slice %388 {offsets = [0, 0], sizes = [2, 48], strides = [1, 1]} : vector<2x64xf32> to vector<2x48xf32>
    %cst_111 = arith.constant 5.000000e-01 : f32
    %390 = vector.broadcast %cst_111 : f32 to vector<2x48xf32>
    %391 = arith.mulf %390, %389 : vector<2x48xf32>
    %392 = math.tanh %391 : vector<2x48xf32>
    %cst_112 = arith.constant 5.000000e-01 : f32
    %393 = vector.broadcast %cst_112 : f32 to vector<2x48xf32>
    %394 = arith.mulf %393, %392 : vector<2x48xf32>
    %cst_113 = arith.constant 5.000000e-01 : f32
    %395 = vector.broadcast %cst_113 : f32 to vector<2x48xf32>
    %396 = arith.addf %394, %395 : vector<2x48xf32>
    %397 = vector.extract_strided_slice %396 {offsets = [0, 0], sizes = [2, 16], strides = [1, 1]} : vector<2x48xf32> to vector<2x16xf32>
    %398 = vector.extract_strided_slice %396 {offsets = [0, 16], sizes = [2, 16], strides = [1, 1]} : vector<2x48xf32> to vector<2x16xf32>
    %399 = vector.extract_strided_slice %396 {offsets = [0, 32], sizes = [2, 16], strides = [1, 1]} : vector<2x48xf32> to vector<2x16xf32>
    %400 = vector.extract_strided_slice %388 {offsets = [0, 48], sizes = [2, 16], strides = [1, 1]} : vector<2x64xf32> to vector<2x16xf32>
    %401 = math.tanh %400 : vector<2x16xf32>
    %402 = arith.mulf %398, %380 : vector<2x16xf32>
    %403 = arith.mulf %397, %401 : vector<2x16xf32>
    %404 = arith.addf %402, %403 : vector<2x16xf32>
    %405 = math.tanh %404 : vector<2x16xf32>
    %406 = arith.mulf %399, %405 : vector<2x16xf32>
    %c5_i32_114 = arith.constant 5 : i32
    %407 = vector.broadcast %c5_i32_114 : i32 to vector<2x1xi32>
    %408 = arith.cmpi sgt, %45, %407 : vector<2x1xi32>
    %409 = vector.shape_cast %408 : vector<2x1xi1> to vector<2x1xi1>
    %410 = vector.broadcast %409 : vector<2x1xi1> to vector<2x16xi1>
    %411 = arith.select %410, %406, %377 : vector<2x16xi1>, vector<2x16xf32>
    %412 = vector.shape_cast %408 : vector<2x1xi1> to vector<2x1xi1>
    %413 = vector.broadcast %412 : vector<2x1xi1> to vector<2x16xi1>
    %414 = arith.select %413, %404, %380 : vector<2x16xi1>, vector<2x16xf32>
    %cst_115 = arith.constant 0.000000e+00 : f32
    %415 = vector.shape_cast %408 : vector<2x1xi1> to vector<2x1xi1>
    %416 = vector.broadcast %415 : vector<2x1xi1> to vector<2x16xi1>
    %417 = vector.broadcast %cst_115 : f32 to vector<2x16xf32>
    %418 = arith.select %416, %406, %417 : vector<2x16xi1>, vector<2x16xf32>
    %419 = arith.addf %385, %418 : vector<2x16xf32>
    %c8_116 = arith.constant 8 : index
    %c64_117 = arith.constant 64 : index
    %420 = vector.load %arg33[%c8_116, %c64_117] : memref<16x128xf32, #tpu.memory_space<vmem>>, vector<2x64xf32>
    %cst_118 = arith.constant dense<0.000000e+00> : vector<2x64xf32>
    %421 = tpu.matmul %411, %50, %cst_118 {dimension_numbers = #tpu.dot_dimension_numbers<[1], [0], [0], [1], [0, 0, 1, 1], [], []>} : vector<2x16xf32>, vector<16x64xf32>, vector<2x64xf32> -> vector<2x64xf32>
    %422 = arith.addf %420, %421 : vector<2x64xf32>
    %423 = vector.extract_strided_slice %422 {offsets = [0, 0], sizes = [2, 48], strides = [1, 1]} : vector<2x64xf32> to vector<2x48xf32>
    %cst_119 = arith.constant 5.000000e-01 : f32
    %424 = vector.broadcast %cst_119 : f32 to vector<2x48xf32>
    %425 = arith.mulf %424, %423 : vector<2x48xf32>
    %426 = math.tanh %425 : vector<2x48xf32>
    %cst_120 = arith.constant 5.000000e-01 : f32
    %427 = vector.broadcast %cst_120 : f32 to vector<2x48xf32>
    %428 = arith.mulf %427, %426 : vector<2x48xf32>
    %cst_121 = arith.constant 5.000000e-01 : f32
    %429 = vector.broadcast %cst_121 : f32 to vector<2x48xf32>
    %430 = arith.addf %428, %429 : vector<2x48xf32>
    %431 = vector.extract_strided_slice %430 {offsets = [0, 0], sizes = [2, 16], strides = [1, 1]} : vector<2x48xf32> to vector<2x16xf32>
    %432 = vector.extract_strided_slice %430 {offsets = [0, 16], sizes = [2, 16], strides = [1, 1]} : vector<2x48xf32> to vector<2x16xf32>
    %433 = vector.extract_strided_slice %430 {offsets = [0, 32], sizes = [2, 16], strides = [1, 1]} : vector<2x48xf32> to vector<2x16xf32>
    %434 = vector.extract_strided_slice %422 {offsets = [0, 48], sizes = [2, 16], strides = [1, 1]} : vector<2x64xf32> to vector<2x16xf32>
    %435 = math.tanh %434 : vector<2x16xf32>
    %436 = arith.mulf %432, %414 : vector<2x16xf32>
    %437 = arith.mulf %431, %435 : vector<2x16xf32>
    %438 = arith.addf %436, %437 : vector<2x16xf32>
    %439 = math.tanh %438 : vector<2x16xf32>
    %440 = arith.mulf %433, %439 : vector<2x16xf32>
    %c4_i32_122 = arith.constant 4 : i32
    %441 = vector.broadcast %c4_i32_122 : i32 to vector<2x1xi32>
    %442 = arith.cmpi sgt, %45, %441 : vector<2x1xi32>
    %443 = vector.shape_cast %442 : vector<2x1xi1> to vector<2x1xi1>
    %444 = vector.broadcast %443 : vector<2x1xi1> to vector<2x16xi1>
    %445 = arith.select %444, %440, %411 : vector<2x16xi1>, vector<2x16xf32>
    %446 = vector.shape_cast %442 : vector<2x1xi1> to vector<2x1xi1>
    %447 = vector.broadcast %446 : vector<2x1xi1> to vector<2x16xi1>
    %448 = arith.select %447, %438, %414 : vector<2x16xi1>, vector<2x16xf32>
    %cst_123 = arith.constant 0.000000e+00 : f32
    %449 = vector.shape_cast %442 : vector<2x1xi1> to vector<2x1xi1>
    %450 = vector.broadcast %449 : vector<2x1xi1> to vector<2x16xi1>
    %451 = vector.broadcast %cst_123 : f32 to vector<2x16xf32>
    %452 = arith.select %450, %440, %451 : vector<2x16xi1>, vector<2x16xf32>
    %453 = arith.addf %419, %452 : vector<2x16xf32>
    %c6_124 = arith.constant 6 : index
    %c64_125 = arith.constant 64 : index
    %454 = vector.load %arg33[%c6_124, %c64_125] : memref<16x128xf32, #tpu.memory_space<vmem>>, vector<2x64xf32>
    %cst_126 = arith.constant dense<0.000000e+00> : vector<2x64xf32>
    %455 = tpu.matmul %445, %50, %cst_126 {dimension_numbers = #tpu.dot_dimension_numbers<[1], [0], [0], [1], [0, 0, 1, 1], [], []>} : vector<2x16xf32>, vector<16x64xf32>, vector<2x64xf32> -> vector<2x64xf32>
    %456 = arith.addf %454, %455 : vector<2x64xf32>
    %457 = vector.extract_strided_slice %456 {offsets = [0, 0], sizes = [2, 48], strides = [1, 1]} : vector<2x64xf32> to vector<2x48xf32>
    %cst_127 = arith.constant 5.000000e-01 : f32
    %458 = vector.broadcast %cst_127 : f32 to vector<2x48xf32>
    %459 = arith.mulf %458, %457 : vector<2x48xf32>
    %460 = math.tanh %459 : vector<2x48xf32>
    %cst_128 = arith.constant 5.000000e-01 : f32
    %461 = vector.broadcast %cst_128 : f32 to vector<2x48xf32>
    %462 = arith.mulf %461, %460 : vector<2x48xf32>
    %cst_129 = arith.constant 5.000000e-01 : f32
    %463 = vector.broadcast %cst_129 : f32 to vector<2x48xf32>
    %464 = arith.addf %462, %463 : vector<2x48xf32>
    %465 = vector.extract_strided_slice %464 {offsets = [0, 0], sizes = [2, 16], strides = [1, 1]} : vector<2x48xf32> to vector<2x16xf32>
    %466 = vector.extract_strided_slice %464 {offsets = [0, 16], sizes = [2, 16], strides = [1, 1]} : vector<2x48xf32> to vector<2x16xf32>
    %467 = vector.extract_strided_slice %464 {offsets = [0, 32], sizes = [2, 16], strides = [1, 1]} : vector<2x48xf32> to vector<2x16xf32>
    %468 = vector.extract_strided_slice %456 {offsets = [0, 48], sizes = [2, 16], strides = [1, 1]} : vector<2x64xf32> to vector<2x16xf32>
    %469 = math.tanh %468 : vector<2x16xf32>
    %470 = arith.mulf %466, %448 : vector<2x16xf32>
    %471 = arith.mulf %465, %469 : vector<2x16xf32>
    %472 = arith.addf %470, %471 : vector<2x16xf32>
    %473 = math.tanh %472 : vector<2x16xf32>
    %474 = arith.mulf %467, %473 : vector<2x16xf32>
    %c3_i32_130 = arith.constant 3 : i32
    %475 = vector.broadcast %c3_i32_130 : i32 to vector<2x1xi32>
    %476 = arith.cmpi sgt, %45, %475 : vector<2x1xi32>
    %477 = vector.shape_cast %476 : vector<2x1xi1> to vector<2x1xi1>
    %478 = vector.broadcast %477 : vector<2x1xi1> to vector<2x16xi1>
    %479 = arith.select %478, %474, %445 : vector<2x16xi1>, vector<2x16xf32>
    %480 = vector.shape_cast %476 : vector<2x1xi1> to vector<2x1xi1>
    %481 = vector.broadcast %480 : vector<2x1xi1> to vector<2x16xi1>
    %482 = arith.select %481, %472, %448 : vector<2x16xi1>, vector<2x16xf32>
    %cst_131 = arith.constant 0.000000e+00 : f32
    %483 = vector.shape_cast %476 : vector<2x1xi1> to vector<2x1xi1>
    %484 = vector.broadcast %483 : vector<2x1xi1> to vector<2x16xi1>
    %485 = vector.broadcast %cst_131 : f32 to vector<2x16xf32>
    %486 = arith.select %484, %474, %485 : vector<2x16xi1>, vector<2x16xf32>
    %487 = arith.addf %453, %486 : vector<2x16xf32>
    %c4_132 = arith.constant 4 : index
    %c64_133 = arith.constant 64 : index
    %488 = vector.load %arg33[%c4_132, %c64_133] : memref<16x128xf32, #tpu.memory_space<vmem>>, vector<2x64xf32>
    %cst_134 = arith.constant dense<0.000000e+00> : vector<2x64xf32>
    %489 = tpu.matmul %479, %50, %cst_134 {dimension_numbers = #tpu.dot_dimension_numbers<[1], [0], [0], [1], [0, 0, 1, 1], [], []>} : vector<2x16xf32>, vector<16x64xf32>, vector<2x64xf32> -> vector<2x64xf32>
    %490 = arith.addf %488, %489 : vector<2x64xf32>
    %491 = vector.extract_strided_slice %490 {offsets = [0, 0], sizes = [2, 48], strides = [1, 1]} : vector<2x64xf32> to vector<2x48xf32>
    %cst_135 = arith.constant 5.000000e-01 : f32
    %492 = vector.broadcast %cst_135 : f32 to vector<2x48xf32>
    %493 = arith.mulf %492, %491 : vector<2x48xf32>
    %494 = math.tanh %493 : vector<2x48xf32>
    %cst_136 = arith.constant 5.000000e-01 : f32
    %495 = vector.broadcast %cst_136 : f32 to vector<2x48xf32>
    %496 = arith.mulf %495, %494 : vector<2x48xf32>
    %cst_137 = arith.constant 5.000000e-01 : f32
    %497 = vector.broadcast %cst_137 : f32 to vector<2x48xf32>
    %498 = arith.addf %496, %497 : vector<2x48xf32>
    %499 = vector.extract_strided_slice %498 {offsets = [0, 0], sizes = [2, 16], strides = [1, 1]} : vector<2x48xf32> to vector<2x16xf32>
    %500 = vector.extract_strided_slice %498 {offsets = [0, 16], sizes = [2, 16], strides = [1, 1]} : vector<2x48xf32> to vector<2x16xf32>
    %501 = vector.extract_strided_slice %498 {offsets = [0, 32], sizes = [2, 16], strides = [1, 1]} : vector<2x48xf32> to vector<2x16xf32>
    %502 = vector.extract_strided_slice %490 {offsets = [0, 48], sizes = [2, 16], strides = [1, 1]} : vector<2x64xf32> to vector<2x16xf32>
    %503 = math.tanh %502 : vector<2x16xf32>
    %504 = arith.mulf %500, %482 : vector<2x16xf32>
    %505 = arith.mulf %499, %503 : vector<2x16xf32>
    %506 = arith.addf %504, %505 : vector<2x16xf32>
    %507 = math.tanh %506 : vector<2x16xf32>
    %508 = arith.mulf %501, %507 : vector<2x16xf32>
    %c2_i32_138 = arith.constant 2 : i32
    %509 = vector.broadcast %c2_i32_138 : i32 to vector<2x1xi32>
    %510 = arith.cmpi sgt, %45, %509 : vector<2x1xi32>
    %511 = vector.shape_cast %510 : vector<2x1xi1> to vector<2x1xi1>
    %512 = vector.broadcast %511 : vector<2x1xi1> to vector<2x16xi1>
    %513 = arith.select %512, %508, %479 : vector<2x16xi1>, vector<2x16xf32>
    %514 = vector.shape_cast %510 : vector<2x1xi1> to vector<2x1xi1>
    %515 = vector.broadcast %514 : vector<2x1xi1> to vector<2x16xi1>
    %516 = arith.select %515, %506, %482 : vector<2x16xi1>, vector<2x16xf32>
    %cst_139 = arith.constant 0.000000e+00 : f32
    %517 = vector.shape_cast %510 : vector<2x1xi1> to vector<2x1xi1>
    %518 = vector.broadcast %517 : vector<2x1xi1> to vector<2x16xi1>
    %519 = vector.broadcast %cst_139 : f32 to vector<2x16xf32>
    %520 = arith.select %518, %508, %519 : vector<2x16xi1>, vector<2x16xf32>
    %521 = arith.addf %487, %520 : vector<2x16xf32>
    %c2_140 = arith.constant 2 : index
    %c64_141 = arith.constant 64 : index
    %522 = vector.load %arg33[%c2_140, %c64_141] : memref<16x128xf32, #tpu.memory_space<vmem>>, vector<2x64xf32>
    %cst_142 = arith.constant dense<0.000000e+00> : vector<2x64xf32>
    %523 = tpu.matmul %513, %50, %cst_142 {dimension_numbers = #tpu.dot_dimension_numbers<[1], [0], [0], [1], [0, 0, 1, 1], [], []>} : vector<2x16xf32>, vector<16x64xf32>, vector<2x64xf32> -> vector<2x64xf32>
    %524 = arith.addf %522, %523 : vector<2x64xf32>
    %525 = vector.extract_strided_slice %524 {offsets = [0, 0], sizes = [2, 48], strides = [1, 1]} : vector<2x64xf32> to vector<2x48xf32>
    %cst_143 = arith.constant 5.000000e-01 : f32
    %526 = vector.broadcast %cst_143 : f32 to vector<2x48xf32>
    %527 = arith.mulf %526, %525 : vector<2x48xf32>
    %528 = math.tanh %527 : vector<2x48xf32>
    %cst_144 = arith.constant 5.000000e-01 : f32
    %529 = vector.broadcast %cst_144 : f32 to vector<2x48xf32>
    %530 = arith.mulf %529, %528 : vector<2x48xf32>
    %cst_145 = arith.constant 5.000000e-01 : f32
    %531 = vector.broadcast %cst_145 : f32 to vector<2x48xf32>
    %532 = arith.addf %530, %531 : vector<2x48xf32>
    %533 = vector.extract_strided_slice %532 {offsets = [0, 0], sizes = [2, 16], strides = [1, 1]} : vector<2x48xf32> to vector<2x16xf32>
    %534 = vector.extract_strided_slice %532 {offsets = [0, 16], sizes = [2, 16], strides = [1, 1]} : vector<2x48xf32> to vector<2x16xf32>
    %535 = vector.extract_strided_slice %532 {offsets = [0, 32], sizes = [2, 16], strides = [1, 1]} : vector<2x48xf32> to vector<2x16xf32>
    %536 = vector.extract_strided_slice %524 {offsets = [0, 48], sizes = [2, 16], strides = [1, 1]} : vector<2x64xf32> to vector<2x16xf32>
    %537 = math.tanh %536 : vector<2x16xf32>
    %538 = arith.mulf %534, %516 : vector<2x16xf32>
    %539 = arith.mulf %533, %537 : vector<2x16xf32>
    %540 = arith.addf %538, %539 : vector<2x16xf32>
    %541 = math.tanh %540 : vector<2x16xf32>
    %542 = arith.mulf %535, %541 : vector<2x16xf32>
    %c1_i32_146 = arith.constant 1 : i32
    %543 = vector.broadcast %c1_i32_146 : i32 to vector<2x1xi32>
    %544 = arith.cmpi sgt, %45, %543 : vector<2x1xi32>
    %545 = vector.shape_cast %544 : vector<2x1xi1> to vector<2x1xi1>
    %546 = vector.broadcast %545 : vector<2x1xi1> to vector<2x16xi1>
    %547 = arith.select %546, %542, %513 : vector<2x16xi1>, vector<2x16xf32>
    %548 = vector.shape_cast %544 : vector<2x1xi1> to vector<2x1xi1>
    %549 = vector.broadcast %548 : vector<2x1xi1> to vector<2x16xi1>
    %550 = arith.select %549, %540, %516 : vector<2x16xi1>, vector<2x16xf32>
    %cst_147 = arith.constant 0.000000e+00 : f32
    %551 = vector.shape_cast %544 : vector<2x1xi1> to vector<2x1xi1>
    %552 = vector.broadcast %551 : vector<2x1xi1> to vector<2x16xi1>
    %553 = vector.broadcast %cst_147 : f32 to vector<2x16xf32>
    %554 = arith.select %552, %542, %553 : vector<2x16xi1>, vector<2x16xf32>
    %555 = arith.addf %521, %554 : vector<2x16xf32>
    %c0_148 = arith.constant 0 : index
    %c64_149 = arith.constant 64 : index
    %556 = vector.load %arg33[%c0_148, %c64_149] : memref<16x128xf32, #tpu.memory_space<vmem>>, vector<2x64xf32>
    %cst_150 = arith.constant dense<0.000000e+00> : vector<2x64xf32>
    %557 = tpu.matmul %547, %50, %cst_150 {dimension_numbers = #tpu.dot_dimension_numbers<[1], [0], [0], [1], [0, 0, 1, 1], [], []>} : vector<2x16xf32>, vector<16x64xf32>, vector<2x64xf32> -> vector<2x64xf32>
    %558 = arith.addf %556, %557 : vector<2x64xf32>
    %559 = vector.extract_strided_slice %558 {offsets = [0, 0], sizes = [2, 48], strides = [1, 1]} : vector<2x64xf32> to vector<2x48xf32>
    %cst_151 = arith.constant 5.000000e-01 : f32
    %560 = vector.broadcast %cst_151 : f32 to vector<2x48xf32>
    %561 = arith.mulf %560, %559 : vector<2x48xf32>
    %562 = math.tanh %561 : vector<2x48xf32>
    %cst_152 = arith.constant 5.000000e-01 : f32
    %563 = vector.broadcast %cst_152 : f32 to vector<2x48xf32>
    %564 = arith.mulf %563, %562 : vector<2x48xf32>
    %cst_153 = arith.constant 5.000000e-01 : f32
    %565 = vector.broadcast %cst_153 : f32 to vector<2x48xf32>
    %566 = arith.addf %564, %565 : vector<2x48xf32>
    %567 = vector.extract_strided_slice %566 {offsets = [0, 0], sizes = [2, 16], strides = [1, 1]} : vector<2x48xf32> to vector<2x16xf32>
    %568 = vector.extract_strided_slice %566 {offsets = [0, 16], sizes = [2, 16], strides = [1, 1]} : vector<2x48xf32> to vector<2x16xf32>
    %569 = vector.extract_strided_slice %566 {offsets = [0, 32], sizes = [2, 16], strides = [1, 1]} : vector<2x48xf32> to vector<2x16xf32>
    %570 = vector.extract_strided_slice %558 {offsets = [0, 48], sizes = [2, 16], strides = [1, 1]} : vector<2x64xf32> to vector<2x16xf32>
    %571 = math.tanh %570 : vector<2x16xf32>
    %572 = arith.mulf %568, %550 : vector<2x16xf32>
    %573 = arith.mulf %567, %571 : vector<2x16xf32>
    %574 = arith.addf %572, %573 : vector<2x16xf32>
    %575 = math.tanh %574 : vector<2x16xf32>
    %576 = arith.mulf %569, %575 : vector<2x16xf32>
    %c0_i32_154 = arith.constant 0 : i32
    %577 = vector.broadcast %c0_i32_154 : i32 to vector<2x1xi32>
    %578 = arith.cmpi sgt, %45, %577 : vector<2x1xi32>
    %cst_155 = arith.constant 0.000000e+00 : f32
    %579 = vector.shape_cast %578 : vector<2x1xi1> to vector<2x1xi1>
    %580 = vector.broadcast %579 : vector<2x1xi1> to vector<2x16xi1>
    %581 = vector.broadcast %cst_155 : f32 to vector<2x16xf32>
    %582 = arith.select %580, %576, %581 : vector<2x16xi1>, vector<2x16xf32>
    %583 = arith.addf %555, %582 : vector<2x16xf32>
    %584 = vector.broadcast %48 : vector<2x1xf32> to vector<2x16xf32>
    %585 = arith.mulf %317, %584 : vector<2x16xf32>
    %586 = vector.broadcast %48 : vector<2x1xf32> to vector<2x16xf32>
    %587 = arith.mulf %583, %586 : vector<2x16xf32>
    %c0_156 = arith.constant 0 : index
    %c0_157 = arith.constant 0 : index
    %588 = vector.load %arg15[%c0_156, %c0_157] : memref<16x32xf32, #tpu.memory_space<vmem>>, vector<16x32xf32>
    %cst_158 = arith.constant dense<0.000000e+00> : vector<2x32xf32>
    %589 = tpu.matmul %585, %588, %cst_158 {dimension_numbers = #tpu.dot_dimension_numbers<[1], [0], [0], [1], [0, 0, 1, 1], [], []>} : vector<2x16xf32>, vector<16x32xf32>, vector<2x32xf32> -> vector<2x32xf32>
    %c0_159 = arith.constant 0 : index
    %c0_160 = arith.constant 0 : index
    %590 = vector.load %arg16[%c0_159, %c0_160] : memref<16x32xf32, #tpu.memory_space<vmem>>, vector<16x32xf32>
    %cst_161 = arith.constant dense<0.000000e+00> : vector<2x32xf32>
    %591 = tpu.matmul %587, %590, %cst_161 {dimension_numbers = #tpu.dot_dimension_numbers<[1], [0], [0], [1], [0, 0, 1, 1], [], []>} : vector<2x16xf32>, vector<16x32xf32>, vector<2x32xf32> -> vector<2x32xf32>
    %592 = arith.addf %589, %591 : vector<2x32xf32>
    %c0_162 = arith.constant 0 : index
    %c0_163 = arith.constant 0 : index
    %593 = vector.load %arg17[%c0_162, %c0_163] : memref<1x32xf32, #tpu.memory_space<vmem>>, vector<1x32xf32>
    %594 = vector.broadcast %593 : vector<1x32xf32> to vector<2x32xf32>
    %595 = arith.addf %592, %594 : vector<2x32xf32>
    %cst_164 = arith.constant 0.000000e+00 : f32
    %596 = vector.broadcast %cst_164 : f32 to vector<2x32xf32>
    %597 = arith.maximumf %595, %596 : vector<2x32xf32>
    %c0_165 = arith.constant 0 : index
    %c0_166 = arith.constant 0 : index
    %598 = vector.load %arg18[%c0_165, %c0_166] : memref<32x16xf32, #tpu.memory_space<vmem>>, vector<32x16xf32>
    %cst_167 = arith.constant dense<0.000000e+00> : vector<2x16xf32>
    %599 = tpu.matmul %597, %598, %cst_167 {dimension_numbers = #tpu.dot_dimension_numbers<[1], [0], [0], [1], [0, 0, 1, 1], [], []>} : vector<2x32xf32>, vector<32x16xf32>, vector<2x16xf32> -> vector<2x16xf32>
    %c0_168 = arith.constant 0 : index
    %c0_169 = arith.constant 0 : index
    %600 = vector.load %arg19[%c0_168, %c0_169] : memref<1x16xf32, #tpu.memory_space<vmem>>, vector<1x16xf32>
    %601 = vector.broadcast %600 : vector<1x16xf32> to vector<2x16xf32>
    %602 = arith.addf %599, %601 : vector<2x16xf32>
    %c0_170 = arith.constant 0 : index
    %c0_171 = arith.constant 0 : index
    %603 = vector.load %arg31[%c0_170, %c0_171] : memref<2x16xf32, #tpu.memory_space<vmem>>, vector<2x16xf32>
    tpu.vector_store %arg31[%c0_170, %c0_171], %602 {strides = array<i32>} : memref<2x16xf32, #tpu.memory_space<vmem>>, vector<2x16xf32>,
    %604 = vector.extract_strided_slice %602 {offsets = [0, 0], sizes = [2, 8], strides = [1, 1]} : vector<2x16xf32> to vector<2x8xf32>
    %605 = vector.extract_strided_slice %602 {offsets = [0, 8], sizes = [2, 8], strides = [1, 1]} : vector<2x16xf32> to vector<2x8xf32>
    %c0_172 = arith.constant 0 : index
    %c0_173 = arith.constant 0 : index
    %606 = vector.load %arg3[%c0_172, %c0_173] : memref<2x8xf32, #tpu.memory_space<vmem>>, vector<2x8xf32>
    %cst_174 = arith.constant 5.000000e-01 : f32
    %607 = vector.broadcast %cst_174 : f32 to vector<2x8xf32>
    %608 = arith.mulf %607, %605 : vector<2x8xf32>
    %609 = math.exp %608 : vector<2x8xf32>
    %610 = arith.mulf %606, %609 : vector<2x8xf32>
    %611 = arith.addf %610, %604 : vector<2x8xf32>
    %c0_175 = arith.constant 0 : index
    %c0_176 = arith.constant 0 : index
    %612 = vector.load %arg32[%c0_175, %c0_176] : memref<2x8xf32, #tpu.memory_space<vmem>>, vector<2x8xf32>
    tpu.vector_store %arg32[%c0_175, %c0_176], %611 {strides = array<i32>} : memref<2x8xf32, #tpu.memory_space<vmem>>, vector<2x8xf32>,
    %c0_177 = arith.constant 0 : index
    %c0_178 = arith.constant 0 : index
    %613 = vector.load %arg20[%c0_177, %c0_178] : memref<8x12xf32, #tpu.memory_space<vmem>>, vector<8x12xf32>
    %cst_179 = arith.constant dense<0.000000e+00> : vector<2x12xf32>
    %614 = tpu.matmul %611, %613, %cst_179 {dimension_numbers = #tpu.dot_dimension_numbers<[1], [0], [0], [1], [0, 0, 1, 1], [], []>} : vector<2x8xf32>, vector<8x12xf32>, vector<2x12xf32> -> vector<2x12xf32>
    %c0_180 = arith.constant 0 : index
    %c0_181 = arith.constant 0 : index
    %615 = vector.load %arg21[%c0_180, %c0_181] : memref<4x12xf32, #tpu.memory_space<vmem>>, vector<4x12xf32>
    %cst_182 = arith.constant dense<0.000000e+00> : vector<2x12xf32>
    %616 = tpu.matmul %1, %615, %cst_182 {dimension_numbers = #tpu.dot_dimension_numbers<[1], [0], [0], [1], [0, 0, 1, 1], [], []>} : vector<2x4xf32>, vector<4x12xf32>, vector<2x12xf32> -> vector<2x12xf32>
    %617 = arith.addf %614, %616 : vector<2x12xf32>
    %c0_183 = arith.constant 0 : index
    %c0_184 = arith.constant 0 : index
    %618 = vector.load %arg22[%c0_183, %c0_184] : memref<1x12xf32, #tpu.memory_space<vmem>>, vector<1x12xf32>
    %619 = vector.broadcast %618 : vector<1x12xf32> to vector<2x12xf32>
    %620 = arith.addf %617, %619 : vector<2x12xf32>
    %cst_185 = arith.constant 0.000000e+00 : f32
    %621 = vector.broadcast %cst_185 : f32 to vector<2x12xf32>
    %622 = arith.maximumf %620, %621 : vector<2x12xf32>
    %c0_186 = arith.constant 0 : index
    %c0_187 = arith.constant 0 : index
    %623 = vector.load %arg23[%c0_186, %c0_187] : memref<12x64xf32, #tpu.memory_space<vmem>>, vector<12x64xf32>
    %cst_188 = arith.constant dense<0.000000e+00> : vector<2x64xf32>
    %624 = tpu.matmul %622, %623, %cst_188 {dimension_numbers = #tpu.dot_dimension_numbers<[1], [0], [0], [1], [0, 0, 1, 1], [], []>} : vector<2x12xf32>, vector<12x64xf32>, vector<2x64xf32> -> vector<2x64xf32>
    %c0_189 = arith.constant 0 : index
    %c0_190 = arith.constant 0 : index
    %625 = vector.load %arg25[%c0_189, %c0_190] : memref<1x64xf32, #tpu.memory_space<vmem>>, vector<1x64xf32>
    %626 = vector.broadcast %625 : vector<1x64xf32> to vector<2x64xf32>
    %627 = arith.addf %624, %626 : vector<2x64xf32>
    %c0_191 = arith.constant 0 : index
    %c0_192 = arith.constant 0 : index
    %628 = vector.load %arg24[%c0_191, %c0_192] : memref<16x64xf32, #tpu.memory_space<vmem>>, vector<16x64xf32>
    %cst_193 = arith.constant dense<0.000000e+00> : vector<2x64xf32>
    %629 = tpu.matmul %51, %628, %cst_193 {dimension_numbers = #tpu.dot_dimension_numbers<[1], [0], [0], [1], [0, 0, 1, 1], [], []>} : vector<2x16xf32>, vector<16x64xf32>, vector<2x64xf32> -> vector<2x64xf32>
    %630 = arith.addf %627, %629 : vector<2x64xf32>
    %631 = vector.extract_strided_slice %630 {offsets = [0, 0], sizes = [2, 48], strides = [1, 1]} : vector<2x64xf32> to vector<2x48xf32>
    %cst_194 = arith.constant 5.000000e-01 : f32
    %632 = vector.broadcast %cst_194 : f32 to vector<2x48xf32>
    %633 = arith.mulf %632, %631 : vector<2x48xf32>
    %634 = math.tanh %633 : vector<2x48xf32>
    %cst_195 = arith.constant 5.000000e-01 : f32
    %635 = vector.broadcast %cst_195 : f32 to vector<2x48xf32>
    %636 = arith.mulf %635, %634 : vector<2x48xf32>
    %cst_196 = arith.constant 5.000000e-01 : f32
    %637 = vector.broadcast %cst_196 : f32 to vector<2x48xf32>
    %638 = arith.addf %636, %637 : vector<2x48xf32>
    %639 = vector.extract_strided_slice %638 {offsets = [0, 0], sizes = [2, 16], strides = [1, 1]} : vector<2x48xf32> to vector<2x16xf32>
    %640 = vector.extract_strided_slice %638 {offsets = [0, 16], sizes = [2, 16], strides = [1, 1]} : vector<2x48xf32> to vector<2x16xf32>
    %641 = vector.extract_strided_slice %638 {offsets = [0, 32], sizes = [2, 16], strides = [1, 1]} : vector<2x48xf32> to vector<2x16xf32>
    %642 = vector.extract_strided_slice %630 {offsets = [0, 48], sizes = [2, 16], strides = [1, 1]} : vector<2x64xf32> to vector<2x16xf32>
    %643 = math.tanh %642 : vector<2x16xf32>
    %644 = arith.mulf %640, %51 : vector<2x16xf32>
    %645 = arith.mulf %639, %643 : vector<2x16xf32>
    %646 = arith.addf %644, %645 : vector<2x16xf32>
    %647 = math.tanh %646 : vector<2x16xf32>
    %648 = arith.mulf %641, %647 : vector<2x16xf32>
    %c0_197 = arith.constant 0 : index
    %c0_198 = arith.constant 0 : index
    %649 = vector.load %arg34[%c0_197, %c0_198] : memref<16x16xf32, #tpu.memory_space<vmem>>, vector<2x16xf32>
    tpu.vector_store %arg34[%c0_197, %c0_198], %648 {strides = array<i32>} : memref<16x16xf32, #tpu.memory_space<vmem>>, vector<2x16xf32>,
    %cst_199 = arith.constant dense<0.000000e+00> : vector<2x64xf32>
    %650 = tpu.matmul %648, %628, %cst_199 {dimension_numbers = #tpu.dot_dimension_numbers<[1], [0], [0], [1], [0, 0, 1, 1], [], []>} : vector<2x16xf32>, vector<16x64xf32>, vector<2x64xf32> -> vector<2x64xf32>
    %651 = arith.addf %627, %650 : vector<2x64xf32>
    %652 = vector.extract_strided_slice %651 {offsets = [0, 0], sizes = [2, 48], strides = [1, 1]} : vector<2x64xf32> to vector<2x48xf32>
    %cst_200 = arith.constant 5.000000e-01 : f32
    %653 = vector.broadcast %cst_200 : f32 to vector<2x48xf32>
    %654 = arith.mulf %653, %652 : vector<2x48xf32>
    %655 = math.tanh %654 : vector<2x48xf32>
    %cst_201 = arith.constant 5.000000e-01 : f32
    %656 = vector.broadcast %cst_201 : f32 to vector<2x48xf32>
    %657 = arith.mulf %656, %655 : vector<2x48xf32>
    %cst_202 = arith.constant 5.000000e-01 : f32
    %658 = vector.broadcast %cst_202 : f32 to vector<2x48xf32>
    %659 = arith.addf %657, %658 : vector<2x48xf32>
    %660 = vector.extract_strided_slice %659 {offsets = [0, 0], sizes = [2, 16], strides = [1, 1]} : vector<2x48xf32> to vector<2x16xf32>
    %661 = vector.extract_strided_slice %659 {offsets = [0, 16], sizes = [2, 16], strides = [1, 1]} : vector<2x48xf32> to vector<2x16xf32>
    %662 = vector.extract_strided_slice %659 {offsets = [0, 32], sizes = [2, 16], strides = [1, 1]} : vector<2x48xf32> to vector<2x16xf32>
    %663 = vector.extract_strided_slice %651 {offsets = [0, 48], sizes = [2, 16], strides = [1, 1]} : vector<2x64xf32> to vector<2x16xf32>
    %664 = math.tanh %663 : vector<2x16xf32>
    %665 = arith.mulf %661, %646 : vector<2x16xf32>
    %666 = arith.mulf %660, %664 : vector<2x16xf32>
    %667 = arith.addf %665, %666 : vector<2x16xf32>
    %668 = math.tanh %667 : vector<2x16xf32>
    %669 = arith.mulf %662, %668 : vector<2x16xf32>
    %c2_203 = arith.constant 2 : index
    %c0_204 = arith.constant 0 : index
    %670 = vector.load %arg34[%c2_203, %c0_204] : memref<16x16xf32, #tpu.memory_space<vmem>>, vector<2x16xf32>
    tpu.vector_store %arg34[%c2_203, %c0_204], %669 {strides = array<i32>} : memref<16x16xf32, #tpu.memory_space<vmem>>, vector<2x16xf32>,
    %cst_205 = arith.constant dense<0.000000e+00> : vector<2x64xf32>
    %671 = tpu.matmul %669, %628, %cst_205 {dimension_numbers = #tpu.dot_dimension_numbers<[1], [0], [0], [1], [0, 0, 1, 1], [], []>} : vector<2x16xf32>, vector<16x64xf32>, vector<2x64xf32> -> vector<2x64xf32>
    %672 = arith.addf %627, %671 : vector<2x64xf32>
    %673 = vector.extract_strided_slice %672 {offsets = [0, 0], sizes = [2, 48], strides = [1, 1]} : vector<2x64xf32> to vector<2x48xf32>
    %cst_206 = arith.constant 5.000000e-01 : f32
    %674 = vector.broadcast %cst_206 : f32 to vector<2x48xf32>
    %675 = arith.mulf %674, %673 : vector<2x48xf32>
    %676 = math.tanh %675 : vector<2x48xf32>
    %cst_207 = arith.constant 5.000000e-01 : f32
    %677 = vector.broadcast %cst_207 : f32 to vector<2x48xf32>
    %678 = arith.mulf %677, %676 : vector<2x48xf32>
    %cst_208 = arith.constant 5.000000e-01 : f32
    %679 = vector.broadcast %cst_208 : f32 to vector<2x48xf32>
    %680 = arith.addf %678, %679 : vector<2x48xf32>
    %681 = vector.extract_strided_slice %680 {offsets = [0, 0], sizes = [2, 16], strides = [1, 1]} : vector<2x48xf32> to vector<2x16xf32>
    %682 = vector.extract_strided_slice %680 {offsets = [0, 16], sizes = [2, 16], strides = [1, 1]} : vector<2x48xf32> to vector<2x16xf32>
    %683 = vector.extract_strided_slice %680 {offsets = [0, 32], sizes = [2, 16], strides = [1, 1]} : vector<2x48xf32> to vector<2x16xf32>
    %684 = vector.extract_strided_slice %672 {offsets = [0, 48], sizes = [2, 16], strides = [1, 1]} : vector<2x64xf32> to vector<2x16xf32>
    %685 = math.tanh %684 : vector<2x16xf32>
    %686 = arith.mulf %682, %667 : vector<2x16xf32>
    %687 = arith.mulf %681, %685 : vector<2x16xf32>
    %688 = arith.addf %686, %687 : vector<2x16xf32>
    %689 = math.tanh %688 : vector<2x16xf32>
    %690 = arith.mulf %683, %689 : vector<2x16xf32>
    %c4_209 = arith.constant 4 : index
    %c0_210 = arith.constant 0 : index
    %691 = vector.load %arg34[%c4_209, %c0_210] : memref<16x16xf32, #tpu.memory_space<vmem>>, vector<2x16xf32>
    tpu.vector_store %arg34[%c4_209, %c0_210], %690 {strides = array<i32>} : memref<16x16xf32, #tpu.memory_space<vmem>>, vector<2x16xf32>,
    %cst_211 = arith.constant dense<0.000000e+00> : vector<2x64xf32>
    %692 = tpu.matmul %690, %628, %cst_211 {dimension_numbers = #tpu.dot_dimension_numbers<[1], [0], [0], [1], [0, 0, 1, 1], [], []>} : vector<2x16xf32>, vector<16x64xf32>, vector<2x64xf32> -> vector<2x64xf32>
    %693 = arith.addf %627, %692 : vector<2x64xf32>
    %694 = vector.extract_strided_slice %693 {offsets = [0, 0], sizes = [2, 48], strides = [1, 1]} : vector<2x64xf32> to vector<2x48xf32>
    %cst_212 = arith.constant 5.000000e-01 : f32
    %695 = vector.broadcast %cst_212 : f32 to vector<2x48xf32>
    %696 = arith.mulf %695, %694 : vector<2x48xf32>
    %697 = math.tanh %696 : vector<2x48xf32>
    %cst_213 = arith.constant 5.000000e-01 : f32
    %698 = vector.broadcast %cst_213 : f32 to vector<2x48xf32>
    %699 = arith.mulf %698, %697 : vector<2x48xf32>
    %cst_214 = arith.constant 5.000000e-01 : f32
    %700 = vector.broadcast %cst_214 : f32 to vector<2x48xf32>
    %701 = arith.addf %699, %700 : vector<2x48xf32>
    %702 = vector.extract_strided_slice %701 {offsets = [0, 0], sizes = [2, 16], strides = [1, 1]} : vector<2x48xf32> to vector<2x16xf32>
    %703 = vector.extract_strided_slice %701 {offsets = [0, 16], sizes = [2, 16], strides = [1, 1]} : vector<2x48xf32> to vector<2x16xf32>
    %704 = vector.extract_strided_slice %701 {offsets = [0, 32], sizes = [2, 16], strides = [1, 1]} : vector<2x48xf32> to vector<2x16xf32>
    %705 = vector.extract_strided_slice %693 {offsets = [0, 48], sizes = [2, 16], strides = [1, 1]} : vector<2x64xf32> to vector<2x16xf32>
    %706 = math.tanh %705 : vector<2x16xf32>
    %707 = arith.mulf %703, %688 : vector<2x16xf32>
    %708 = arith.mulf %702, %706 : vector<2x16xf32>
    %709 = arith.addf %707, %708 : vector<2x16xf32>
    %710 = math.tanh %709 : vector<2x16xf32>
    %711 = arith.mulf %704, %710 : vector<2x16xf32>
    %c6_215 = arith.constant 6 : index
    %c0_216 = arith.constant 0 : index
    %712 = vector.load %arg34[%c6_215, %c0_216] : memref<16x16xf32, #tpu.memory_space<vmem>>, vector<2x16xf32>
    tpu.vector_store %arg34[%c6_215, %c0_216], %711 {strides = array<i32>} : memref<16x16xf32, #tpu.memory_space<vmem>>, vector<2x16xf32>,
    %cst_217 = arith.constant dense<0.000000e+00> : vector<2x64xf32>
    %713 = tpu.matmul %711, %628, %cst_217 {dimension_numbers = #tpu.dot_dimension_numbers<[1], [0], [0], [1], [0, 0, 1, 1], [], []>} : vector<2x16xf32>, vector<16x64xf32>, vector<2x64xf32> -> vector<2x64xf32>
    %714 = arith.addf %627, %713 : vector<2x64xf32>
    %715 = vector.extract_strided_slice %714 {offsets = [0, 0], sizes = [2, 48], strides = [1, 1]} : vector<2x64xf32> to vector<2x48xf32>
    %cst_218 = arith.constant 5.000000e-01 : f32
    %716 = vector.broadcast %cst_218 : f32 to vector<2x48xf32>
    %717 = arith.mulf %716, %715 : vector<2x48xf32>
    %718 = math.tanh %717 : vector<2x48xf32>
    %cst_219 = arith.constant 5.000000e-01 : f32
    %719 = vector.broadcast %cst_219 : f32 to vector<2x48xf32>
    %720 = arith.mulf %719, %718 : vector<2x48xf32>
    %cst_220 = arith.constant 5.000000e-01 : f32
    %721 = vector.broadcast %cst_220 : f32 to vector<2x48xf32>
    %722 = arith.addf %720, %721 : vector<2x48xf32>
    %723 = vector.extract_strided_slice %722 {offsets = [0, 0], sizes = [2, 16], strides = [1, 1]} : vector<2x48xf32> to vector<2x16xf32>
    %724 = vector.extract_strided_slice %722 {offsets = [0, 16], sizes = [2, 16], strides = [1, 1]} : vector<2x48xf32> to vector<2x16xf32>
    %725 = vector.extract_strided_slice %722 {offsets = [0, 32], sizes = [2, 16], strides = [1, 1]} : vector<2x48xf32> to vector<2x16xf32>
    %726 = vector.extract_strided_slice %714 {offsets = [0, 48], sizes = [2, 16], strides = [1, 1]} : vector<2x64xf32> to vector<2x16xf32>
    %727 = math.tanh %726 : vector<2x16xf32>
    %728 = arith.mulf %724, %709 : vector<2x16xf32>
    %729 = arith.mulf %723, %727 : vector<2x16xf32>
    %730 = arith.addf %728, %729 : vector<2x16xf32>
    %731 = math.tanh %730 : vector<2x16xf32>
    %732 = arith.mulf %725, %731 : vector<2x16xf32>
    %c8_221 = arith.constant 8 : index
    %c0_222 = arith.constant 0 : index
    %733 = vector.load %arg34[%c8_221, %c0_222] : memref<16x16xf32, #tpu.memory_space<vmem>>, vector<2x16xf32>
    tpu.vector_store %arg34[%c8_221, %c0_222], %732 {strides = array<i32>} : memref<16x16xf32, #tpu.memory_space<vmem>>, vector<2x16xf32>,
    %cst_223 = arith.constant dense<0.000000e+00> : vector<2x64xf32>
    %734 = tpu.matmul %732, %628, %cst_223 {dimension_numbers = #tpu.dot_dimension_numbers<[1], [0], [0], [1], [0, 0, 1, 1], [], []>} : vector<2x16xf32>, vector<16x64xf32>, vector<2x64xf32> -> vector<2x64xf32>
    %735 = arith.addf %627, %734 : vector<2x64xf32>
    %736 = vector.extract_strided_slice %735 {offsets = [0, 0], sizes = [2, 48], strides = [1, 1]} : vector<2x64xf32> to vector<2x48xf32>
    %cst_224 = arith.constant 5.000000e-01 : f32
    %737 = vector.broadcast %cst_224 : f32 to vector<2x48xf32>
    %738 = arith.mulf %737, %736 : vector<2x48xf32>
    %739 = math.tanh %738 : vector<2x48xf32>
    %cst_225 = arith.constant 5.000000e-01 : f32
    %740 = vector.broadcast %cst_225 : f32 to vector<2x48xf32>
    %741 = arith.mulf %740, %739 : vector<2x48xf32>
    %cst_226 = arith.constant 5.000000e-01 : f32
    %742 = vector.broadcast %cst_226 : f32 to vector<2x48xf32>
    %743 = arith.addf %741, %742 : vector<2x48xf32>
    %744 = vector.extract_strided_slice %743 {offsets = [0, 0], sizes = [2, 16], strides = [1, 1]} : vector<2x48xf32> to vector<2x16xf32>
    %745 = vector.extract_strided_slice %743 {offsets = [0, 16], sizes = [2, 16], strides = [1, 1]} : vector<2x48xf32> to vector<2x16xf32>
    %746 = vector.extract_strided_slice %743 {offsets = [0, 32], sizes = [2, 16], strides = [1, 1]} : vector<2x48xf32> to vector<2x16xf32>
    %747 = vector.extract_strided_slice %735 {offsets = [0, 48], sizes = [2, 16], strides = [1, 1]} : vector<2x64xf32> to vector<2x16xf32>
    %748 = math.tanh %747 : vector<2x16xf32>
    %749 = arith.mulf %745, %730 : vector<2x16xf32>
    %750 = arith.mulf %744, %748 : vector<2x16xf32>
    %751 = arith.addf %749, %750 : vector<2x16xf32>
    %752 = math.tanh %751 : vector<2x16xf32>
    %753 = arith.mulf %746, %752 : vector<2x16xf32>
    %c10_227 = arith.constant 10 : index
    %c0_228 = arith.constant 0 : index
    %754 = vector.load %arg34[%c10_227, %c0_228] : memref<16x16xf32, #tpu.memory_space<vmem>>, vector<2x16xf32>
    tpu.vector_store %arg34[%c10_227, %c0_228], %753 {strides = array<i32>} : memref<16x16xf32, #tpu.memory_space<vmem>>, vector<2x16xf32>,
    %cst_229 = arith.constant dense<0.000000e+00> : vector<2x64xf32>
    %755 = tpu.matmul %753, %628, %cst_229 {dimension_numbers = #tpu.dot_dimension_numbers<[1], [0], [0], [1], [0, 0, 1, 1], [], []>} : vector<2x16xf32>, vector<16x64xf32>, vector<2x64xf32> -> vector<2x64xf32>
    %756 = arith.addf %627, %755 : vector<2x64xf32>
    %757 = vector.extract_strided_slice %756 {offsets = [0, 0], sizes = [2, 48], strides = [1, 1]} : vector<2x64xf32> to vector<2x48xf32>
    %cst_230 = arith.constant 5.000000e-01 : f32
    %758 = vector.broadcast %cst_230 : f32 to vector<2x48xf32>
    %759 = arith.mulf %758, %757 : vector<2x48xf32>
    %760 = math.tanh %759 : vector<2x48xf32>
    %cst_231 = arith.constant 5.000000e-01 : f32
    %761 = vector.broadcast %cst_231 : f32 to vector<2x48xf32>
    %762 = arith.mulf %761, %760 : vector<2x48xf32>
    %cst_232 = arith.constant 5.000000e-01 : f32
    %763 = vector.broadcast %cst_232 : f32 to vector<2x48xf32>
    %764 = arith.addf %762, %763 : vector<2x48xf32>
    %765 = vector.extract_strided_slice %764 {offsets = [0, 0], sizes = [2, 16], strides = [1, 1]} : vector<2x48xf32> to vector<2x16xf32>
    %766 = vector.extract_strided_slice %764 {offsets = [0, 16], sizes = [2, 16], strides = [1, 1]} : vector<2x48xf32> to vector<2x16xf32>
    %767 = vector.extract_strided_slice %764 {offsets = [0, 32], sizes = [2, 16], strides = [1, 1]} : vector<2x48xf32> to vector<2x16xf32>
    %768 = vector.extract_strided_slice %756 {offsets = [0, 48], sizes = [2, 16], strides = [1, 1]} : vector<2x64xf32> to vector<2x16xf32>
    %769 = math.tanh %768 : vector<2x16xf32>
    %770 = arith.mulf %766, %751 : vector<2x16xf32>
    %771 = arith.mulf %765, %769 : vector<2x16xf32>
    %772 = arith.addf %770, %771 : vector<2x16xf32>
    %773 = math.tanh %772 : vector<2x16xf32>
    %774 = arith.mulf %767, %773 : vector<2x16xf32>
    %c12_233 = arith.constant 12 : index
    %c0_234 = arith.constant 0 : index
    %775 = vector.load %arg34[%c12_233, %c0_234] : memref<16x16xf32, #tpu.memory_space<vmem>>, vector<2x16xf32>
    tpu.vector_store %arg34[%c12_233, %c0_234], %774 {strides = array<i32>} : memref<16x16xf32, #tpu.memory_space<vmem>>, vector<2x16xf32>,
    %cst_235 = arith.constant dense<0.000000e+00> : vector<2x64xf32>
    %776 = tpu.matmul %774, %628, %cst_235 {dimension_numbers = #tpu.dot_dimension_numbers<[1], [0], [0], [1], [0, 0, 1, 1], [], []>} : vector<2x16xf32>, vector<16x64xf32>, vector<2x64xf32> -> vector<2x64xf32>
    %777 = arith.addf %627, %776 : vector<2x64xf32>
    %778 = vector.extract_strided_slice %777 {offsets = [0, 0], sizes = [2, 48], strides = [1, 1]} : vector<2x64xf32> to vector<2x48xf32>
    %cst_236 = arith.constant 5.000000e-01 : f32
    %779 = vector.broadcast %cst_236 : f32 to vector<2x48xf32>
    %780 = arith.mulf %779, %778 : vector<2x48xf32>
    %781 = math.tanh %780 : vector<2x48xf32>
    %cst_237 = arith.constant 5.000000e-01 : f32
    %782 = vector.broadcast %cst_237 : f32 to vector<2x48xf32>
    %783 = arith.mulf %782, %781 : vector<2x48xf32>
    %cst_238 = arith.constant 5.000000e-01 : f32
    %784 = vector.broadcast %cst_238 : f32 to vector<2x48xf32>
    %785 = arith.addf %783, %784 : vector<2x48xf32>
    %786 = vector.extract_strided_slice %785 {offsets = [0, 0], sizes = [2, 16], strides = [1, 1]} : vector<2x48xf32> to vector<2x16xf32>
    %787 = vector.extract_strided_slice %785 {offsets = [0, 16], sizes = [2, 16], strides = [1, 1]} : vector<2x48xf32> to vector<2x16xf32>
    %788 = vector.extract_strided_slice %785 {offsets = [0, 32], sizes = [2, 16], strides = [1, 1]} : vector<2x48xf32> to vector<2x16xf32>
    %789 = vector.extract_strided_slice %777 {offsets = [0, 48], sizes = [2, 16], strides = [1, 1]} : vector<2x64xf32> to vector<2x16xf32>
    %790 = math.tanh %789 : vector<2x16xf32>
    %791 = arith.mulf %787, %772 : vector<2x16xf32>
    %792 = arith.mulf %786, %790 : vector<2x16xf32>
    %793 = arith.addf %791, %792 : vector<2x16xf32>
    %794 = math.tanh %793 : vector<2x16xf32>
    %795 = arith.mulf %788, %794 : vector<2x16xf32>
    %c14_239 = arith.constant 14 : index
    %c0_240 = arith.constant 0 : index
    %796 = vector.load %arg34[%c14_239, %c0_240] : memref<16x16xf32, #tpu.memory_space<vmem>>, vector<2x16xf32>
    tpu.vector_store %arg34[%c14_239, %c0_240], %795 {strides = array<i32>} : memref<16x16xf32, #tpu.memory_space<vmem>>, vector<2x16xf32>,
    %c0_241 = arith.constant 0 : index
    %c0_242 = arith.constant 0 : index
    %797 = vector.load %arg34[%c0_241, %c0_242] : memref<16x16xf32, #tpu.memory_space<vmem>>, vector<16x16xf32>
    %c0_243 = arith.constant 0 : index
    %c0_244 = arith.constant 0 : index
    %798 = vector.load %arg26[%c0_243, %c0_244] : memref<16x8xf32, #tpu.memory_space<vmem>>, vector<16x8xf32>
    %cst_245 = arith.constant dense<0.000000e+00> : vector<16x8xf32>
    %799 = tpu.matmul %797, %798, %cst_245 {dimension_numbers = #tpu.dot_dimension_numbers<[1], [0], [0], [1], [0, 0, 1, 1], [], []>} : vector<16x16xf32>, vector<16x8xf32>, vector<16x8xf32> -> vector<16x8xf32>
    %c0_246 = arith.constant 0 : index
    %c0_247 = arith.constant 0 : index
    %800 = vector.load %arg27[%c0_246, %c0_247] : memref<1x8xf32, #tpu.memory_space<vmem>>, vector<1x8xf32>
    %801 = vector.broadcast %800 : vector<1x8xf32> to vector<16x8xf32>
    %802 = arith.addf %799, %801 : vector<16x8xf32>
    %cst_248 = arith.constant 0.000000e+00 : f32
    %803 = vector.broadcast %cst_248 : f32 to vector<16x8xf32>
    %804 = arith.maximumf %802, %803 : vector<16x8xf32>
    %c0_249 = arith.constant 0 : index
    %c0_250 = arith.constant 0 : index
    %805 = vector.load %arg28[%c0_249, %c0_250] : memref<8x12xf32, #tpu.memory_space<vmem>>, vector<8x12xf32>
    %cst_251 = arith.constant dense<0.000000e+00> : vector<16x12xf32>
    %806 = tpu.matmul %804, %805, %cst_251 {dimension_numbers = #tpu.dot_dimension_numbers<[1], [0], [0], [1], [0, 0, 1, 1], [], []>} : vector<16x8xf32>, vector<8x12xf32>, vector<16x12xf32> -> vector<16x12xf32>
    %c0_252 = arith.constant 0 : index
    %c0_253 = arith.constant 0 : index
    %807 = vector.load %arg29[%c0_252, %c0_253] : memref<1x12xf32, #tpu.memory_space<vmem>>, vector<1x12xf32>
    %808 = vector.broadcast %807 : vector<1x12xf32> to vector<16x12xf32>
    %809 = arith.addf %806, %808 : vector<16x12xf32>
    %c0_254 = arith.constant 0 : index
    %c0_255 = arith.constant 0 : index
    %810 = vector.load %arg30[%c0_254, %c0_255] : memref<16x12xf32, #tpu.memory_space<vmem>>, vector<16x12xf32>
    tpu.vector_store %arg30[%c0_254, %c0_255], %809 {strides = array<i32>} : memref<16x12xf32, #tpu.memory_space<vmem>>, vector<16x12xf32>,
    return
  }
}

</mosaic_0001>

<llo_original>
// kernel: lstm_cvae_forward.1
$region0: #{lstm_cvae_forward.1}
  #allocation0 [shape = 'u32[]', space=smem, size = 0x4, offset = 0x4, fixed_abs, tag = 'smem constant byte address 0x4 - core index']
  #allocation1 [shape = 'u32[144,128]{1,0:T(1,128)}', space=vmem, size = 0x12000, scoped, tag = 'internal scratch']
  #allocation2 [shape = 'f32[16,128]{1,0:T(8,128)}', space=vmem, size = 0x2000, scoped, tag = 'scratch operand']
  #allocation3 [shape = 'f32[16,16]{1,0:T(8,128)}', space=vmem, size = 0x2000, scoped, tag = 'scratch operand']
  %s0 = inlined_call_operand.smem [shape: u32[33], index: -1, kind: input, shape index: {}]
  %s1 = sld [smem:[%s0]]
  %s2 = scalar_lea.smem %s0, 1
  %s3 = sld [smem:[%s2]]
  %s4 = scalar_lea.smem %s0, 2
  %s5 = sld [smem:[%s4]]
  %s6 = scalar_lea.smem %s0, 3
  %s7 = sld [smem:[%s6]]
  %s8 = scalar_lea.smem %s0, 4
  %s9 = sld [smem:[%s8]]
  %s10 = scalar_lea.smem %s0, 5
  %s11 = sld [smem:[%s10]]
  %s12 = scalar_lea.smem %s0, 6
  %s13 = sld [smem:[%s12]]
  %s14 = scalar_lea.smem %s0, 7
  %s15 = sld [smem:[%s14]]
  %s16 = scalar_lea.smem %s0, 8
  %s17 = sld [smem:[%s16]]
  %s18 = scalar_lea.smem %s0, 9
  %s19 = sld [smem:[%s18]]
  %s20 = scalar_lea.smem %s0, 10
  %s21 = sld [smem:[%s20]]
  %s22 = scalar_lea.smem %s0, 11
  %s23 = sld [smem:[%s22]]
  %s24 = scalar_lea.smem %s0, 12
  %s25 = sld [smem:[%s24]]
  %s26 = scalar_lea.smem %s0, 13
  %s27 = sld [smem:[%s26]]
  %s28 = scalar_lea.smem %s0, 14
  %s29 = sld [smem:[%s28]]
  %s30 = scalar_lea.smem %s0, 15
  %s31 = sld [smem:[%s30]]
  %s32 = scalar_lea.smem %s0, 16
  %s33 = sld [smem:[%s32]]
  %s34 = scalar_lea.smem %s0, 17
  %s35 = sld [smem:[%s34]]
  %s36 = scalar_lea.smem %s0, 18
  %s37 = sld [smem:[%s36]]
  %s38 = scalar_lea.smem %s0, 19
  %s39 = sld [smem:[%s38]]
  %s40 = scalar_lea.smem %s0, 20
  %s41 = sld [smem:[%s40]]
  %s42 = scalar_lea.smem %s0, 21
  %s43 = sld [smem:[%s42]]
  %s44 = scalar_lea.smem %s0, 22
  %s45 = sld [smem:[%s44]]
  %s46 = scalar_lea.smem %s0, 23
  %s47 = sld [smem:[%s46]]
  %s48 = scalar_lea.smem %s0, 24
  %s49 = sld [smem:[%s48]]
  %s50 = scalar_lea.smem %s0, 25
  %s51 = sld [smem:[%s50]]
  %s52 = scalar_lea.smem %s0, 26
  %s53 = sld [smem:[%s52]]
  %s54 = scalar_lea.smem %s0, 27
  %s55 = sld [smem:[%s54]]
  %s56 = scalar_lea.smem %s0, 28
  %s57 = sld [smem:[%s56]]
  %s58 = scalar_lea.smem %s0, 29
  %s59 = sld [smem:[%s58]]
  %s60 = scalar_lea.smem %s0, 30
  %s61 = sld [smem:[%s60]]
  %s62 = scalar_lea.smem %s0, 31
  %s63 = sld [smem:[%s62]]
  %s64 = scalar_lea.smem %s0, 32
  %s65 = sld [smem:[%s64]]
  %66 = xla_tuple %s61, %s63, %s65
  %s67 = sld [smem:[#allocation0]]
  $region146: #{lstm_cvae_forward.1} parent=0
    _
  %s69 = ssub.s32 1, %s67
  %s70 = scalar_select 0, %s69, %s67
  $region1: #{lstm_cvae_forward.1} parent=0
    #allocation4 [shape = 'u8[1024]{0}', space=vmem, size = 0x400, scoped, tag = 'output window, operand 2, single buffered']
    #allocation5 [shape = 's32[1]{0}', space=sflag, size = 0x4, scoped, tag = 'scoped memory for lstm_cvae_forward.1']
    %71 = vsyncpa [#allocation5], 0
    // Predicated region
    $region2: #{lstm_cvae_forward.1} parent=1 // pred_check
      _
    $region3: #{lstm_cvae_forward.1} parent=1 // pred_check_branch
      %73 = sbr.rel (0) target = $region5
    $region4: #{lstm_cvae_forward.1} parent=1 // pred_region
      _
    $region5: #{lstm_cvae_forward.1} parent=1 // pred_fallthru
      _
    // Predicated region
    $region6: #{lstm_cvae_forward.1} parent=1 // pred_check
      _
    $region7: #{lstm_cvae_forward.1} parent=1 // pred_check_branch
      %75 = sbr.rel (0) target = $region9
    $region8: #{lstm_cvae_forward.1} parent=1 // pred_region
      _
    $region9: #{lstm_cvae_forward.1} parent=1 // pred_fallthru
      _
    // Predicated region
    $region10: #{lstm_cvae_forward.1} parent=1 // pred_check
      _
    $region11: #{lstm_cvae_forward.1} parent=1 // pred_check_branch
      %77 = sbr.rel (0) target = $region13
    $region12: #{lstm_cvae_forward.1} parent=1 // pred_region
      _
    $region13: #{lstm_cvae_forward.1} parent=1 // pred_fallthru
      _
    // Predicated region
    $region14: #{lstm_cvae_forward.1} parent=1 // pred_check
      _
    $region15: #{lstm_cvae_forward.1} parent=1 // pred_check_branch
      %79 = sbr.rel (0) target = $region17
    $region16: #{lstm_cvae_forward.1} parent=1 // pred_region
      _
    $region17: #{lstm_cvae_forward.1} parent=1 // pred_fallthru
      _
    // Predicated region
    $region18: #{lstm_cvae_forward.1} parent=1 // pred_check
      _
    $region19: #{lstm_cvae_forward.1} parent=1 // pred_check_branch
      %81 = sbr.rel (0) target = $region21
    $region20: #{lstm_cvae_forward.1} parent=1 // pred_region
      _
    $region21: #{lstm_cvae_forward.1} parent=1 // pred_fallthru
      _
    // Predicated region
    $region22: #{lstm_cvae_forward.1} parent=1 // pred_check
      _
    $region23: #{lstm_cvae_forward.1} parent=1 // pred_check_branch
      %83 = sbr.rel (0) target = $region25
    $region24: #{lstm_cvae_forward.1} parent=1 // pred_region
      _
    $region25: #{lstm_cvae_forward.1} parent=1 // pred_fallthru
      _
    // Predicated region
    $region26: #{lstm_cvae_forward.1} parent=1 // pred_check
      _
    $region27: #{lstm_cvae_forward.1} parent=1 // pred_check_branch
      %85 = sbr.rel (0) target = $region29
    $region28: #{lstm_cvae_forward.1} parent=1 // pred_region
      _
    $region29: #{lstm_cvae_forward.1} parent=1 // pred_fallthru
      _
    // Predicated region
    $region30: #{lstm_cvae_forward.1} parent=1 // pred_check
      _
    $region31: #{lstm_cvae_forward.1} parent=1 // pred_check_branch
      %87 = sbr.rel (0) target = $region33
    $region32: #{lstm_cvae_forward.1} parent=1 // pred_region
      _
    $region33: #{lstm_cvae_forward.1} parent=1 // pred_fallthru
      _
    // Predicated region
    $region34: #{lstm_cvae_forward.1} parent=1 // pred_check
      _
    $region35: #{lstm_cvae_forward.1} parent=1 // pred_check_branch
      %89 = sbr.rel (0) target = $region37
    $region36: #{lstm_cvae_forward.1} parent=1 // pred_region
      _
    $region37: #{lstm_cvae_forward.1} parent=1 // pred_fallthru
      _
    // Predicated region
    $region38: #{lstm_cvae_forward.1} parent=1 // pred_check
      _
    $region39: #{lstm_cvae_forward.1} parent=1 // pred_check_branch
      %91 = sbr.rel (0) target = $region41
    $region40: #{lstm_cvae_forward.1} parent=1 // pred_region
      _
    $region41: #{lstm_cvae_forward.1} parent=1 // pred_fallthru
      _
    // Predicated region
    $region42: #{lstm_cvae_forward.1} parent=1 // pred_check
      _
    $region43: #{lstm_cvae_forward.1} parent=1 // pred_check_branch
      %93 = sbr.rel (0) target = $region45
    $region44: #{lstm_cvae_forward.1} parent=1 // pred_region
      _
    $region45: #{lstm_cvae_forward.1} parent=1 // pred_fallthru
      _
    // Predicated region
    $region46: #{lstm_cvae_forward.1} parent=1 // pred_check
      _
    $region47: #{lstm_cvae_forward.1} parent=1 // pred_check_branch
      %95 = sbr.rel (0) target = $region49
    $region48: #{lstm_cvae_forward.1} parent=1 // pred_region
      _
    $region49: #{lstm_cvae_forward.1} parent=1 // pred_fallthru
      _
    // Predicated region
    $region50: #{lstm_cvae_forward.1} parent=1 // pred_check
      _
    $region51: #{lstm_cvae_forward.1} parent=1 // pred_check_branch
      %97 = sbr.rel (0) target = $region53
    $region52: #{lstm_cvae_forward.1} parent=1 // pred_region
      _
    $region53: #{lstm_cvae_forward.1} parent=1 // pred_fallthru
      _
    // Predicated region
    $region54: #{lstm_cvae_forward.1} parent=1 // pred_check
      _
    $region55: #{lstm_cvae_forward.1} parent=1 // pred_check_branch
      %99 = sbr.rel (0) target = $region57
    $region56: #{lstm_cvae_forward.1} parent=1 // pred_region
      _
    $region57: #{lstm_cvae_forward.1} parent=1 // pred_fallthru
      _
    // Predicated region
    $region58: #{lstm_cvae_forward.1} parent=1 // pred_check
      _
    $region59: #{lstm_cvae_forward.1} parent=1 // pred_check_branch
      %101 = sbr.rel (0) target = $region61
    $region60: #{lstm_cvae_forward.1} parent=1 // pred_region
      _
    $region61: #{lstm_cvae_forward.1} parent=1 // pred_fallthru
      _
    // Predicated region
    $region62: #{lstm_cvae_forward.1} parent=1 // pred_check
      _
    $region63: #{lstm_cvae_forward.1} parent=1 // pred_check_branch
      %103 = sbr.rel (0) target = $region65
    $region64: #{lstm_cvae_forward.1} parent=1 // pred_region
      _
    $region65: #{lstm_cvae_forward.1} parent=1 // pred_fallthru
      _
    // Predicated region
    $region66: #{lstm_cvae_forward.1} parent=1 // pred_check
      _
    $region67: #{lstm_cvae_forward.1} parent=1 // pred_check_branch
      %105 = sbr.rel (0) target = $region69
    $region68: #{lstm_cvae_forward.1} parent=1 // pred_region
      _
    $region69: #{lstm_cvae_forward.1} parent=1 // pred_fallthru
      _
    // Predicated region
    $region70: #{lstm_cvae_forward.1} parent=1 // pred_check
      _
    $region71: #{lstm_cvae_forward.1} parent=1 // pred_check_branch
      %107 = sbr.rel (0) target = $region73
    $region72: #{lstm_cvae_forward.1} parent=1 // pred_region
      _
    $region73: #{lstm_cvae_forward.1} parent=1 // pred_fallthru
      _
    // Predicated region
    $region74: #{lstm_cvae_forward.1} parent=1 // pred_check
      _
    $region75: #{lstm_cvae_forward.1} parent=1 // pred_check_branch
      %109 = sbr.rel (0) target = $region77
    $region76: #{lstm_cvae_forward.1} parent=1 // pred_region
      _
    $region77: #{lstm_cvae_forward.1} parent=1 // pred_fallthru
      _
    // Predicated region
    $region78: #{lstm_cvae_forward.1} parent=1 // pred_check
      _
    $region79: #{lstm_cvae_forward.1} parent=1 // pred_check_branch
      %111 = sbr.rel (0) target = $region81
    $region80: #{lstm_cvae_forward.1} parent=1 // pred_region
      _
    $region81: #{lstm_cvae_forward.1} parent=1 // pred_fallthru
      _
    // Predicated region
    $region82: #{lstm_cvae_forward.1} parent=1 // pred_check
      _
    $region83: #{lstm_cvae_forward.1} parent=1 // pred_check_branch
      %113 = sbr.rel (0) target = $region85
    $region84: #{lstm_cvae_forward.1} parent=1 // pred_region
      _
    $region85: #{lstm_cvae_forward.1} parent=1 // pred_fallthru
      _
    // Predicated region
    $region86: #{lstm_cvae_forward.1} parent=1 // pred_check
      _
    $region87: #{lstm_cvae_forward.1} parent=1 // pred_check_branch
      %115 = sbr.rel (0) target = $region89
    $region88: #{lstm_cvae_forward.1} parent=1 // pred_region
      _
    $region89: #{lstm_cvae_forward.1} parent=1 // pred_fallthru
      _
    // Predicated region
    $region90: #{lstm_cvae_forward.1} parent=1 // pred_check
      _
    $region91: #{lstm_cvae_forward.1} parent=1 // pred_check_branch
      %117 = sbr.rel (0) target = $region93
    $region92: #{lstm_cvae_forward.1} parent=1 // pred_region
      _
    $region93: #{lstm_cvae_forward.1} parent=1 // pred_fallthru
      _
    // Predicated region
    $region94: #{lstm_cvae_forward.1} parent=1 // pred_check
      _
    $region95: #{lstm_cvae_forward.1} parent=1 // pred_check_branch
      %119 = sbr.rel (0) target = $region97
    $region96: #{lstm_cvae_forward.1} parent=1 // pred_region
      _
    $region97: #{lstm_cvae_forward.1} parent=1 // pred_fallthru
      _
    // Predicated region
    $region98: #{lstm_cvae_forward.1} parent=1 // pred_check
      _
    $region99: #{lstm_cvae_forward.1} parent=1 // pred_check_branch
      %121 = sbr.rel (0) target = $region101
    $region100: #{lstm_cvae_forward.1} parent=1 // pred_region
      _
    $region101: #{lstm_cvae_forward.1} parent=1 // pred_fallthru
      _
    // Predicated region
    $region102: #{lstm_cvae_forward.1} parent=1 // pred_check
      _
    $region103: #{lstm_cvae_forward.1} parent=1 // pred_check_branch
      %123 = sbr.rel (0) target = $region105
    $region104: #{lstm_cvae_forward.1} parent=1 // pred_region
      _
    $region105: #{lstm_cvae_forward.1} parent=1 // pred_fallthru
      _
    // Predicated region
    $region106: #{lstm_cvae_forward.1} parent=1 // pred_check
      _
    $region107: #{lstm_cvae_forward.1} parent=1 // pred_check_branch
      %125 = sbr.rel (0) target = $region109
    $region108: #{lstm_cvae_forward.1} parent=1 // pred_region
      _
    $region109: #{lstm_cvae_forward.1} parent=1 // pred_fallthru
      _
    // Predicated region
    $region110: #{lstm_cvae_forward.1} parent=1 // pred_check
      _
    $region111: #{lstm_cvae_forward.1} parent=1 // pred_check_branch
      %127 = sbr.rel (0) target = $region113
    $region112: #{lstm_cvae_forward.1} parent=1 // pred_region
      _
    $region113: #{lstm_cvae_forward.1} parent=1 // pred_fallthru
      _
    // Predicated region
    $region114: #{lstm_cvae_forward.1} parent=1 // pred_check
      _
    $region115: #{lstm_cvae_forward.1} parent=1 // pred_check_branch
      %129 = sbr.rel (0) target = $region117
    $region116: #{lstm_cvae_forward.1} parent=1 // pred_region
      _
    $region117: #{lstm_cvae_forward.1} parent=1 // pred_fallthru
      _
    // Predicated region
    $region118: #{lstm_cvae_forward.1} parent=1 // pred_check
      _
    $region119: #{lstm_cvae_forward.1} parent=1 // pred_check_branch
      %131 = sbr.rel (0) target = $region121
    $region120: #{lstm_cvae_forward.1} parent=1 // pred_region
      _
    $region121: #{lstm_cvae_forward.1} parent=1 // pred_fallthru
      _
    %v132 = vld [vmem:[%s1] sm:$0xff]
    %v133 = vld [vmem:[%s1 + $0x8] sm:$0xff]
    %v134 = vld [vmem:[%s3] sm:$0x3]
    %v135 = vld [vmem:[%s9] sm:$0x3]
    %v136 = vld [vmem:[%s11] sm:$0xff]
    %v137 = vld [vmem:[%s11 + $0x8] sm:$0xff]
    %v138 = vld [vmem:[%s15] sm:$0xf]
    %v139 = vld [vmem:[%s17] sm:$0x1]
    %v141 = vlaneseq
    %v142 = vshrl.u32 %v141, 7
    %v143 = vsub.s32 0, %v142
    %v144 = vrot.slane %v139, %v143
    %vm146 = vcmask 31744
    %v148 = vsel %vm146, %v134, 0
    %vm150 = vcmask 1043456
    %v152 = vsel %vm150, %v138, 0
    %154 = vmatprep.subr.mxu0 0.0
    %155 = vmatpush1.msra.mxu0 %v152
    %156 = vmatprep.subr.mxu0 0.0
    %157 = vmatpush1.msra.mxu0 0.0
    %158 = vmatprep.subr.mxu0 0.0
    %159 = vmatpush1.msra.mxu0 0.0
    %160 = vmatprep.subr.mxu0 0.0
    %161 = vmatpush1.msra.mxu0 0.0
    %162 = vmatprep.subr.mxu0 0.0
    %163 = vmatpush1.msra.mxu0 0.0
    %164 = vmatprep.subr.mxu0 0.0
    %165 = vmatpush1.msra.mxu0 0.0
    %166 = vmatprep.subr.mxu0 0.0
    %167 = vmatpush1.msra.mxu0 0.0
    %168 = vmatprep.subr.mxu0 0.0
    %169 = vmatpush1.msra.mxu0 0.0
    %170 = vmatprep.subr.mxu0 0.0
    %171 = vmatpush1.msra.mxu0 0.0
    %172 = vmatprep.subr.mxu0 0.0
    %173 = vmatpush1.msra.mxu0 0.0
    %174 = vmatprep.subr.mxu0 0.0
    %175 = vmatpush1.msra.mxu0 0.0
    %176 = vmatprep.subr.mxu0 0.0
    %177 = vmatpush1.msra.mxu0 0.0
    %178 = vmatprep.subr.mxu0 0.0
    %179 = vmatpush1.msra.mxu0 0.0
    %180 = vmatprep.subr.mxu0 0.0
    %181 = vmatpush1.msra.mxu0 0.0
    %182 = vmatprep.subr.mxu0 0.0
    %183 = vmatpush1.msra.mxu0 0.0
    %184 = vmatprep.subr.mxu0 0.0
    %185 = vmatpush1.msra.mxu0 0.0
    %186 = vmatprep.subr.mxu0 0.0
    %187 = vmatpush1.msra.mxu0 0.0
    %188 = vmatprep.subr.mxu0 0.0
    %189 = vmatpush1.msra.mxu0 0.0
    %190 = vmatprep.subr.mxu0 0.0
    %191 = vmatpush1.msra.mxu0 0.0
    %192 = vmatprep.subr.mxu0 0.0
    %193 = vmatpush1.msra.mxu0 0.0
    %194 = vmatprep.subr.mxu0 0.0
    %195 = vmatpush1.msra.mxu0 0.0
    %196 = vmatprep.subr.mxu0 0.0
    %197 = vmatpush1.msra.mxu0 0.0
    %198 = vmatprep.subr.mxu0 0.0
    %199 = vmatpush1.msra.mxu0 0.0
    %200 = vmatprep.subr.mxu0 0.0
    %201 = vmatpush1.msra.mxu0 0.0
    %202 = vmatprep.subr.mxu0 0.0
    %203 = vmatpush1.msra.mxu0 0.0
    %204 = vmatprep.subr.mxu0 0.0
    %205 = vmatpush1.msra.mxu0 0.0
    %206 = vmatprep.subr.mxu0 0.0
    %207 = vmatpush1.msra.mxu0 0.0
    %208 = vmatprep.subr.mxu0 0.0
    %209 = vmatpush1.msra.mxu0 0.0
    %210 = vmatprep.subr.mxu0 0.0
    %211 = vmatpush1.msra.mxu0 0.0
    %212 = vmatprep.subr.mxu0 0.0
    %213 = vmatpush1.msra.mxu0 0.0
    %214 = vmatprep.subr.mxu0 0.0
    %215 = vmatpush1.msra.mxu0 0.0
    %216 = vmatprep.subr.mxu0 0.0
    %217 = vmatpush1.msra.mxu0 0.0
    %218 = vmatprep.mubr.f32.mxu0 0.0
    %219 = vmatmul.mubr.f32.gmra.mrb[0].mxu0 %v148
    %v220 = vpop.f32.mrb[0].mxu0
    %v221 = vadd.f32 %v144, %v220
    %v222 = vpop.f32.mrb[0].mxu0
    %223 = vdwg.mxu0
    %v224 = vld [vmem:[%s13] sm:$0xff]
    %v225 = vld [vmem:[%s13 + $0x8] sm:$0xf]
    %vm226 = vcmask 15360
    %v228 = vsel %vm226, %v136, 0
    %v231 = vsel %vm226, %v137, 0
    %vm233 = vcmask 1041408
    %v235 = vsel %vm233, %v221, 0
    %237 = vmatprep.subr.mxu0 0.0
    %238 = vmatpush1.msra.mxu0 %v235
    %239 = vmatprep.subr.mxu0 0.0
    %240 = vmatpush1.msra.mxu0 0.0
    %241 = vmatprep.subr.mxu0 0.0
    %242 = vmatpush1.msra.mxu0 0.0
    %243 = vmatprep.subr.mxu0 0.0
    %244 = vmatpush1.msra.mxu0 0.0
    %245 = vmatprep.subr.mxu0 0.0
    %246 = vmatpush1.msra.mxu0 0.0
    %247 = vmatprep.subr.mxu0 0.0
    %248 = vmatpush1.msra.mxu0 0.0
    %249 = vmatprep.subr.mxu0 0.0
    %250 = vmatpush1.msra.mxu0 0.0
    %251 = vmatprep.subr.mxu0 0.0
    %252 = vmatpush1.msra.mxu0 0.0
    %253 = vmatprep.subr.mxu0 0.0
    %254 = vmatpush1.msra.mxu0 0.0
    %255 = vmatprep.subr.mxu0 0.0
    %256 = vmatpush1.msra.mxu0 0.0
    %257 = vmatprep.subr.mxu0 0.0
    %258 = vmatpush1.msra.mxu0 0.0
    %259 = vmatprep.subr.mxu0 0.0
    %260 = vmatpush1.msra.mxu0 0.0
    %261 = vmatprep.subr.mxu0 0.0
    %262 = vmatpush1.msra.mxu0 0.0
    %263 = vmatprep.subr.mxu0 0.0
    %264 = vmatpush1.msra.mxu0 0.0
    %265 = vmatprep.subr.mxu0 0.0
    %266 = vmatpush1.msra.mxu0 0.0
    %267 = vmatprep.subr.mxu0 0.0
    %268 = vmatpush1.msra.mxu0 0.0
    %269 = vmatprep.subr.mxu0 0.0
    %270 = vmatpush1.msra.mxu0 0.0
    %271 = vmatprep.subr.mxu0 0.0
    %272 = vmatpush1.msra.mxu0 0.0
    %273 = vmatprep.subr.mxu0 0.0
    %274 = vmatpush1.msra.mxu0 0.0
    %275 = vmatprep.subr.mxu0 0.0
    %276 = vmatpush1.msra.mxu0 0.0
    %277 = vmatprep.subr.mxu0 0.0
    %278 = vmatpush1.msra.mxu0 0.0
    %279 = vmatprep.subr.mxu0 0.0
    %280 = vmatpush1.msra.mxu0 0.0
    %281 = vmatprep.subr.mxu0 0.0
    %282 = vmatpush1.msra.mxu0 0.0
    %283 = vmatprep.subr.mxu0 0.0
    %284 = vmatpush1.msra.mxu0 0.0
    %285 = vmatprep.subr.mxu0 0.0
    %286 = vmatpush1.msra.mxu0 0.0
    %287 = vmatprep.subr.mxu0 0.0
    %288 = vmatpush1.msra.mxu0 0.0
    %289 = vmatprep.subr.mxu0 0.0
    %290 = vmatpush1.msra.mxu0 0.0
    %291 = vmatprep.subr.mxu0 0.0
    %292 = vmatpush1.msra.mxu0 0.0
    %293 = vmatprep.subr.mxu0 0.0
    %294 = vmatpush1.msra.mxu0 0.0
    %295 = vmatprep.subr.mxu0 0.0
    %296 = vmatpush1.msra.mxu0 0.0
    %297 = vmatprep.subr.mxu0 0.0
    %298 = vmatpush1.msra.mxu0 0.0
    %299 = vmatprep.subr.mxu0 0.0
    %300 = vmatpush1.msra.mxu0 0.0
    %301 = vmatprep.mubr.f32.mxu0 0.0
    %302 = vmatmul.mubr.f32.gmra.mrb[0].mxu0 %v228
    %v303 = vpop.f32.mrb[0].mxu0
    %v304 = vadd.f32 0.0, %v303
    %v305 = vpop.f32.mrb[0].mxu0
    %306 = vmatprep.mubr.f32.mxu0 0.0
    %307 = vmatmul.mubr.f32.gmra.mrb[0].mxu0 %v231
    %v308 = vpop.f32.mrb[0].mxu0
    %v309 = vadd.f32 0.0, %v308
    %v310 = vpop.f32.mrb[0].mxu0
    %311 = vdwg.mxu0
    %vm312 = vcmask 97280
    %v314 = vsel %vm312, %v132, 0
    %v317 = vsel %vm312, %v133, 0
    %v320 = vsel %vm150, %v225, 0
    %322 = vmatprep.subr.mxu0 0.0
    %323 = vmatpush1.msra.mxu0 %v224
    %324 = vmatprep.subr.mxu0 0.0
    %325 = vmatpush1.msra.mxu0 %v320
    %326 = vmatprep.subr.mxu0 0.0
    %327 = vmatpush1.msra.mxu0 0.0
    %328 = vmatprep.subr.mxu0 0.0
    %329 = vmatpush1.msra.mxu0 0.0
    %330 = vmatprep.subr.mxu0 0.0
    %331 = vmatpush1.msra.mxu0 0.0
    %332 = vmatprep.subr.mxu0 0.0
    %333 = vmatpush1.msra.mxu0 0.0
    %334 = vmatprep.subr.mxu0 0.0
    %335 = vmatpush1.msra.mxu0 0.0
    %336 = vmatprep.subr.mxu0 0.0
    %337 = vmatpush1.msra.mxu0 0.0
    %338 = vmatprep.subr.mxu0 0.0
    %339 = vmatpush1.msra.mxu0 0.0
    %340 = vmatprep.subr.mxu0 0.0
    %341 = vmatpush1.msra.mxu0 0.0
    %342 = vmatprep.subr.mxu0 0.0
    %343 = vmatpush1.msra.mxu0 0.0
    %344 = vmatprep.subr.mxu0 0.0
    %345 = vmatpush1.msra.mxu0 0.0
    %346 = vmatprep.subr.mxu0 0.0
    %347 = vmatpush1.msra.mxu0 0.0
    %348 = vmatprep.subr.mxu0 0.0
    %349 = vmatpush1.msra.mxu0 0.0
    %350 = vmatprep.subr.mxu0 0.0
    %351 = vmatpush1.msra.mxu0 0.0
    %352 = vmatprep.subr.mxu0 0.0
    %353 = vmatpush1.msra.mxu0 0.0
    %354 = vmatprep.subr.mxu0 0.0
    %355 = vmatpush1.msra.mxu0 0.0
    %356 = vmatprep.subr.mxu0 0.0
    %357 = vmatpush1.msra.mxu0 0.0
    %358 = vmatprep.subr.mxu0 0.0
    %359 = vmatpush1.msra.mxu0 0.0
    %360 = vmatprep.subr.mxu0 0.0
    %361 = vmatpush1.msra.mxu0 0.0
    %362 = vmatprep.subr.mxu0 0.0
    %363 = vmatpush1.msra.mxu0 0.0
    %364 = vmatprep.subr.mxu0 0.0
    %365 = vmatpush1.msra.mxu0 0.0
    %366 = vmatprep.subr.mxu0 0.0
    %367 = vmatpush1.msra.mxu0 0.0
    %368 = vmatprep.subr.mxu0 0.0
    %369 = vmatpush1.msra.mxu0 0.0
    %370 = vmatprep.subr.mxu0 0.0
    %371 = vmatpush1.msra.mxu0 0.0
    %372 = vmatprep.subr.mxu0 0.0
    %373 = vmatpush1.msra.mxu0 0.0
    %374 = vmatprep.subr.mxu0 0.0
    %375 = vmatpush1.msra.mxu0 0.0
    %376 = vmatprep.subr.mxu0 0.0
    %377 = vmatpush1.msra.mxu0 0.0
    %378 = vmatprep.subr.mxu0 0.0
    %379 = vmatpush1.msra.mxu0 0.0
    %380 = vmatprep.subr.mxu0 0.0
    %381 = vmatpush1.msra.mxu0 0.0
    %382 = vmatprep.subr.mxu0 0.0
    %383 = vmatpush1.msra.mxu0 0.0
    %384 = vmatprep.subr.mxu0 0.0
    %385 = vmatpush1.msra.mxu0 0.0
    %386 = vmatprep.mubr.f32.mxu0 0.0
    %387 = vmatmul.mubr.f32.gmra.mrb[0].mxu0 %v314
    %v388 = vpop.f32.mrb[0].mxu0
    %v389 = vadd.f32 %v304, %v388
    %v390 = vpop.f32.mrb[0].mxu0
    %391 = vmatprep.mubr.f32.mxu0 0.0
    %392 = vmatmul.mubr.f32.gmra.mrb[0].mxu0 %v317
    %v393 = vpop.f32.mrb[0].mxu0
    %v394 = vadd.f32 %v309, %v393
    %v395 = vpop.f32.mrb[0].mxu0
    %396 = vdwg.mxu0
    %v397 = vmax.f32 %v389, 0.0
    %v398 = vmax.f32 %v394, 0.0
    %vm399 = vcmask 130048
    %v401 = vsel %vm399, %v135, 0
    %403 = vmatprep.subr.mxu0 0.0
    %404 = vmatpush1.msra.mxu0 %v397
    %405 = vmatprep.subr.mxu0 0.0
    %406 = vmatpush1.msra.mxu0 %v398
    %407 = vmatprep.subr.mxu0 0.0
    %408 = vmatpush1.msra.mxu0 0.0
    %409 = vmatprep.subr.mxu0 0.0
    %410 = vmatpush1.msra.mxu0 0.0
    %411 = vmatprep.subr.mxu0 0.0
    %412 = vmatpush1.msra.mxu0 0.0
    %413 = vmatprep.subr.mxu0 0.0
    %414 = vmatpush1.msra.mxu0 0.0
    %415 = vmatprep.subr.mxu0 0.0
    %416 = vmatpush1.msra.mxu0 0.0
    %417 = vmatprep.subr.mxu0 0.0
    %418 = vmatpush1.msra.mxu0 0.0
    %419 = vmatprep.subr.mxu0 0.0
    %420 = vmatpush1.msra.mxu0 0.0
    %421 = vmatprep.subr.mxu0 0.0
    %422 = vmatpush1.msra.mxu0 0.0
    %423 = vmatprep.subr.mxu0 0.0
    %424 = vmatpush1.msra.mxu0 0.0
    %425 = vmatprep.subr.mxu0 0.0
    %426 = vmatpush1.msra.mxu0 0.0
    %427 = vmatprep.subr.mxu0 0.0
    %428 = vmatpush1.msra.mxu0 0.0
    %429 = vmatprep.subr.mxu0 0.0
    %430 = vmatpush1.msra.mxu0 0.0
    %431 = vmatprep.subr.mxu0 0.0
    %432 = vmatpush1.msra.mxu0 0.0
    %433 = vmatprep.subr.mxu0 0.0
    %434 = vmatpush1.msra.mxu0 0.0
    %435 = vmatprep.subr.mxu0 0.0
    %436 = vmatpush1.msra.mxu0 0.0
    %437 = vmatprep.subr.mxu0 0.0
    %438 = vmatpush1.msra.mxu0 0.0
    %439 = vmatprep.subr.mxu0 0.0
    %440 = vmatpush1.msra.mxu0 0.0
    %441 = vmatprep.subr.mxu0 0.0
    %442 = vmatpush1.msra.mxu0 0.0
    %443 = vmatprep.subr.mxu0 0.0
    %444 = vmatpush1.msra.mxu0 0.0
    %445 = vmatprep.subr.mxu0 0.0
    %446 = vmatpush1.msra.mxu0 0.0
    %447 = vmatprep.subr.mxu0 0.0
    %448 = vmatpush1.msra.mxu0 0.0
    %449 = vmatprep.subr.mxu0 0.0
    %450 = vmatpush1.msra.mxu0 0.0
    %451 = vmatprep.subr.mxu0 0.0
    %452 = vmatpush1.msra.mxu0 0.0
    %453 = vmatprep.subr.mxu0 0.0
    %454 = vmatpush1.msra.mxu0 0.0
    %455 = vmatprep.subr.mxu0 0.0
    %456 = vmatpush1.msra.mxu0 0.0
    %457 = vmatprep.subr.mxu0 0.0
    %458 = vmatpush1.msra.mxu0 0.0
    %459 = vmatprep.subr.mxu0 0.0
    %460 = vmatpush1.msra.mxu0 0.0
    %461 = vmatprep.subr.mxu0 0.0
    %462 = vmatpush1.msra.mxu0 0.0
    %463 = vmatprep.subr.mxu0 0.0
    %464 = vmatpush1.msra.mxu0 0.0
    %465 = vmatprep.subr.mxu0 0.0
    %466 = vmatpush1.msra.mxu0 0.0
    %467 = vmatprep.mubr.f32.mxu0 0.0
    %468 = vmatmul.mubr.f32.gmra.mrb[0].mxu0 %v401
    %v469 = vpop.f32.mrb[0].mxu0
    %v470 = vadd.f32 0.0, %v469
    %v471 = vpop.f32.mrb[0].mxu0
    %472 = vdwg.mxu0
    %v474 = vsel %vm233, %v470, 0
    %476 = vmatprep.subr.mxu0 0.0
    %477 = vmatpush1.msra.mxu0 %v474
    %478 = vmatprep.subr.mxu0 0.0
    %479 = vmatpush1.msra.mxu0 0.0
    %480 = vmatprep.subr.mxu0 0.0
    %481 = vmatpush1.msra.mxu0 0.0
    %482 = vmatprep.subr.mxu0 0.0
    %483 = vmatpush1.msra.mxu0 0.0
    %484 = vmatprep.subr.mxu0 0.0
    %485 = vmatpush1.msra.mxu0 0.0
    %486 = vmatprep.subr.mxu0 0.0
    %487 = vmatpush1.msra.mxu0 0.0
    %488 = vmatprep.subr.mxu0 0.0
    %489 = vmatpush1.msra.mxu0 0.0
    %490 = vmatprep.subr.mxu0 0.0
    %491 = vmatpush1.msra.mxu0 0.0
    %492 = vmatprep.subr.mxu0 0.0
    %493 = vmatpush1.msra.mxu0 0.0
    %494 = vmatprep.subr.mxu0 0.0
    %495 = vmatpush1.msra.mxu0 0.0
    %496 = vmatprep.subr.mxu0 0.0
    %497 = vmatpush1.msra.mxu0 0.0
    %498 = vmatprep.subr.mxu0 0.0
    %499 = vmatpush1.msra.mxu0 0.0
    %500 = vmatprep.subr.mxu0 0.0
    %501 = vmatpush1.msra.mxu0 0.0
    %502 = vmatprep.subr.mxu0 0.0
    %503 = vmatpush1.msra.mxu0 0.0
    %504 = vmatprep.subr.mxu0 0.0
    %505 = vmatpush1.msra.mxu0 0.0
    %506 = vmatprep.subr.mxu0 0.0
    %507 = vmatpush1.msra.mxu0 0.0
    %508 = vmatprep.subr.mxu0 0.0
    %509 = vmatpush1.msra.mxu0 0.0
    %510 = vmatprep.subr.mxu0 0.0
    %511 = vmatpush1.msra.mxu0 0.0
    %512 = vmatprep.subr.mxu0 0.0
    %513 = vmatpush1.msra.mxu0 0.0
    %514 = vmatprep.subr.mxu0 0.0
    %515 = vmatpush1.msra.mxu0 0.0
    %516 = vmatprep.subr.mxu0 0.0
    %517 = vmatpush1.msra.mxu0 0.0
    %518 = vmatprep.subr.mxu0 0.0
    %519 = vmatpush1.msra.mxu0 0.0
    %520 = vmatprep.subr.mxu0 0.0
    %521 = vmatpush1.msra.mxu0 0.0
    %522 = vmatprep.subr.mxu0 0.0
    %523 = vmatpush1.msra.mxu0 0.0
    %524 = vmatprep.subr.mxu0 0.0
    %525 = vmatpush1.msra.mxu0 0.0
    %526 = vmatprep.subr.mxu0 0.0
    %527 = vmatpush1.msra.mxu0 0.0
    %528 = vmatprep.subr.mxu0 0.0
    %529 = vmatpush1.msra.mxu0 0.0
    %530 = vmatprep.subr.mxu0 0.0
    %531 = vmatpush1.msra.mxu0 0.0
    %532 = vmatprep.subr.mxu0 0.0
    %533 = vmatpush1.msra.mxu0 0.0
    %534 = vmatprep.subr.mxu0 0.0
    %535 = vmatpush1.msra.mxu0 0.0
    %536 = vmatprep.subr.mxu0 0.0
    %537 = vmatpush1.msra.mxu0 0.0
    %538 = vmatprep.subr.mxu0 0.0
    %539 = vmatpush1.msra.mxu0 0.0
    %540 = vmatprep.mubr.f32.mxu0 0.0
    %541 = vmatmul.mubr.f32.gmra.mrb[0].mxu0 %v228
    %v542 = vpop.f32.mrb[0].mxu0
    %v543 = vadd.f32 0.0, %v542
    %v544 = vpop.f32.mrb[0].mxu0
    %545 = vmatprep.mubr.f32.mxu0 0.0
    %546 = vmatmul.mubr.f32.gmra.mrb[0].mxu0 %v231
    %v547 = vpop.f32.mrb[0].mxu0
    %v548 = vadd.f32 0.0, %v547
    %v549 = vpop.f32.mrb[0].mxu0
    %550 = vdwg.mxu0
    %v551 = vsel %vm399, %v543, 0.0
    %552 = vadd.xlane.f32.xlu0 %v551
    %v553 = vpop.xlane.xlu0 %552
    %v554 = vsel %vm399, %v548, 0.0
    %555 = vadd.xlane.f32.xlu0 %v554
    %v556 = vpop.xlane.xlu0 %555
    %v557 = vrcp.pop 128.0
    %v558 = vmul.f32 %v553, %v557
    %v559 = vmul.f32 %v556, %v557
    %v560 = vsub.f32 %v397, %v558
    %v561 = vsub.f32 %v398, %v559
    %v562 = vmul.f32 %v560, %v560
    %v563 = vmul.f32 %v561, %v561
    %564 = vmatprep.subr.mxu0 0.0
    %565 = vmatpush1.msra.mxu0 %v562
    %566 = vmatprep.subr.mxu0 0.0
    %567 = vmatpush1.msra.mxu0 %v563
    %568 = vmatprep.subr.mxu0 0.0
    %569 = vmatpush1.msra.mxu0 0.0
    %570 = vmatprep.subr.mxu0 0.0
    %571 = vmatpush1.msra.mxu0 0.0
    %572 = vmatprep.subr.mxu0 0.0
    %573 = vmatpush1.msra.mxu0 0.0
    %574 = vmatprep.subr.mxu0 0.0
    %575 = vmatpush1.msra.mxu0 0.0
    %576 = vmatprep.subr.mxu0 0.0
    %577 = vmatpush1.msra.mxu0 0.0
    %578 = vmatprep.subr.mxu0 0.0
    %579 = vmatpush1.msra.mxu0 0.0
    %580 = vmatprep.subr.mxu0 0.0
    %581 = vmatpush1.msra.mxu0 0.0
    %582 = vmatprep.subr.mxu0 0.0
    %583 = vmatpush1.msra.mxu0 0.0
    %584 = vmatprep.subr.mxu0 0.0
    %585 = vmatpush1.msra.mxu0 0.0
    %586 = vmatprep.subr.mxu0 0.0
    %587 = vmatpush1.msra.mxu0 0.0
    %588 = vmatprep.subr.mxu0 0.0
    %589 = vmatpush1.msra.mxu0 0.0
    %590 = vmatprep.subr.mxu0 0.0
    %591 = vmatpush1.msra.mxu0 0.0
    %592 = vmatprep.subr.mxu0 0.0
    %593 = vmatpush1.msra.mxu0 0.0
    %594 = vmatprep.subr.mxu0 0.0
    %595 = vmatpush1.msra.mxu0 0.0
    %596 = vmatprep.subr.mxu0 0.0
    %597 = vmatpush1.msra.mxu0 0.0
    %598 = vmatprep.subr.mxu0 0.0
    %599 = vmatpush1.msra.mxu0 0.0
    %600 = vmatprep.subr.mxu0 0.0
    %601 = vmatpush1.msra.mxu0 0.0
    %602 = vmatprep.subr.mxu0 0.0
    %603 = vmatpush1.msra.mxu0 0.0
    %604 = vmatprep.subr.mxu0 0.0
    %605 = vmatpush1.msra.mxu0 0.0
    %606 = vmatprep.subr.mxu0 0.0
    %607 = vmatpush1.msra.mxu0 0.0
    %608 = vmatprep.subr.mxu0 0.0
    %609 = vmatpush1.msra.mxu0 0.0
    %610 = vmatprep.subr.mxu0 0.0
    %611 = vmatpush1.msra.mxu0 0.0
    %612 = vmatprep.subr.mxu0 0.0
    %613 = vmatpush1.msra.mxu0 0.0
    %614 = vmatprep.subr.mxu0 0.0
    %615 = vmatpush1.msra.mxu0 0.0
    %616 = vmatprep.subr.mxu0 0.0
    %617 = vmatpush1.msra.mxu0 0.0
    %618 = vmatprep.subr.mxu0 0.0
    %619 = vmatpush1.msra.mxu0 0.0
    %620 = vmatprep.subr.mxu0 0.0
    %621 = vmatpush1.msra.mxu0 0.0
    %622 = vmatprep.subr.mxu0 0.0
    %623 = vmatpush1.msra.mxu0 0.0
    %624 = vmatprep.subr.mxu0 0.0
    %625 = vmatpush1.msra.mxu0 0.0
    %626 = vmatprep.subr.mxu0 0.0
    %627 = vmatpush1.msra.mxu0 0.0
    %628 = vmatprep.mubr.f32.mxu0 0.0
    %629 = vmatmul.mubr.f32.gmra.mrb[0].mxu0 %v401
    %v630 = vpop.f32.mrb[0].mxu0
    %v631 = vadd.f32 0.0, %v630
    %v632 = vpop.f32.mrb[0].mxu0
    %633 = vdwg.mxu0
    %v635 = vsel %vm233, %v631, 0
    %637 = vmatprep.subr.mxu0 0.0
    %638 = vmatpush1.msra.mxu0 %v635
    %639 = vmatprep.subr.mxu0 0.0
    %640 = vmatpush1.msra.mxu0 0.0
    %641 = vmatprep.subr.mxu0 0.0
    %642 = vmatpush1.msra.mxu0 0.0
    %643 = vmatprep.subr.mxu0 0.0
    %644 = vmatpush1.msra.mxu0 0.0
    %645 = vmatprep.subr.mxu0 0.0
    %646 = vmatpush1.msra.mxu0 0.0
    %647 = vmatprep.subr.mxu0 0.0
    %648 = vmatpush1.msra.mxu0 0.0
    %649 = vmatprep.subr.mxu0 0.0
    %650 = vmatpush1.msra.mxu0 0.0
    %651 = vmatprep.subr.mxu0 0.0
    %652 = vmatpush1.msra.mxu0 0.0
    %653 = vmatprep.subr.mxu0 0.0
    %654 = vmatpush1.msra.mxu0 0.0
    %655 = vmatprep.subr.mxu0 0.0
    %656 = vmatpush1.msra.mxu0 0.0
    %657 = vmatprep.subr.mxu0 0.0
    %658 = vmatpush1.msra.mxu0 0.0
    %659 = vmatprep.subr.mxu0 0.0
    %660 = vmatpush1.msra.mxu0 0.0
    %661 = vmatprep.subr.mxu0 0.0
    %662 = vmatpush1.msra.mxu0 0.0
    %663 = vmatprep.subr.mxu0 0.0
    %664 = vmatpush1.msra.mxu0 0.0
    %665 = vmatprep.subr.mxu0 0.0
    %666 = vmatpush1.msra.mxu0 0.0
    %667 = vmatprep.subr.mxu0 0.0
    %668 = vmatpush1.msra.mxu0 0.0
    %669 = vmatprep.subr.mxu0 0.0
    %670 = vmatpush1.msra.mxu0 0.0
    %671 = vmatprep.subr.mxu0 0.0
    %672 = vmatpush1.msra.mxu0 0.0
    %673 = vmatprep.subr.mxu0 0.0
    %674 = vmatpush1.msra.mxu0 0.0
    %675 = vmatprep.subr.mxu0 0.0
    %676 = vmatpush1.msra.mxu0 0.0
    %677 = vmatprep.subr.mxu0 0.0
    %678 = vmatpush1.msra.mxu0 0.0
    %679 = vmatprep.subr.mxu0 0.0
    %680 = vmatpush1.msra.mxu0 0.0
    %681 = vmatprep.subr.mxu0 0.0
    %682 = vmatpush1.msra.mxu0 0.0
    %683 = vmatprep.subr.mxu0 0.0
    %684 = vmatpush1.msra.mxu0 0.0
    %685 = vmatprep.subr.mxu0 0.0
    %686 = vmatpush1.msra.mxu0 0.0
    %687 = vmatprep.subr.mxu0 0.0
    %688 = vmatpush1.msra.mxu0 0.0
    %689 = vmatprep.subr.mxu0 0.0
    %690 = vmatpush1.msra.mxu0 0.0
    %691 = vmatprep.subr.mxu0 0.0
    %692 = vmatpush1.msra.mxu0 0.0
    %693 = vmatprep.subr.mxu0 0.0
    %694 = vmatpush1.msra.mxu0 0.0
    %695 = vmatprep.subr.mxu0 0.0
    %696 = vmatpush1.msra.mxu0 0.0
    %697 = vmatprep.subr.mxu0 0.0
    %698 = vmatpush1.msra.mxu0 0.0
    %699 = vmatprep.subr.mxu0 0.0
    %700 = vmatpush1.msra.mxu0 0.0
    %701 = vmatprep.mubr.f32.mxu0 0.0
    %702 = vmatmul.mubr.f32.gmra.mrb[0].mxu0 %v228
    %v703 = vpop.f32.mrb[0].mxu0
    %v704 = vadd.f32 0.0, %v703
    %v705 = vpop.f32.mrb[0].mxu0
    %706 = vmatprep.mubr.f32.mxu0 0.0
    %707 = vmatmul.mubr.f32.gmra.mrb[0].mxu0 %v231
    %v708 = vpop.f32.mrb[0].mxu0
    %v709 = vadd.f32 0.0, %v708
    %v710 = vpop.f32.mrb[0].mxu0
    %711 = vdwg.mxu0
    %v712 = vsel %vm399, %v704, 0.0
    %713 = vadd.xlane.f32.xlu0 %v712
    %v714 = vpop.xlane.xlu0 %713
    %v715 = vsel %vm399, %v709, 0.0
    %716 = vadd.xlane.f32.xlu0 %v715
    %v717 = vpop.xlane.xlu0 %716
    %v718 = vmul.f32 %v714, %v557
    %v719 = vmul.f32 %v717, %v557
    %v720 = vadd.f32 %v718, 1e-05
    %v721 = vadd.f32 %v719, 1e-05
    %v722 = vrsqrt.pop %v720
    %v723 = vrsqrt.pop %v721
    %v724 = vmul.f32 %v560, %v722
    %v725 = vmul.f32 %v561, %v723
    %v726 = vld [vmem:[%s19] sm:$0xff]
    %v727 = vld [vmem:[%s19 + $0x8] sm:$0xff]
    %v728 = vmul.f32 %v724, %v726
    %v729 = vmul.f32 %v725, %v727
    %v730 = vld [vmem:[%s21] sm:$0xff]
    %v731 = vld [vmem:[%s21 + $0x8] sm:$0xff]
    %v732 = vadd.f32 %v728, %v730
    %v733 = vadd.f32 %v729, %v731
    %v734 = vld [vmem:[%s23] sm:$0xff]
    %v735 = vld [vmem:[%s23 + $0x8] sm:$0xff]
    %v736 = vld [vmem:[%s25] sm:$0x1]
    %v738 = vlaneseq
    %v739 = vshrl.u32 %v738, 7
    %v740 = vsub.s32 0, %v739
    %v741 = vrot.slane %v736, %v740
    %v744 = vsel %vm399, %v732, 0
    %v747 = vsel %vm399, %v733, 0
    %749 = vmatprep.subr.mxu0 0.0
    %750 = vmatpush1.msra.mxu0 %v734
    %751 = vmatprep.subr.mxu0 0.0
    %752 = vmatpush1.msra.mxu0 %v735
    %753 = vmatprep.subr.mxu0 0.0
    %754 = vmatpush1.msra.mxu0 0.0
    %755 = vmatprep.subr.mxu0 0.0
    %756 = vmatpush1.msra.mxu0 0.0
    %757 = vmatprep.subr.mxu0 0.0
    %758 = vmatpush1.msra.mxu0 0.0
    %759 = vmatprep.subr.mxu0 0.0
    %760 = vmatpush1.msra.mxu0 0.0
    %761 = vmatprep.subr.mxu0 0.0
    %762 = vmatpush1.msra.mxu0 0.0
    %763 = vmatprep.subr.mxu0 0.0
    %764 = vmatpush1.msra.mxu0 0.0
    %765 = vmatprep.subr.mxu0 0.0
    %766 = vmatpush1.msra.mxu0 0.0
    %767 = vmatprep.subr.mxu0 0.0
    %768 = vmatpush1.msra.mxu0 0.0
    %769 = vmatprep.subr.mxu0 0.0
    %770 = vmatpush1.msra.mxu0 0.0
    %771 = vmatprep.subr.mxu0 0.0
    %772 = vmatpush1.msra.mxu0 0.0
    %773 = vmatprep.subr.mxu0 0.0
    %774 = vmatpush1.msra.mxu0 0.0
    %775 = vmatprep.subr.mxu0 0.0
    %776 = vmatpush1.msra.mxu0 0.0
    %777 = vmatprep.subr.mxu0 0.0
    %778 = vmatpush1.msra.mxu0 0.0
    %779 = vmatprep.subr.mxu0 0.0
    %780 = vmatpush1.msra.mxu0 0.0
    %781 = vmatprep.subr.mxu0 0.0
    %782 = vmatpush1.msra.mxu0 0.0
    %783 = vmatprep.subr.mxu0 0.0
    %784 = vmatpush1.msra.mxu0 0.0
    %785 = vmatprep.subr.mxu0 0.0
    %786 = vmatpush1.msra.mxu0 0.0
    %787 = vmatprep.subr.mxu0 0.0
    %788 = vmatpush1.msra.mxu0 0.0
    %789 = vmatprep.subr.mxu0 0.0
    %790 = vmatpush1.msra.mxu0 0.0
    %791 = vmatprep.subr.mxu0 0.0
    %792 = vmatpush1.msra.mxu0 0.0
    %793 = vmatprep.subr.mxu0 0.0
    %794 = vmatpush1.msra.mxu0 0.0
    %795 = vmatprep.subr.mxu0 0.0
    %796 = vmatpush1.msra.mxu0 0.0
    %797 = vmatprep.subr.mxu0 0.0
    %798 = vmatpush1.msra.mxu0 0.0
    %799 = vmatprep.subr.mxu0 0.0
    %800 = vmatpush1.msra.mxu0 0.0
    %801 = vmatprep.subr.mxu0 0.0
    %802 = vmatpush1.msra.mxu0 0.0
    %803 = vmatprep.subr.mxu0 0.0
    %804 = vmatpush1.msra.mxu0 0.0
    %805 = vmatprep.subr.mxu0 0.0
    %806 = vmatpush1.msra.mxu0 0.0
    %807 = vmatprep.subr.mxu0 0.0
    %808 = vmatpush1.msra.mxu0 0.0
    %809 = vmatprep.subr.mxu0 0.0
    %810 = vmatpush1.msra.mxu0 0.0
    %811 = vmatprep.subr.mxu0 0.0
    %812 = vmatpush1.msra.mxu0 0.0
    %813 = vmatprep.mubr.f32.mxu0 0.0
    %814 = vmatmul.mubr.f32.gmra.mrb[0].mxu0 %v744
    %v815 = vpop.f32.mrb[0].mxu0
    %v816 = vadd.f32 %v741, %v815
    %v817 = vpop.f32.mrb[0].mxu0
    %818 = vmatprep.mubr.f32.mxu0 0.0
    %819 = vmatmul.mubr.f32.gmra.mrb[0].mxu0 %v747
    %v820 = vpop.f32.mrb[0].mxu0
    %v821 = vadd.f32 %v741, %v820
    %v822 = vpop.f32.mrb[0].mxu0
    %823 = vdwg.mxu0
    %824 = vst [vmem:[#allocation2] sm:$0xff] %v816
    %825 = vst [vmem:[#allocation2 + $0x8] sm:$0xff] %v821
    %v826 = vld [vmem:[%s5] sm:$0x3]
    %v827 = vcvt.s32.f32 %v826
    %v828 = vrcp.pop %v827
    %v829 = vmul.f32 1.0, %v828
    %v830 = vld [vmem:[%s27] sm:$0xff]
    %v831 = vld [vmem:[%s27 + $0x8] sm:$0xff]
    %v832 = vld [vmem:[%s29] sm:$0xff]
    %v833 = vld [vmem:[%s29 + $0x8] sm:$0xff]
    %v834 = vld [vmem:[#allocation2] sm:$0x3]
    %v836 = vsel %vm399, 0.0, 0
    %838 = vmatprep.subr.mxu0 0.0
    %839 = vmatpush1.msra.mxu0 %v830
    %840 = vmatprep.subr.mxu0 0.0
    %841 = vmatpush1.msra.mxu0 %v831
    %842 = vmatprep.subr.mxu0 0.0
    %843 = vmatpush1.msra.mxu0 0.0
    %844 = vmatprep.subr.mxu0 0.0
    %845 = vmatpush1.msra.mxu0 0.0
    %846 = vmatprep.subr.mxu0 0.0
    %847 = vmatpush1.msra.mxu0 0.0
    %848 = vmatprep.subr.mxu0 0.0
    %849 = vmatpush1.msra.mxu0 0.0
    %850 = vmatprep.subr.mxu0 0.0
    %851 = vmatpush1.msra.mxu0 0.0
    %852 = vmatprep.subr.mxu0 0.0
    %853 = vmatpush1.msra.mxu0 0.0
    %854 = vmatprep.subr.mxu0 0.0
    %855 = vmatpush1.msra.mxu0 0.0
    %856 = vmatprep.subr.mxu0 0.0
    %857 = vmatpush1.msra.mxu0 0.0
    %858 = vmatprep.subr.mxu0 0.0
    %859 = vmatpush1.msra.mxu0 0.0
    %860 = vmatprep.subr.mxu0 0.0
    %861 = vmatpush1.msra.mxu0 0.0
    %862 = vmatprep.subr.mxu0 0.0
    %863 = vmatpush1.msra.mxu0 0.0
    %864 = vmatprep.subr.mxu0 0.0
    %865 = vmatpush1.msra.mxu0 0.0
    %866 = vmatprep.subr.mxu0 0.0
    %867 = vmatpush1.msra.mxu0 0.0
    %868 = vmatprep.subr.mxu0 0.0
    %869 = vmatpush1.msra.mxu0 0.0
    %870 = vmatprep.subr.mxu0 0.0
    %871 = vmatpush1.msra.mxu0 0.0
    %872 = vmatprep.subr.mxu0 0.0
    %873 = vmatpush1.msra.mxu0 0.0
    %874 = vmatprep.subr.mxu0 0.0
    %875 = vmatpush1.msra.mxu0 0.0
    %876 = vmatprep.subr.mxu0 0.0
    %877 = vmatpush1.msra.mxu0 0.0
    %878 = vmatprep.subr.mxu0 0.0
    %879 = vmatpush1.msra.mxu0 0.0
    %880 = vmatprep.subr.mxu0 0.0
    %881 = vmatpush1.msra.mxu0 0.0
    %882 = vmatprep.subr.mxu0 0.0
    %883 = vmatpush1.msra.mxu0 0.0
    %884 = vmatprep.subr.mxu0 0.0
    %885 = vmatpush1.msra.mxu0 0.0
    %886 = vmatprep.subr.mxu0 0.0
    %887 = vmatpush1.msra.mxu0 0.0
    %888 = vmatprep.subr.mxu0 0.0
    %889 = vmatpush1.msra.mxu0 0.0
    %890 = vmatprep.subr.mxu0 0.0
    %891 = vmatpush1.msra.mxu0 0.0
    %892 = vmatprep.subr.mxu0 0.0
    %893 = vmatpush1.msra.mxu0 0.0
    %894 = vmatprep.subr.mxu0 0.0
    %895 = vmatpush1.msra.mxu0 0.0
    %896 = vmatprep.subr.mxu0 0.0
    %897 = vmatpush1.msra.mxu0 0.0
    %898 = vmatprep.subr.mxu0 0.0
    %899 = vmatpush1.msra.mxu0 0.0
    %900 = vmatprep.subr.mxu0 0.0
    %901 = vmatpush1.msra.mxu0 0.0
    %902 = vmatprep.mubr.f32.mxu0 0.0
    %903 = vmatmul.mubr.f32.gmra.mrb[0].mxu0 %v836
    %v904 = vpop.f32.mrb[0].mxu0
    %v905 = vadd.f32 0.0, %v904
    %v906 = vpop.f32.mrb[0].mxu0
    %907 = vdwg.mxu0
    %v908 = vadd.f32 %v834, %v905
    %v909 = vmul.f32 %v908, 0.5
    %v910 = vtanh.pop %v909
    %v911 = vmul.f32 %v910, 0.5
    %v912 = vadd.f32 %v911, 0.5
    %v913 = vtanh.pop %v908
    %v914 = vmul.f32 %v912, 0.0
    %916 = vrot.lane.b32.xlu0 %v913, 80
    %v917 = vpop.permute.xlu0 %916
    %v919 = vmul.f32 %v912, %v917
    %921 = vrot.lane.b32.xlu0 %v919, 16
    %v922 = vpop.permute.xlu0 %921
    %v924 = vadd.f32 %v914, %v922
    %v925 = vtanh.pop %v924
    %927 = vrot.lane.b32.xlu0 %v925, 16
    %v928 = vpop.permute.xlu0 %927
    %v930 = vmul.f32 %v912, %v928
    %vm931 = vcmp.gt.s32.totalorder %v826, 0
    %v932 = vsel %vm931, 1, 0
    %933 = vset.pattern.permute.xlu0 0
    %934 = vperm.xlu0 %933, %v932
    %v935 = vpop.permute.xlu0 %934
    %vm936 = vcmp.eq.s32.totalorder %v935, 1
    %v937 = vsel %vm936, %v930, 0.0
    %v938 = vsel %vm936, %v924, 0.0
    %v939 = vadd.f32 %v937, 0.0
    %v940 = vld [vmem:[#allocation2 + $0x2] sm:$0x3]
    %942 = vrot.lane.b32.xlu0 %v937, 96
    %v943 = vpop.permute.xlu0 %942
    %v944 = vsel %vm399, %v943, 0
    %946 = vmatprep.subr.mxu0 0.0
    %947 = vmatpush1.msra.mxu0 %v830
    %948 = vmatprep.subr.mxu0 0.0
    %949 = vmatpush1.msra.mxu0 %v831
    %950 = vmatprep.subr.mxu0 0.0
    %951 = vmatpush1.msra.mxu0 0.0
    %952 = vmatprep.subr.mxu0 0.0
    %953 = vmatpush1.msra.mxu0 0.0
    %954 = vmatprep.subr.mxu0 0.0
    %955 = vmatpush1.msra.mxu0 0.0
    %956 = vmatprep.subr.mxu0 0.0
    %957 = vmatpush1.msra.mxu0 0.0
    %958 = vmatprep.subr.mxu0 0.0
    %959 = vmatpush1.msra.mxu0 0.0
    %960 = vmatprep.subr.mxu0 0.0
    %961 = vmatpush1.msra.mxu0 0.0
    %962 = vmatprep.subr.mxu0 0.0
    %963 = vmatpush1.msra.mxu0 0.0
    %964 = vmatprep.subr.mxu0 0.0
    %965 = vmatpush1.msra.mxu0 0.0
    %966 = vmatprep.subr.mxu0 0.0
    %967 = vmatpush1.msra.mxu0 0.0
    %968 = vmatprep.subr.mxu0 0.0
    %969 = vmatpush1.msra.mxu0 0.0
    %970 = vmatprep.subr.mxu0 0.0
    %971 = vmatpush1.msra.mxu0 0.0
    %972 = vmatprep.subr.mxu0 0.0
    %973 = vmatpush1.msra.mxu0 0.0
    %974 = vmatprep.subr.mxu0 0.0
    %975 = vmatpush1.msra.mxu0 0.0
    %976 = vmatprep.subr.mxu0 0.0
    %977 = vmatpush1.msra.mxu0 0.0
    %978 = vmatprep.subr.mxu0 0.0
    %979 = vmatpush1.msra.mxu0 0.0
    %980 = vmatprep.subr.mxu0 0.0
    %981 = vmatpush1.msra.mxu0 0.0
    %982 = vmatprep.subr.mxu0 0.0
    %983 = vmatpush1.msra.mxu0 0.0
    %984 = vmatprep.subr.mxu0 0.0
    %985 = vmatpush1.msra.mxu0 0.0
    %986 = vmatprep.subr.mxu0 0.0
    %987 = vmatpush1.msra.mxu0 0.0
    %988 = vmatprep.subr.mxu0 0.0
    %989 = vmatpush1.msra.mxu0 0.0
    %990 = vmatprep.subr.mxu0 0.0
    %991 = vmatpush1.msra.mxu0 0.0
    %992 = vmatprep.subr.mxu0 0.0
    %993 = vmatpush1.msra.mxu0 0.0
    %994 = vmatprep.subr.mxu0 0.0
    %995 = vmatpush1.msra.mxu0 0.0
    %996 = vmatprep.subr.mxu0 0.0
    %997 = vmatpush1.msra.mxu0 0.0
    %998 = vmatprep.subr.mxu0 0.0
    %999 = vmatpush1.msra.mxu0 0.0
    %1000 = vmatprep.subr.mxu0 0.0
    %1001 = vmatpush1.msra.mxu0 0.0
    %1002 = vmatprep.subr.mxu0 0.0
    %1003 = vmatpush1.msra.mxu0 0.0
    %1004 = vmatprep.subr.mxu0 0.0
    %1005 = vmatpush1.msra.mxu0 0.0
    %1006 = vmatprep.subr.mxu0 0.0
    %1007 = vmatpush1.msra.mxu0 0.0
    %1008 = vmatprep.subr.mxu0 0.0
    %1009 = vmatpush1.msra.mxu0 0.0
    %1010 = vmatprep.mubr.f32.mxu0 0.0
    %1011 = vmatmul.mubr.f32.gmra.mrb[0].mxu0 %v944
    %v1012 = vpop.f32.mrb[0].mxu0
    %v1013 = vadd.f32 0.0, %v1012
    %v1014 = vpop.f32.mrb[0].mxu0
    %1015 = vdwg.mxu0
    %v1016 = vadd.f32 %v940, %v1013
    %v1017 = vmul.f32 %v1016, 0.5
    %v1018 = vtanh.pop %v1017
    %v1019 = vmul.f32 %v1018, 0.5
    %v1020 = vadd.f32 %v1019, 0.5
    %v1021 = vtanh.pop %v1016
    %v1022 = vmul.f32 %v1020, %v938
    %1024 = vrot.lane.b32.xlu0 %v1021, 80
    %v1025 = vpop.permute.xlu0 %1024
    %v1027 = vmul.f32 %v1020, %v1025
    %1029 = vrot.lane.b32.xlu0 %v1027, 16
    %v1030 = vpop.permute.xlu0 %1029
    %v1032 = vadd.f32 %v1022, %v1030
    %v1033 = vtanh.pop %v1032
    %1035 = vrot.lane.b32.xlu0 %v1033, 16
    %v1036 = vpop.permute.xlu0 %1035
    %v1038 = vmul.f32 %v1020, %v1036
    %vm1039 = vcmp.gt.s32.totalorder %v826, 1
    %v1040 = vsel %vm1039, 1, 0
    %1041 = vset.pattern.permute.xlu0 0
    %1042 = vperm.xlu0 %1041, %v1040
    %v1043 = vpop.permute.xlu0 %1042
    %vm1044 = vcmp.eq.s32.totalorder %v1043, 1
    %v1045 = vsel %vm1044, %v1038, %v937
    %v1046 = vsel %vm1044, %v1032, %v938
    %v1047 = vsel %vm1044, %v1038, 0.0
    %v1048 = vadd.f32 %v939, %v1047
    %v1049 = vld [vmem:[#allocation2 + $0x4] sm:$0x3]
    %1051 = vrot.lane.b32.xlu0 %v1045, 96
    %v1052 = vpop.permute.xlu0 %1051
    %v1053 = vsel %vm399, %v1052, 0
    %1055 = vmatprep.subr.mxu0 0.0
    %1056 = vmatpush1.msra.mxu0 %v830
    %1057 = vmatprep.subr.mxu0 0.0
    %1058 = vmatpush1.msra.mxu0 %v831
    %1059 = vmatprep.subr.mxu0 0.0
    %1060 = vmatpush1.msra.mxu0 0.0
    %1061 = vmatprep.subr.mxu0 0.0
    %1062 = vmatpush1.msra.mxu0 0.0
    %1063 = vmatprep.subr.mxu0 0.0
    %1064 = vmatpush1.msra.mxu0 0.0
    %1065 = vmatprep.subr.mxu0 0.0
    %1066 = vmatpush1.msra.mxu0 0.0
    %1067 = vmatprep.subr.mxu0 0.0
    %1068 = vmatpush1.msra.mxu0 0.0
    %1069 = vmatprep.subr.mxu0 0.0
    %1070 = vmatpush1.msra.mxu0 0.0
    %1071 = vmatprep.subr.mxu0 0.0
    %1072 = vmatpush1.msra.mxu0 0.0
    %1073 = vmatprep.subr.mxu0 0.0
    %1074 = vmatpush1.msra.mxu0 0.0
    %1075 = vmatprep.subr.mxu0 0.0
    %1076 = vmatpush1.msra.mxu0 0.0
    %1077 = vmatprep.subr.mxu0 0.0
    %1078 = vmatpush1.msra.mxu0 0.0
    %1079 = vmatprep.subr.mxu0 0.0
    %1080 = vmatpush1.msra.mxu0 0.0
    %1081 = vmatprep.subr.mxu0 0.0
    %1082 = vmatpush1.msra.mxu0 0.0
    %1083 = vmatprep.subr.mxu0 0.0
    %1084 = vmatpush1.msra.mxu0 0.0
    %1085 = vmatprep.subr.mxu0 0.0
    %1086 = vmatpush1.msra.mxu0 0.0
    %1087 = vmatprep.subr.mxu0 0.0
    %1088 = vmatpush1.msra.mxu0 0.0
    %1089 = vmatprep.subr.mxu0 0.0
    %1090 = vmatpush1.msra.mxu0 0.0
    %1091 = vmatprep.subr.mxu0 0.0
    %1092 = vmatpush1.msra.mxu0 0.0
    %1093 = vmatprep.subr.mxu0 0.0
    %1094 = vmatpush1.msra.mxu0 0.0
    %1095 = vmatprep.subr.mxu0 0.0
    %1096 = vmatpush1.msra.mxu0 0.0
    %1097 = vmatprep.subr.mxu0 0.0
    %1098 = vmatpush1.msra.mxu0 0.0
    %1099 = vmatprep.subr.mxu0 0.0
    %1100 = vmatpush1.msra.mxu0 0.0
    %1101 = vmatprep.subr.mxu0 0.0
    %1102 = vmatpush1.msra.mxu0 0.0
    %1103 = vmatprep.subr.mxu0 0.0
    %1104 = vmatpush1.msra.mxu0 0.0
    %1105 = vmatprep.subr.mxu0 0.0
    %1106 = vmatpush1.msra.mxu0 0.0
    %1107 = vmatprep.subr.mxu0 0.0
    %1108 = vmatpush1.msra.mxu0 0.0
    %1109 = vmatprep.subr.mxu0 0.0
    %1110 = vmatpush1.msra.mxu0 0.0
    %1111 = vmatprep.subr.mxu0 0.0
    %1112 = vmatpush1.msra.mxu0 0.0
    %1113 = vmatprep.subr.mxu0 0.0
    %1114 = vmatpush1.msra.mxu0 0.0
    %1115 = vmatprep.subr.mxu0 0.0
    %1116 = vmatpush1.msra.mxu0 0.0
    %1117 = vmatprep.subr.mxu0 0.0
    %1118 = vmatpush1.msra.mxu0 0.0
    %1119 = vmatprep.mubr.f32.mxu0 0.0
    %1120 = vmatmul.mubr.f32.gmra.mrb[0].mxu0 %v1053
    %v1121 = vpop.f32.mrb[0].mxu0
    %v1122 = vadd.f32 0.0, %v1121
    %v1123 = vpop.f32.mrb[0].mxu0
    %1124 = vdwg.mxu0
    %v1125 = vadd.f32 %v1049, %v1122
    %v1126 = vmul.f32 %v1125, 0.5
    %v1127 = vtanh.pop %v1126
    %v1128 = vmul.f32 %v1127, 0.5
    %v1129 = vadd.f32 %v1128, 0.5
    %v1130 = vtanh.pop %v1125
    %v1131 = vmul.f32 %v1129, %v1046
    %1133 = vrot.lane.b32.xlu0 %v1130, 80
    %v1134 = vpop.permute.xlu0 %1133
    %v1136 = vmul.f32 %v1129, %v1134
    %1138 = vrot.lane.b32.xlu0 %v1136, 16
    %v1139 = vpop.permute.xlu0 %1138
    %v1141 = vadd.f32 %v1131, %v1139
    %v1142 = vtanh.pop %v1141
    %1144 = vrot.lane.b32.xlu0 %v1142, 16
    %v1145 = vpop.permute.xlu0 %1144
    %v1147 = vmul.f32 %v1129, %v1145
    %vm1148 = vcmp.gt.s32.totalorder %v826, 2
    %v1149 = vsel %vm1148, 1, 0
    %1150 = vset.pattern.permute.xlu0 0
    %1151 = vperm.xlu0 %1150, %v1149
    %v1152 = vpop.permute.xlu0 %1151
    %vm1153 = vcmp.eq.s32.totalorder %v1152, 1
    %v1154 = vsel %vm1153, %v1147, %v1045
    %v1155 = vsel %vm1153, %v1141, %v1046
    %v1156 = vsel %vm1153, %v1147, 0.0
    %v1157 = vadd.f32 %v1048, %v1156
    %v1158 = vld [vmem:[#allocation2 + $0x6] sm:$0x3]
    %1160 = vrot.lane.b32.xlu0 %v1154, 96
    %v1161 = vpop.permute.xlu0 %1160
    %v1162 = vsel %vm399, %v1161, 0
    %1164 = vmatprep.subr.mxu0 0.0
    %1165 = vmatpush1.msra.mxu0 %v830
    %1166 = vmatprep.subr.mxu0 0.0
    %1167 = vmatpush1.msra.mxu0 %v831
    %1168 = vmatprep.subr.mxu0 0.0
    %1169 = vmatpush1.msra.mxu0 0.0
    %1170 = vmatprep.subr.mxu0 0.0
    %1171 = vmatpush1.msra.mxu0 0.0
    %1172 = vmatprep.subr.mxu0 0.0
    %1173 = vmatpush1.msra.mxu0 0.0
    %1174 = vmatprep.subr.mxu0 0.0
    %1175 = vmatpush1.msra.mxu0 0.0
    %1176 = vmatprep.subr.mxu0 0.0
    %1177 = vmatpush1.msra.mxu0 0.0
    %1178 = vmatprep.subr.mxu0 0.0
    %1179 = vmatpush1.msra.mxu0 0.0
    %1180 = vmatprep.subr.mxu0 0.0
    %1181 = vmatpush1.msra.mxu0 0.0
    %1182 = vmatprep.subr.mxu0 0.0
    %1183 = vmatpush1.msra.mxu0 0.0
    %1184 = vmatprep.subr.mxu0 0.0
    %1185 = vmatpush1.msra.mxu0 0.0
    %1186 = vmatprep.subr.mxu0 0.0
    %1187 = vmatpush1.msra.mxu0 0.0
    %1188 = vmatprep.subr.mxu0 0.0
    %1189 = vmatpush1.msra.mxu0 0.0
    %1190 = vmatprep.subr.mxu0 0.0
    %1191 = vmatpush1.msra.mxu0 0.0
    %1192 = vmatprep.subr.mxu0 0.0
    %1193 = vmatpush1.msra.mxu0 0.0
    %1194 = vmatprep.subr.mxu0 0.0
    %1195 = vmatpush1.msra.mxu0 0.0
    %1196 = vmatprep.subr.mxu0 0.0
    %1197 = vmatpush1.msra.mxu0 0.0
    %1198 = vmatprep.subr.mxu0 0.0
    %1199 = vmatpush1.msra.mxu0 0.0
    %1200 = vmatprep.subr.mxu0 0.0
    %1201 = vmatpush1.msra.mxu0 0.0
    %1202 = vmatprep.subr.mxu0 0.0
    %1203 = vmatpush1.msra.mxu0 0.0
    %1204 = vmatprep.subr.mxu0 0.0
    %1205 = vmatpush1.msra.mxu0 0.0
    %1206 = vmatprep.subr.mxu0 0.0
    %1207 = vmatpush1.msra.mxu0 0.0
    %1208 = vmatprep.subr.mxu0 0.0
    %1209 = vmatpush1.msra.mxu0 0.0
    %1210 = vmatprep.subr.mxu0 0.0
    %1211 = vmatpush1.msra.mxu0 0.0
    %1212 = vmatprep.subr.mxu0 0.0
    %1213 = vmatpush1.msra.mxu0 0.0
    %1214 = vmatprep.subr.mxu0 0.0
    %1215 = vmatpush1.msra.mxu0 0.0
    %1216 = vmatprep.subr.mxu0 0.0
    %1217 = vmatpush1.msra.mxu0 0.0
    %1218 = vmatprep.subr.mxu0 0.0
    %1219 = vmatpush1.msra.mxu0 0.0
    %1220 = vmatprep.subr.mxu0 0.0
    %1221 = vmatpush1.msra.mxu0 0.0
    %1222 = vmatprep.subr.mxu0 0.0
    %1223 = vmatpush1.msra.mxu0 0.0
    %1224 = vmatprep.subr.mxu0 0.0
    %1225 = vmatpush1.msra.mxu0 0.0
    %1226 = vmatprep.subr.mxu0 0.0
    %1227 = vmatpush1.msra.mxu0 0.0
    %1228 = vmatprep.mubr.f32.mxu0 0.0
    %1229 = vmatmul.mubr.f32.gmra.mrb[0].mxu0 %v1162
    %v1230 = vpop.f32.mrb[0].mxu0
    %v1231 = vadd.f32 0.0, %v1230
    %v1232 = vpop.f32.mrb[0].mxu0
    %1233 = vdwg.mxu0
    %v1234 = vadd.f32 %v1158, %v1231
    %v1235 = vmul.f32 %v1234, 0.5
    %v1236 = vtanh.pop %v1235
    %v1237 = vmul.f32 %v1236, 0.5
    %v1238 = vadd.f32 %v1237, 0.5
    %v1239 = vtanh.pop %v1234
    %v1240 = vmul.f32 %v1238, %v1155
    %1242 = vrot.lane.b32.xlu0 %v1239, 80
    %v1243 = vpop.permute.xlu0 %1242
    %v1245 = vmul.f32 %v1238, %v1243
    %1247 = vrot.lane.b32.xlu0 %v1245, 16
    %v1248 = vpop.permute.xlu0 %1247
    %v1250 = vadd.f32 %v1240, %v1248
    %v1251 = vtanh.pop %v1250
    %1253 = vrot.lane.b32.xlu0 %v1251, 16
    %v1254 = vpop.permute.xlu0 %1253
    %v1256 = vmul.f32 %v1238, %v1254
    %vm1257 = vcmp.gt.s32.totalorder %v826, 3
    %v1258 = vsel %vm1257, 1, 0
    %1259 = vset.pattern.permute.xlu0 0
    %1260 = vperm.xlu0 %1259, %v1258
    %v1261 = vpop.permute.xlu0 %1260
    %vm1262 = vcmp.eq.s32.totalorder %v1261, 1
    %v1263 = vsel %vm1262, %v1256, %v1154
    %v1264 = vsel %vm1262, %v1250, %v1155
    %v1265 = vsel %vm1262, %v1256, 0.0
    %v1266 = vadd.f32 %v1157, %v1265
    %v1267 = vld [vmem:[#allocation2 + $0x8] sm:$0x3]
    %1269 = vrot.lane.b32.xlu0 %v1263, 96
    %v1270 = vpop.permute.xlu0 %1269
    %v1271 = vsel %vm399, %v1270, 0
    %1273 = vmatprep.subr.mxu0 0.0
    %1274 = vmatpush1.msra.mxu0 %v830
    %1275 = vmatprep.subr.mxu0 0.0
    %1276 = vmatpush1.msra.mxu0 %v831
    %1277 = vmatprep.subr.mxu0 0.0
    %1278 = vmatpush1.msra.mxu0 0.0
    %1279 = vmatprep.subr.mxu0 0.0
    %1280 = vmatpush1.msra.mxu0 0.0
    %1281 = vmatprep.subr.mxu0 0.0
    %1282 = vmatpush1.msra.mxu0 0.0
    %1283 = vmatprep.subr.mxu0 0.0
    %1284 = vmatpush1.msra.mxu0 0.0
    %1285 = vmatprep.subr.mxu0 0.0
    %1286 = vmatpush1.msra.mxu0 0.0
    %1287 = vmatprep.subr.mxu0 0.0
    %1288 = vmatpush1.msra.mxu0 0.0
    %1289 = vmatprep.subr.mxu0 0.0
    %1290 = vmatpush1.msra.mxu0 0.0
    %1291 = vmatprep.subr.mxu0 0.0
    %1292 = vmatpush1.msra.mxu0 0.0
    %1293 = vmatprep.subr.mxu0 0.0
    %1294 = vmatpush1.msra.mxu0 0.0
    %1295 = vmatprep.subr.mxu0 0.0
    %1296 = vmatpush1.msra.mxu0 0.0
    %1297 = vmatprep.subr.mxu0 0.0
    %1298 = vmatpush1.msra.mxu0 0.0
    %1299 = vmatprep.subr.mxu0 0.0
    %1300 = vmatpush1.msra.mxu0 0.0
    %1301 = vmatprep.subr.mxu0 0.0
    %1302 = vmatpush1.msra.mxu0 0.0
    %1303 = vmatprep.subr.mxu0 0.0
    %1304 = vmatpush1.msra.mxu0 0.0
    %1305 = vmatprep.subr.mxu0 0.0
    %1306 = vmatpush1.msra.mxu0 0.0
    %1307 = vmatprep.subr.mxu0 0.0
    %1308 = vmatpush1.msra.mxu0 0.0
    %1309 = vmatprep.subr.mxu0 0.0
    %1310 = vmatpush1.msra.mxu0 0.0
    %1311 = vmatprep.subr.mxu0 0.0
    %1312 = vmatpush1.msra.mxu0 0.0
    %1313 = vmatprep.subr.mxu0 0.0
    %1314 = vmatpush1.msra.mxu0 0.0
    %1315 = vmatprep.subr.mxu0 0.0
    %1316 = vmatpush1.msra.mxu0 0.0
    %1317 = vmatprep.subr.mxu0 0.0
    %1318 = vmatpush1.msra.mxu0 0.0
    %1319 = vmatprep.subr.mxu0 0.0
    %1320 = vmatpush1.msra.mxu0 0.0
    %1321 = vmatprep.subr.mxu0 0.0
    %1322 = vmatpush1.msra.mxu0 0.0
    %1323 = vmatprep.subr.mxu0 0.0
    %1324 = vmatpush1.msra.mxu0 0.0
    %1325 = vmatprep.subr.mxu0 0.0
    %1326 = vmatpush1.msra.mxu0 0.0
    %1327 = vmatprep.subr.mxu0 0.0
    %1328 = vmatpush1.msra.mxu0 0.0
    %1329 = vmatprep.subr.mxu0 0.0
    %1330 = vmatpush1.msra.mxu0 0.0
    %1331 = vmatprep.subr.mxu0 0.0
    %1332 = vmatpush1.msra.mxu0 0.0
    %1333 = vmatprep.subr.mxu0 0.0
    %1334 = vmatpush1.msra.mxu0 0.0
    %1335 = vmatprep.subr.mxu0 0.0
    %1336 = vmatpush1.msra.mxu0 0.0
    %1337 = vmatprep.mubr.f32.mxu0 0.0
    %1338 = vmatmul.mubr.f32.gmra.mrb[0].mxu0 %v1271
    %v1339 = vpop.f32.mrb[0].mxu0
    %v1340 = vadd.f32 0.0, %v1339
    %v1341 = vpop.f32.mrb[0].mxu0
    %1342 = vdwg.mxu0
    %v1343 = vadd.f32 %v1267, %v1340
    %v1344 = vmul.f32 %v1343, 0.5
    %v1345 = vtanh.pop %v1344
    %v1346 = vmul.f32 %v1345, 0.5
    %v1347 = vadd.f32 %v1346, 0.5
    %v1348 = vtanh.pop %v1343
    %v1349 = vmul.f32 %v1347, %v1264
    %1351 = vrot.lane.b32.xlu0 %v1348, 80
    %v1352 = vpop.permute.xlu0 %1351
    %v1354 = vmul.f32 %v1347, %v1352
    %1356 = vrot.lane.b32.xlu0 %v1354, 16
    %v1357 = vpop.permute.xlu0 %1356
    %v1359 = vadd.f32 %v1349, %v1357
    %v1360 = vtanh.pop %v1359
    %1362 = vrot.lane.b32.xlu0 %v1360, 16
    %v1363 = vpop.permute.xlu0 %1362
    %v1365 = vmul.f32 %v1347, %v1363
    %vm1366 = vcmp.gt.s32.totalorder %v826, 4
    %v1367 = vsel %vm1366, 1, 0
    %1368 = vset.pattern.permute.xlu0 0
    %1369 = vperm.xlu0 %1368, %v1367
    %v1370 = vpop.permute.xlu0 %1369
    %vm1371 = vcmp.eq.s32.totalorder %v1370, 1
    %v1372 = vsel %vm1371, %v1365, %v1263
    %v1373 = vsel %vm1371, %v1359, %v1264
    %v1374 = vsel %vm1371, %v1365, 0.0
    %v1375 = vadd.f32 %v1266, %v1374
    %v1376 = vld [vmem:[#allocation2 + $0xa] sm:$0x3]
    %1378 = vrot.lane.b32.xlu0 %v1372, 96
    %v1379 = vpop.permute.xlu0 %1378
    %v1380 = vsel %vm399, %v1379, 0
    %1382 = vmatprep.subr.mxu0 0.0
    %1383 = vmatpush1.msra.mxu0 %v830
    %1384 = vmatprep.subr.mxu0 0.0
    %1385 = vmatpush1.msra.mxu0 %v831
    %1386 = vmatprep.subr.mxu0 0.0
    %1387 = vmatpush1.msra.mxu0 0.0
    %1388 = vmatprep.subr.mxu0 0.0
    %1389 = vmatpush1.msra.mxu0 0.0
    %1390 = vmatprep.subr.mxu0 0.0
    %1391 = vmatpush1.msra.mxu0 0.0
    %1392 = vmatprep.subr.mxu0 0.0
    %1393 = vmatpush1.msra.mxu0 0.0
    %1394 = vmatprep.subr.mxu0 0.0
    %1395 = vmatpush1.msra.mxu0 0.0
    %1396 = vmatprep.subr.mxu0 0.0
    %1397 = vmatpush1.msra.mxu0 0.0
    %1398 = vmatprep.subr.mxu0 0.0
    %1399 = vmatpush1.msra.mxu0 0.0
    %1400 = vmatprep.subr.mxu0 0.0
    %1401 = vmatpush1.msra.mxu0 0.0
    %1402 = vmatprep.subr.mxu0 0.0
    %1403 = vmatpush1.msra.mxu0 0.0
    %1404 = vmatprep.subr.mxu0 0.0
    %1405 = vmatpush1.msra.mxu0 0.0
    %1406 = vmatprep.subr.mxu0 0.0
    %1407 = vmatpush1.msra.mxu0 0.0
    %1408 = vmatprep.subr.mxu0 0.0
    %1409 = vmatpush1.msra.mxu0 0.0
    %1410 = vmatprep.subr.mxu0 0.0
    %1411 = vmatpush1.msra.mxu0 0.0
    %1412 = vmatprep.subr.mxu0 0.0
    %1413 = vmatpush1.msra.mxu0 0.0
    %1414 = vmatprep.subr.mxu0 0.0
    %1415 = vmatpush1.msra.mxu0 0.0
    %1416 = vmatprep.subr.mxu0 0.0
    %1417 = vmatpush1.msra.mxu0 0.0
    %1418 = vmatprep.subr.mxu0 0.0
    %1419 = vmatpush1.msra.mxu0 0.0
    %1420 = vmatprep.subr.mxu0 0.0
    %1421 = vmatpush1.msra.mxu0 0.0
    %1422 = vmatprep.subr.mxu0 0.0
    %1423 = vmatpush1.msra.mxu0 0.0
    %1424 = vmatprep.subr.mxu0 0.0
    %1425 = vmatpush1.msra.mxu0 0.0
    %1426 = vmatprep.subr.mxu0 0.0
    %1427 = vmatpush1.msra.mxu0 0.0
    %1428 = vmatprep.subr.mxu0 0.0
    %1429 = vmatpush1.msra.mxu0 0.0
    %1430 = vmatprep.subr.mxu0 0.0
    %1431 = vmatpush1.msra.mxu0 0.0
    %1432 = vmatprep.subr.mxu0 0.0
    %1433 = vmatpush1.msra.mxu0 0.0
    %1434 = vmatprep.subr.mxu0 0.0
    %1435 = vmatpush1.msra.mxu0 0.0
    %1436 = vmatprep.subr.mxu0 0.0
    %1437 = vmatpush1.msra.mxu0 0.0
    %1438 = vmatprep.subr.mxu0 0.0
    %1439 = vmatpush1.msra.mxu0 0.0
    %1440 = vmatprep.subr.mxu0 0.0
    %1441 = vmatpush1.msra.mxu0 0.0
    %1442 = vmatprep.subr.mxu0 0.0
    %1443 = vmatpush1.msra.mxu0 0.0
    %1444 = vmatprep.subr.mxu0 0.0
    %1445 = vmatpush1.msra.mxu0 0.0
    %1446 = vmatprep.mubr.f32.mxu0 0.0
    %1447 = vmatmul.mubr.f32.gmra.mrb[0].mxu0 %v1380
    %v1448 = vpop.f32.mrb[0].mxu0
    %v1449 = vadd.f32 0.0, %v1448
    %v1450 = vpop.f32.mrb[0].mxu0
    %1451 = vdwg.mxu0
    %v1452 = vadd.f32 %v1376, %v1449
    %v1453 = vmul.f32 %v1452, 0.5
    %v1454 = vtanh.pop %v1453
    %v1455 = vmul.f32 %v1454, 0.5
    %v1456 = vadd.f32 %v1455, 0.5
    %v1457 = vtanh.pop %v1452
    %v1458 = vmul.f32 %v1456, %v1373
    %1460 = vrot.lane.b32.xlu0 %v1457, 80
    %v1461 = vpop.permute.xlu0 %1460
    %v1463 = vmul.f32 %v1456, %v1461
    %1465 = vrot.lane.b32.xlu0 %v1463, 16
    %v1466 = vpop.permute.xlu0 %1465
    %v1468 = vadd.f32 %v1458, %v1466
    %v1469 = vtanh.pop %v1468
    %1471 = vrot.lane.b32.xlu0 %v1469, 16
    %v1472 = vpop.permute.xlu0 %1471
    %v1474 = vmul.f32 %v1456, %v1472
    %vm1475 = vcmp.gt.s32.totalorder %v826, 5
    %v1476 = vsel %vm1475, 1, 0
    %1477 = vset.pattern.permute.xlu0 0
    %1478 = vperm.xlu0 %1477, %v1476
    %v1479 = vpop.permute.xlu0 %1478
    %vm1480 = vcmp.eq.s32.totalorder %v1479, 1
    %v1481 = vsel %vm1480, %v1474, %v1372
    %v1482 = vsel %vm1480, %v1468, %v1373
    %v1483 = vsel %vm1480, %v1474, 0.0
    %v1484 = vadd.f32 %v1375, %v1483
    %v1485 = vld [vmem:[#allocation2 + $0xc] sm:$0x3]
    %1487 = vrot.lane.b32.xlu0 %v1481, 96
    %v1488 = vpop.permute.xlu0 %1487
    %v1489 = vsel %vm399, %v1488, 0
    %1491 = vmatprep.subr.mxu0 0.0
    %1492 = vmatpush1.msra.mxu0 %v830
    %1493 = vmatprep.subr.mxu0 0.0
    %1494 = vmatpush1.msra.mxu0 %v831
    %1495 = vmatprep.subr.mxu0 0.0
    %1496 = vmatpush1.msra.mxu0 0.0
    %1497 = vmatprep.subr.mxu0 0.0
    %1498 = vmatpush1.msra.mxu0 0.0
    %1499 = vmatprep.subr.mxu0 0.0
    %1500 = vmatpush1.msra.mxu0 0.0
    %1501 = vmatprep.subr.mxu0 0.0
    %1502 = vmatpush1.msra.mxu0 0.0
    %1503 = vmatprep.subr.mxu0 0.0
    %1504 = vmatpush1.msra.mxu0 0.0
    %1505 = vmatprep.subr.mxu0 0.0
    %1506 = vmatpush1.msra.mxu0 0.0
    %1507 = vmatprep.subr.mxu0 0.0
    %1508 = vmatpush1.msra.mxu0 0.0
    %1509 = vmatprep.subr.mxu0 0.0
    %1510 = vmatpush1.msra.mxu0 0.0
    %1511 = vmatprep.subr.mxu0 0.0
    %1512 = vmatpush1.msra.mxu0 0.0
    %1513 = vmatprep.subr.mxu0 0.0
    %1514 = vmatpush1.msra.mxu0 0.0
    %1515 = vmatprep.subr.mxu0 0.0
    %1516 = vmatpush1.msra.mxu0 0.0
    %1517 = vmatprep.subr.mxu0 0.0
    %1518 = vmatpush1.msra.mxu0 0.0
    %1519 = vmatprep.subr.mxu0 0.0
    %1520 = vmatpush1.msra.mxu0 0.0
    %1521 = vmatprep.subr.mxu0 0.0
    %1522 = vmatpush1.msra.mxu0 0.0
    %1523 = vmatprep.subr.mxu0 0.0
    %1524 = vmatpush1.msra.mxu0 0.0
    %1525 = vmatprep.subr.mxu0 0.0
    %1526 = vmatpush1.msra.mxu0 0.0
    %1527 = vmatprep.subr.mxu0 0.0
    %1528 = vmatpush1.msra.mxu0 0.0
    %1529 = vmatprep.subr.mxu0 0.0
    %1530 = vmatpush1.msra.mxu0 0.0
    %1531 = vmatprep.subr.mxu0 0.0
    %1532 = vmatpush1.msra.mxu0 0.0
    %1533 = vmatprep.subr.mxu0 0.0
    %1534 = vmatpush1.msra.mxu0 0.0
    %1535 = vmatprep.subr.mxu0 0.0
    %1536 = vmatpush1.msra.mxu0 0.0
    %1537 = vmatprep.subr.mxu0 0.0
    %1538 = vmatpush1.msra.mxu0 0.0
    %1539 = vmatprep.subr.mxu0 0.0
    %1540 = vmatpush1.msra.mxu0 0.0
    %1541 = vmatprep.subr.mxu0 0.0
    %1542 = vmatpush1.msra.mxu0 0.0
    %1543 = vmatprep.subr.mxu0 0.0
    %1544 = vmatpush1.msra.mxu0 0.0
    %1545 = vmatprep.subr.mxu0 0.0
    %1546 = vmatpush1.msra.mxu0 0.0
    %1547 = vmatprep.subr.mxu0 0.0
    %1548 = vmatpush1.msra.mxu0 0.0
    %1549 = vmatprep.subr.mxu0 0.0
    %1550 = vmatpush1.msra.mxu0 0.0
    %1551 = vmatprep.subr.mxu0 0.0
    %1552 = vmatpush1.msra.mxu0 0.0
    %1553 = vmatprep.subr.mxu0 0.0
    %1554 = vmatpush1.msra.mxu0 0.0
    %1555 = vmatprep.mubr.f32.mxu0 0.0
    %1556 = vmatmul.mubr.f32.gmra.mrb[0].mxu0 %v1489
    %v1557 = vpop.f32.mrb[0].mxu0
    %v1558 = vadd.f32 0.0, %v1557
    %v1559 = vpop.f32.mrb[0].mxu0
    %1560 = vdwg.mxu0
    %v1561 = vadd.f32 %v1485, %v1558
    %v1562 = vmul.f32 %v1561, 0.5
    %v1563 = vtanh.pop %v1562
    %v1564 = vmul.f32 %v1563, 0.5
    %v1565 = vadd.f32 %v1564, 0.5
    %v1566 = vtanh.pop %v1561
    %v1567 = vmul.f32 %v1565, %v1482
    %1569 = vrot.lane.b32.xlu0 %v1566, 80
    %v1570 = vpop.permute.xlu0 %1569
    %v1572 = vmul.f32 %v1565, %v1570
    %1574 = vrot.lane.b32.xlu0 %v1572, 16
    %v1575 = vpop.permute.xlu0 %1574
    %v1577 = vadd.f32 %v1567, %v1575
    %v1578 = vtanh.pop %v1577
    %1580 = vrot.lane.b32.xlu0 %v1578, 16
    %v1581 = vpop.permute.xlu0 %1580
    %v1583 = vmul.f32 %v1565, %v1581
    %vm1584 = vcmp.gt.s32.totalorder %v826, 6
    %v1585 = vsel %vm1584, 1, 0
    %1586 = vset.pattern.permute.xlu0 0
    %1587 = vperm.xlu0 %1586, %v1585
    %v1588 = vpop.permute.xlu0 %1587
    %vm1589 = vcmp.eq.s32.totalorder %v1588, 1
    %v1590 = vsel %vm1589, %v1583, %v1481
    %v1591 = vsel %vm1589, %v1577, %v1482
    %v1592 = vsel %vm1589, %v1583, 0.0
    %v1593 = vadd.f32 %v1484, %v1592
    %v1594 = vld [vmem:[#allocation2 + $0xe] sm:$0x3]
    %1596 = vrot.lane.b32.xlu0 %v1590, 96
    %v1597 = vpop.permute.xlu0 %1596
    %v1598 = vsel %vm399, %v1597, 0
    %1600 = vmatprep.subr.mxu0 0.0
    %1601 = vmatpush1.msra.mxu0 %v830
    %1602 = vmatprep.subr.mxu0 0.0
    %1603 = vmatpush1.msra.mxu0 %v831
    %1604 = vmatprep.subr.mxu0 0.0
    %1605 = vmatpush1.msra.mxu0 0.0
    %1606 = vmatprep.subr.mxu0 0.0
    %1607 = vmatpush1.msra.mxu0 0.0
    %1608 = vmatprep.subr.mxu0 0.0
    %1609 = vmatpush1.msra.mxu0 0.0
    %1610 = vmatprep.subr.mxu0 0.0
    %1611 = vmatpush1.msra.mxu0 0.0
    %1612 = vmatprep.subr.mxu0 0.0
    %1613 = vmatpush1.msra.mxu0 0.0
    %1614 = vmatprep.subr.mxu0 0.0
    %1615 = vmatpush1.msra.mxu0 0.0
    %1616 = vmatprep.subr.mxu0 0.0
    %1617 = vmatpush1.msra.mxu0 0.0
    %1618 = vmatprep.subr.mxu0 0.0
    %1619 = vmatpush1.msra.mxu0 0.0
    %1620 = vmatprep.subr.mxu0 0.0
    %1621 = vmatpush1.msra.mxu0 0.0
    %1622 = vmatprep.subr.mxu0 0.0
    %1623 = vmatpush1.msra.mxu0 0.0
    %1624 = vmatprep.subr.mxu0 0.0
    %1625 = vmatpush1.msra.mxu0 0.0
    %1626 = vmatprep.subr.mxu0 0.0
    %1627 = vmatpush1.msra.mxu0 0.0
    %1628 = vmatprep.subr.mxu0 0.0
    %1629 = vmatpush1.msra.mxu0 0.0
    %1630 = vmatprep.subr.mxu0 0.0
    %1631 = vmatpush1.msra.mxu0 0.0
    %1632 = vmatprep.subr.mxu0 0.0
    %1633 = vmatpush1.msra.mxu0 0.0
    %1634 = vmatprep.subr.mxu0 0.0
    %1635 = vmatpush1.msra.mxu0 0.0
    %1636 = vmatprep.subr.mxu0 0.0
    %1637 = vmatpush1.msra.mxu0 0.0
    %1638 = vmatprep.subr.mxu0 0.0
    %1639 = vmatpush1.msra.mxu0 0.0
    %1640 = vmatprep.subr.mxu0 0.0
    %1641 = vmatpush1.msra.mxu0 0.0
    %1642 = vmatprep.subr.mxu0 0.0
    %1643 = vmatpush1.msra.mxu0 0.0
    %1644 = vmatprep.subr.mxu0 0.0
    %1645 = vmatpush1.msra.mxu0 0.0
    %1646 = vmatprep.subr.mxu0 0.0
    %1647 = vmatpush1.msra.mxu0 0.0
    %1648 = vmatprep.subr.mxu0 0.0
    %1649 = vmatpush1.msra.mxu0 0.0
    %1650 = vmatprep.subr.mxu0 0.0
    %1651 = vmatpush1.msra.mxu0 0.0
    %1652 = vmatprep.subr.mxu0 0.0
    %1653 = vmatpush1.msra.mxu0 0.0
    %1654 = vmatprep.subr.mxu0 0.0
    %1655 = vmatpush1.msra.mxu0 0.0
    %1656 = vmatprep.subr.mxu0 0.0
    %1657 = vmatpush1.msra.mxu0 0.0
    %1658 = vmatprep.subr.mxu0 0.0
    %1659 = vmatpush1.msra.mxu0 0.0
    %1660 = vmatprep.subr.mxu0 0.0
    %1661 = vmatpush1.msra.mxu0 0.0
    %1662 = vmatprep.subr.mxu0 0.0
    %1663 = vmatpush1.msra.mxu0 0.0
    %1664 = vmatprep.mubr.f32.mxu0 0.0
    %1665 = vmatmul.mubr.f32.gmra.mrb[0].mxu0 %v1598
    %v1666 = vpop.f32.mrb[0].mxu0
    %v1667 = vadd.f32 0.0, %v1666
    %v1668 = vpop.f32.mrb[0].mxu0
    %1669 = vdwg.mxu0
    %v1670 = vadd.f32 %v1594, %v1667
    %v1671 = vmul.f32 %v1670, 0.5
    %v1672 = vtanh.pop %v1671
    %v1673 = vmul.f32 %v1672, 0.5
    %v1674 = vadd.f32 %v1673, 0.5
    %v1675 = vtanh.pop %v1670
    %v1676 = vmul.f32 %v1674, %v1591
    %1678 = vrot.lane.b32.xlu0 %v1675, 80
    %v1679 = vpop.permute.xlu0 %1678
    %v1681 = vmul.f32 %v1674, %v1679
    %1683 = vrot.lane.b32.xlu0 %v1681, 16
    %v1684 = vpop.permute.xlu0 %1683
    %v1686 = vadd.f32 %v1676, %v1684
    %v1687 = vtanh.pop %v1686
    %1689 = vrot.lane.b32.xlu0 %v1687, 16
    %v1690 = vpop.permute.xlu0 %1689
    %v1692 = vmul.f32 %v1674, %v1690
    %vm1693 = vcmp.gt.s32.totalorder %v826, 7
    %v1694 = vsel %vm1693, 1, 0
    %1695 = vset.pattern.permute.xlu0 0
    %1696 = vperm.xlu0 %1695, %v1694
    %v1697 = vpop.permute.xlu0 %1696
    %vm1698 = vcmp.eq.s32.totalorder %v1697, 1
    %v1699 = vsel %vm1698, %v1692, 0.0
    %v1700 = vadd.f32 %v1593, %v1699
    %1701 = vmatprep.subr.mxu0 0.0
    %1702 = vmatpush1.msra.mxu0 %v832
    %1703 = vmatprep.subr.mxu0 0.0
    %1704 = vmatpush1.msra.mxu0 %v833
    %1705 = vmatprep.subr.mxu0 0.0
    %1706 = vmatpush1.msra.mxu0 0.0
    %1707 = vmatprep.subr.mxu0 0.0
    %1708 = vmatpush1.msra.mxu0 0.0
    %1709 = vmatprep.subr.mxu0 0.0
    %1710 = vmatpush1.msra.mxu0 0.0
    %1711 = vmatprep.subr.mxu0 0.0
    %1712 = vmatpush1.msra.mxu0 0.0
    %1713 = vmatprep.subr.mxu0 0.0
    %1714 = vmatpush1.msra.mxu0 0.0
    %1715 = vmatprep.subr.mxu0 0.0
    %1716 = vmatpush1.msra.mxu0 0.0
    %1717 = vmatprep.subr.mxu0 0.0
    %1718 = vmatpush1.msra.mxu0 0.0
    %1719 = vmatprep.subr.mxu0 0.0
    %1720 = vmatpush1.msra.mxu0 0.0
    %1721 = vmatprep.subr.mxu0 0.0
    %1722 = vmatpush1.msra.mxu0 0.0
    %1723 = vmatprep.subr.mxu0 0.0
    %1724 = vmatpush1.msra.mxu0 0.0
    %1725 = vmatprep.subr.mxu0 0.0
    %1726 = vmatpush1.msra.mxu0 0.0
    %1727 = vmatprep.subr.mxu0 0.0
    %1728 = vmatpush1.msra.mxu0 0.0
    %1729 = vmatprep.subr.mxu0 0.0
    %1730 = vmatpush1.msra.mxu0 0.0
    %1731 = vmatprep.subr.mxu0 0.0
    %1732 = vmatpush1.msra.mxu0 0.0
    %1733 = vmatprep.subr.mxu0 0.0
    %1734 = vmatpush1.msra.mxu0 0.0
    %1735 = vmatprep.subr.mxu0 0.0
    %1736 = vmatpush1.msra.mxu0 0.0
    %1737 = vmatprep.subr.mxu0 0.0
    %1738 = vmatpush1.msra.mxu0 0.0
    %1739 = vmatprep.subr.mxu0 0.0
    %1740 = vmatpush1.msra.mxu0 0.0
    %1741 = vmatprep.subr.mxu0 0.0
    %1742 = vmatpush1.msra.mxu0 0.0
    %1743 = vmatprep.subr.mxu0 0.0
    %1744 = vmatpush1.msra.mxu0 0.0
    %1745 = vmatprep.subr.mxu0 0.0
    %1746 = vmatpush1.msra.mxu0 0.0
    %1747 = vmatprep.subr.mxu0 0.0
    %1748 = vmatpush1.msra.mxu0 0.0
    %1749 = vmatprep.subr.mxu0 0.0
    %1750 = vmatpush1.msra.mxu0 0.0
    %1751 = vmatprep.subr.mxu0 0.0
    %1752 = vmatpush1.msra.mxu0 0.0
    %1753 = vmatprep.subr.mxu0 0.0
    %1754 = vmatpush1.msra.mxu0 0.0
    %1755 = vmatprep.subr.mxu0 0.0
    %1756 = vmatpush1.msra.mxu0 0.0
    %1757 = vmatprep.subr.mxu0 0.0
    %1758 = vmatpush1.msra.mxu0 0.0
    %1759 = vmatprep.subr.mxu0 0.0
    %1760 = vmatpush1.msra.mxu0 0.0
    %1761 = vmatprep.subr.mxu0 0.0
    %1762 = vmatpush1.msra.mxu0 0.0
    %1763 = vmatprep.subr.mxu0 0.0
    %1764 = vmatpush1.msra.mxu0 0.0
    %1765 = vmatprep.mubr.f32.mxu0 0.0
    %1766 = vmatmul.mubr.f32.gmra.mrb[0].mxu0 %v836
    %v1767 = vpop.f32.mrb[0].mxu0
    %v1768 = vadd.f32 0.0, %v1767
    %v1769 = vpop.f32.mrb[0].mxu0
    %1770 = vdwg.mxu0
    %1772 = vrot.lane.b32.xlu0 %v1768, 64
    %v1773 = vpop.permute.xlu0 %1772
    %v1775 = vadd.f32 %v1594, %v1773
    %v1776 = vmul.f32 %v1775, 0.5
    %v1777 = vtanh.pop %v1776
    %v1778 = vmul.f32 %v1777, 0.5
    %v1779 = vadd.f32 %v1778, 0.5
    %v1780 = vtanh.pop %v1775
    %v1781 = vmul.f32 %v1779, 0.0
    %1783 = vrot.lane.b32.xlu0 %v1780, 80
    %v1784 = vpop.permute.xlu0 %1783
    %v1786 = vmul.f32 %v1779, %v1784
    %1788 = vrot.lane.b32.xlu0 %v1786, 16
    %v1789 = vpop.permute.xlu0 %1788
    %v1791 = vadd.f32 %v1781, %v1789
    %v1792 = vtanh.pop %v1791
    %1794 = vrot.lane.b32.xlu0 %v1792, 16
    %v1795 = vpop.permute.xlu0 %1794
    %v1797 = vmul.f32 %v1779, %v1795
    %v1798 = vsel %vm1698, %v1797, 0.0
    %v1799 = vsel %vm1698, %v1791, 0.0
    %v1800 = vadd.f32 %v1798, 0.0
    %1802 = vrot.lane.b32.xlu0 %v1798, 32
    %v1803 = vpop.permute.xlu0 %1802
    %v1804 = vsel %vm399, %v1803, 0
    %1806 = vmatprep.subr.mxu0 0.0
    %1807 = vmatpush1.msra.mxu0 %v832
    %1808 = vmatprep.subr.mxu0 0.0
    %1809 = vmatpush1.msra.mxu0 %v833
    %1810 = vmatprep.subr.mxu0 0.0
    %1811 = vmatpush1.msra.mxu0 0.0
    %1812 = vmatprep.subr.mxu0 0.0
    %1813 = vmatpush1.msra.mxu0 0.0
    %1814 = vmatprep.subr.mxu0 0.0
    %1815 = vmatpush1.msra.mxu0 0.0
    %1816 = vmatprep.subr.mxu0 0.0
    %1817 = vmatpush1.msra.mxu0 0.0
    %1818 = vmatprep.subr.mxu0 0.0
    %1819 = vmatpush1.msra.mxu0 0.0
    %1820 = vmatprep.subr.mxu0 0.0
    %1821 = vmatpush1.msra.mxu0 0.0
    %1822 = vmatprep.subr.mxu0 0.0
    %1823 = vmatpush1.msra.mxu0 0.0
    %1824 = vmatprep.subr.mxu0 0.0
    %1825 = vmatpush1.msra.mxu0 0.0
    %1826 = vmatprep.subr.mxu0 0.0
    %1827 = vmatpush1.msra.mxu0 0.0
    %1828 = vmatprep.subr.mxu0 0.0
    %1829 = vmatpush1.msra.mxu0 0.0
    %1830 = vmatprep.subr.mxu0 0.0
    %1831 = vmatpush1.msra.mxu0 0.0
    %1832 = vmatprep.subr.mxu0 0.0
    %1833 = vmatpush1.msra.mxu0 0.0
    %1834 = vmatprep.subr.mxu0 0.0
    %1835 = vmatpush1.msra.mxu0 0.0
    %1836 = vmatprep.subr.mxu0 0.0
    %1837 = vmatpush1.msra.mxu0 0.0
    %1838 = vmatprep.subr.mxu0 0.0
    %1839 = vmatpush1.msra.mxu0 0.0
    %1840 = vmatprep.subr.mxu0 0.0
    %1841 = vmatpush1.msra.mxu0 0.0
    %1842 = vmatprep.subr.mxu0 0.0
    %1843 = vmatpush1.msra.mxu0 0.0
    %1844 = vmatprep.subr.mxu0 0.0
    %1845 = vmatpush1.msra.mxu0 0.0
    %1846 = vmatprep.subr.mxu0 0.0
    %1847 = vmatpush1.msra.mxu0 0.0
    %1848 = vmatprep.subr.mxu0 0.0
    %1849 = vmatpush1.msra.mxu0 0.0
    %1850 = vmatprep.subr.mxu0 0.0
    %1851 = vmatpush1.msra.mxu0 0.0
    %1852 = vmatprep.subr.mxu0 0.0
    %1853 = vmatpush1.msra.mxu0 0.0
    %1854 = vmatprep.subr.mxu0 0.0
    %1855 = vmatpush1.msra.mxu0 0.0
    %1856 = vmatprep.subr.mxu0 0.0
    %1857 = vmatpush1.msra.mxu0 0.0
    %1858 = vmatprep.subr.mxu0 0.0
    %1859 = vmatpush1.msra.mxu0 0.0
    %1860 = vmatprep.subr.mxu0 0.0
    %1861 = vmatpush1.msra.mxu0 0.0
    %1862 = vmatprep.subr.mxu0 0.0
    %1863 = vmatpush1.msra.mxu0 0.0
    %1864 = vmatprep.subr.mxu0 0.0
    %1865 = vmatpush1.msra.mxu0 0.0
    %1866 = vmatprep.subr.mxu0 0.0
    %1867 = vmatpush1.msra.mxu0 0.0
    %1868 = vmatprep.subr.mxu0 0.0
    %1869 = vmatpush1.msra.mxu0 0.0
    %1870 = vmatprep.mubr.f32.mxu0 0.0
    %1871 = vmatmul.mubr.f32.gmra.mrb[0].mxu0 %v1804
    %v1872 = vpop.f32.mrb[0].mxu0
    %v1873 = vadd.f32 0.0, %v1872
    %v1874 = vpop.f32.mrb[0].mxu0
    %1875 = vdwg.mxu0
    %1877 = vrot.lane.b32.xlu0 %v1873, 64
    %v1878 = vpop.permute.xlu0 %1877
    %v1880 = vadd.f32 %v1485, %v1878
    %v1881 = vmul.f32 %v1880, 0.5
    %v1882 = vtanh.pop %v1881
    %v1883 = vmul.f32 %v1882, 0.5
    %v1884 = vadd.f32 %v1883, 0.5
    %v1885 = vtanh.pop %v1880
    %v1886 = vmul.f32 %v1884, %v1799
    %1888 = vrot.lane.b32.xlu0 %v1885, 80
    %v1889 = vpop.permute.xlu0 %1888
    %v1891 = vmul.f32 %v1884, %v1889
    %1893 = vrot.lane.b32.xlu0 %v1891, 16
    %v1894 = vpop.permute.xlu0 %1893
    %v1896 = vadd.f32 %v1886, %v1894
    %v1897 = vtanh.pop %v1896
    %1899 = vrot.lane.b32.xlu0 %v1897, 16
    %v1900 = vpop.permute.xlu0 %1899
    %v1902 = vmul.f32 %v1884, %v1900
    %v1903 = vsel %vm1589, %v1902, %v1798
    %v1904 = vsel %vm1589, %v1896, %v1799
    %v1905 = vsel %vm1589, %v1902, 0.0
    %v1906 = vadd.f32 %v1800, %v1905
    %1908 = vrot.lane.b32.xlu0 %v1903, 32
    %v1909 = vpop.permute.xlu0 %1908
    %v1910 = vsel %vm399, %v1909, 0
    %1912 = vmatprep.subr.mxu0 0.0
    %1913 = vmatpush1.msra.mxu0 %v832
    %1914 = vmatprep.subr.mxu0 0.0
    %1915 = vmatpush1.msra.mxu0 %v833
    %1916 = vmatprep.subr.mxu0 0.0
    %1917 = vmatpush1.msra.mxu0 0.0
    %1918 = vmatprep.subr.mxu0 0.0
    %1919 = vmatpush1.msra.mxu0 0.0
    %1920 = vmatprep.subr.mxu0 0.0
    %1921 = vmatpush1.msra.mxu0 0.0
    %1922 = vmatprep.subr.mxu0 0.0
    %1923 = vmatpush1.msra.mxu0 0.0
    %1924 = vmatprep.subr.mxu0 0.0
    %1925 = vmatpush1.msra.mxu0 0.0
    %1926 = vmatprep.subr.mxu0 0.0
    %1927 = vmatpush1.msra.mxu0 0.0
    %1928 = vmatprep.subr.mxu0 0.0
    %1929 = vmatpush1.msra.mxu0 0.0
    %1930 = vmatprep.subr.mxu0 0.0
    %1931 = vmatpush1.msra.mxu0 0.0
    %1932 = vmatprep.subr.mxu0 0.0
    %1933 = vmatpush1.msra.mxu0 0.0
    %1934 = vmatprep.subr.mxu0 0.0
    %1935 = vmatpush1.msra.mxu0 0.0
    %1936 = vmatprep.subr.mxu0 0.0
    %1937 = vmatpush1.msra.mxu0 0.0
    %1938 = vmatprep.subr.mxu0 0.0
    %1939 = vmatpush1.msra.mxu0 0.0
    %1940 = vmatprep.subr.mxu0 0.0
    %1941 = vmatpush1.msra.mxu0 0.0
    %1942 = vmatprep.subr.mxu0 0.0
    %1943 = vmatpush1.msra.mxu0 0.0
    %1944 = vmatprep.subr.mxu0 0.0
    %1945 = vmatpush1.msra.mxu0 0.0
    %1946 = vmatprep.subr.mxu0 0.0
    %1947 = vmatpush1.msra.mxu0 0.0
    %1948 = vmatprep.subr.mxu0 0.0
    %1949 = vmatpush1.msra.mxu0 0.0
    %1950 = vmatprep.subr.mxu0 0.0
    %1951 = vmatpush1.msra.mxu0 0.0
    %1952 = vmatprep.subr.mxu0 0.0
    %1953 = vmatpush1.msra.mxu0 0.0
    %1954 = vmatprep.subr.mxu0 0.0
    %1955 = vmatpush1.msra.mxu0 0.0
    %1956 = vmatprep.subr.mxu0 0.0
    %1957 = vmatpush1.msra.mxu0 0.0
    %1958 = vmatprep.subr.mxu0 0.0
    %1959 = vmatpush1.msra.mxu0 0.0
    %1960 = vmatprep.subr.mxu0 0.0
    %1961 = vmatpush1.msra.mxu0 0.0
    %1962 = vmatprep.subr.mxu0 0.0
    %1963 = vmatpush1.msra.mxu0 0.0
    %1964 = vmatprep.subr.mxu0 0.0
    %1965 = vmatpush1.msra.mxu0 0.0
    %1966 = vmatprep.subr.mxu0 0.0
    %1967 = vmatpush1.msra.mxu0 0.0
    %1968 = vmatprep.subr.mxu0 0.0
    %1969 = vmatpush1.msra.mxu0 0.0
    %1970 = vmatprep.subr.mxu0 0.0
    %1971 = vmatpush1.msra.mxu0 0.0
    %1972 = vmatprep.subr.mxu0 0.0
    %1973 = vmatpush1.msra.mxu0 0.0
    %1974 = vmatprep.subr.mxu0 0.0
    %1975 = vmatpush1.msra.mxu0 0.0
    %1976 = vmatprep.mubr.f32.mxu0 0.0
    %1977 = vmatmul.mubr.f32.gmra.mrb[0].mxu0 %v1910
    %v1978 = vpop.f32.mrb[0].mxu0
    %v1979 = vadd.f32 0.0, %v1978
    %v1980 = vpop.f32.mrb[0].mxu0
    %1981 = vdwg.mxu0
    %1983 = vrot.lane.b32.xlu0 %v1979, 64
    %v1984 = vpop.permute.xlu0 %1983
    %v1986 = vadd.f32 %v1376, %v1984
    %v1987 = vmul.f32 %v1986, 0.5
    %v1988 = vtanh.pop %v1987
    %v1989 = vmul.f32 %v1988, 0.5
    %v1990 = vadd.f32 %v1989, 0.5
    %v1991 = vtanh.pop %v1986
    %v1992 = vmul.f32 %v1990, %v1904
    %1994 = vrot.lane.b32.xlu0 %v1991, 80
    %v1995 = vpop.permute.xlu0 %1994
    %v1997 = vmul.f32 %v1990, %v1995
    %1999 = vrot.lane.b32.xlu0 %v1997, 16
    %v2000 = vpop.permute.xlu0 %1999
    %v2002 = vadd.f32 %v1992, %v2000
    %v2003 = vtanh.pop %v2002
    %2005 = vrot.lane.b32.xlu0 %v2003, 16
    %v2006 = vpop.permute.xlu0 %2005
    %v2008 = vmul.f32 %v1990, %v2006
    %v2009 = vsel %vm1480, %v2008, %v1903
    %v2010 = vsel %vm1480, %v2002, %v1904
    %v2011 = vsel %vm1480, %v2008, 0.0
    %v2012 = vadd.f32 %v1906, %v2011
    %2014 = vrot.lane.b32.xlu0 %v2009, 32
    %v2015 = vpop.permute.xlu0 %2014
    %v2016 = vsel %vm399, %v2015, 0
    %2018 = vmatprep.subr.mxu0 0.0
    %2019 = vmatpush1.msra.mxu0 %v832
    %2020 = vmatprep.subr.mxu0 0.0
    %2021 = vmatpush1.msra.mxu0 %v833
    %2022 = vmatprep.subr.mxu0 0.0
    %2023 = vmatpush1.msra.mxu0 0.0
    %2024 = vmatprep.subr.mxu0 0.0
    %2025 = vmatpush1.msra.mxu0 0.0
    %2026 = vmatprep.subr.mxu0 0.0
    %2027 = vmatpush1.msra.mxu0 0.0
    %2028 = vmatprep.subr.mxu0 0.0
    %2029 = vmatpush1.msra.mxu0 0.0
    %2030 = vmatprep.subr.mxu0 0.0
    %2031 = vmatpush1.msra.mxu0 0.0
    %2032 = vmatprep.subr.mxu0 0.0
    %2033 = vmatpush1.msra.mxu0 0.0
    %2034 = vmatprep.subr.mxu0 0.0
    %2035 = vmatpush1.msra.mxu0 0.0
    %2036 = vmatprep.subr.mxu0 0.0
    %2037 = vmatpush1.msra.mxu0 0.0
    %2038 = vmatprep.subr.mxu0 0.0
    %2039 = vmatpush1.msra.mxu0 0.0
    %2040 = vmatprep.subr.mxu0 0.0
    %2041 = vmatpush1.msra.mxu0 0.0
    %2042 = vmatprep.subr.mxu0 0.0
    %2043 = vmatpush1.msra.mxu0 0.0
    %2044 = vmatprep.subr.mxu0 0.0
    %2045 = vmatpush1.msra.mxu0 0.0
    %2046 = vmatprep.subr.mxu0 0.0
    %2047 = vmatpush1.msra.mxu0 0.0
    %2048 = vmatprep.subr.mxu0 0.0
    %2049 = vmatpush1.msra.mxu0 0.0
    %2050 = vmatprep.subr.mxu0 0.0
    %2051 = vmatpush1.msra.mxu0 0.0
    %2052 = vmatprep.subr.mxu0 0.0
    %2053 = vmatpush1.msra.mxu0 0.0
    %2054 = vmatprep.subr.mxu0 0.0
    %2055 = vmatpush1.msra.mxu0 0.0
    %2056 = vmatprep.subr.mxu0 0.0
    %2057 = vmatpush1.msra.mxu0 0.0
    %2058 = vmatprep.subr.mxu0 0.0
    %2059 = vmatpush1.msra.mxu0 0.0
    %2060 = vmatprep.subr.mxu0 0.0
    %2061 = vmatpush1.msra.mxu0 0.0
    %2062 = vmatprep.subr.mxu0 0.0
    %2063 = vmatpush1.msra.mxu0 0.0
    %2064 = vmatprep.subr.mxu0 0.0
    %2065 = vmatpush1.msra.mxu0 0.0
    %2066 = vmatprep.subr.mxu0 0.0
    %2067 = vmatpush1.msra.mxu0 0.0
    %2068 = vmatprep.subr.mxu0 0.0
    %2069 = vmatpush1.msra.mxu0 0.0
    %2070 = vmatprep.subr.mxu0 0.0
    %2071 = vmatpush1.msra.mxu0 0.0
    %2072 = vmatprep.subr.mxu0 0.0
    %2073 = vmatpush1.msra.mxu0 0.0
    %2074 = vmatprep.subr.mxu0 0.0
    %2075 = vmatpush1.msra.mxu0 0.0
    %2076 = vmatprep.subr.mxu0 0.0
    %2077 = vmatpush1.msra.mxu0 0.0
    %2078 = vmatprep.subr.mxu0 0.0
    %2079 = vmatpush1.msra.mxu0 0.0
    %2080 = vmatprep.subr.mxu0 0.0
    %2081 = vmatpush1.msra.mxu0 0.0
    %2082 = vmatprep.mubr.f32.mxu0 0.0
    %2083 = vmatmul.mubr.f32.gmra.mrb[0].mxu0 %v2016
    %v2084 = vpop.f32.mrb[0].mxu0
    %v2085 = vadd.f32 0.0, %v2084
    %v2086 = vpop.f32.mrb[0].mxu0
    %2087 = vdwg.mxu0
    %2089 = vrot.lane.b32.xlu0 %v2085, 64
    %v2090 = vpop.permute.xlu0 %2089
    %v2092 = vadd.f32 %v1267, %v2090
    %v2093 = vmul.f32 %v2092, 0.5
    %v2094 = vtanh.pop %v2093
    %v2095 = vmul.f32 %v2094, 0.5
    %v2096 = vadd.f32 %v2095, 0.5
    %v2097 = vtanh.pop %v2092
    %v2098 = vmul.f32 %v2096, %v2010
    %2100 = vrot.lane.b32.xlu0 %v2097, 80
    %v2101 = vpop.permute.xlu0 %2100
    %v2103 = vmul.f32 %v2096, %v2101
    %2105 = vrot.lane.b32.xlu0 %v2103, 16
    %v2106 = vpop.permute.xlu0 %2105
    %v2108 = vadd.f32 %v2098, %v2106
    %v2109 = vtanh.pop %v2108
    %2111 = vrot.lane.b32.xlu0 %v2109, 16
    %v2112 = vpop.permute.xlu0 %2111
    %v2114 = vmul.f32 %v2096, %v2112
    %v2115 = vsel %vm1371, %v2114, %v2009
    %v2116 = vsel %vm1371, %v2108, %v2010
    %v2117 = vsel %vm1371, %v2114, 0.0
    %v2118 = vadd.f32 %v2012, %v2117
    %2120 = vrot.lane.b32.xlu0 %v2115, 32
    %v2121 = vpop.permute.xlu0 %2120
    %v2122 = vsel %vm399, %v2121, 0
    %2124 = vmatprep.subr.mxu0 0.0
    %2125 = vmatpush1.msra.mxu0 %v832
    %2126 = vmatprep.subr.mxu0 0.0
    %2127 = vmatpush1.msra.mxu0 %v833
    %2128 = vmatprep.subr.mxu0 0.0
    %2129 = vmatpush1.msra.mxu0 0.0
    %2130 = vmatprep.subr.mxu0 0.0
    %2131 = vmatpush1.msra.mxu0 0.0
    %2132 = vmatprep.subr.mxu0 0.0
    %2133 = vmatpush1.msra.mxu0 0.0
    %2134 = vmatprep.subr.mxu0 0.0
    %2135 = vmatpush1.msra.mxu0 0.0
    %2136 = vmatprep.subr.mxu0 0.0
    %2137 = vmatpush1.msra.mxu0 0.0
    %2138 = vmatprep.subr.mxu0 0.0
    %2139 = vmatpush1.msra.mxu0 0.0
    %2140 = vmatprep.subr.mxu0 0.0
    %2141 = vmatpush1.msra.mxu0 0.0
    %2142 = vmatprep.subr.mxu0 0.0
    %2143 = vmatpush1.msra.mxu0 0.0
    %2144 = vmatprep.subr.mxu0 0.0
    %2145 = vmatpush1.msra.mxu0 0.0
    %2146 = vmatprep.subr.mxu0 0.0
    %2147 = vmatpush1.msra.mxu0 0.0
    %2148 = vmatprep.subr.mxu0 0.0
    %2149 = vmatpush1.msra.mxu0 0.0
    %2150 = vmatprep.subr.mxu0 0.0
    %2151 = vmatpush1.msra.mxu0 0.0
    %2152 = vmatprep.subr.mxu0 0.0
    %2153 = vmatpush1.msra.mxu0 0.0
    %2154 = vmatprep.subr.mxu0 0.0
    %2155 = vmatpush1.msra.mxu0 0.0
    %2156 = vmatprep.subr.mxu0 0.0
    %2157 = vmatpush1.msra.mxu0 0.0
    %2158 = vmatprep.subr.mxu0 0.0
    %2159 = vmatpush1.msra.mxu0 0.0
    %2160 = vmatprep.subr.mxu0 0.0
    %2161 = vmatpush1.msra.mxu0 0.0
    %2162 = vmatprep.subr.mxu0 0.0
    %2163 = vmatpush1.msra.mxu0 0.0
    %2164 = vmatprep.subr.mxu0 0.0
    %2165 = vmatpush1.msra.mxu0 0.0
    %2166 = vmatprep.subr.mxu0 0.0
    %2167 = vmatpush1.msra.mxu0 0.0
    %2168 = vmatprep.subr.mxu0 0.0
    %2169 = vmatpush1.msra.mxu0 0.0
    %2170 = vmatprep.subr.mxu0 0.0
    %2171 = vmatpush1.msra.mxu0 0.0
    %2172 = vmatprep.subr.mxu0 0.0
    %2173 = vmatpush1.msra.mxu0 0.0
    %2174 = vmatprep.subr.mxu0 0.0
    %2175 = vmatpush1.msra.mxu0 0.0
    %2176 = vmatprep.subr.mxu0 0.0
    %2177 = vmatpush1.msra.mxu0 0.0
    %2178 = vmatprep.subr.mxu0 0.0
    %2179 = vmatpush1.msra.mxu0 0.0
    %2180 = vmatprep.subr.mxu0 0.0
    %2181 = vmatpush1.msra.mxu0 0.0
    %2182 = vmatprep.subr.mxu0 0.0
    %2183 = vmatpush1.msra.mxu0 0.0
    %2184 = vmatprep.subr.mxu0 0.0
    %2185 = vmatpush1.msra.mxu0 0.0
    %2186 = vmatprep.subr.mxu0 0.0
    %2187 = vmatpush1.msra.mxu0 0.0
    %2188 = vmatprep.mubr.f32.mxu0 0.0
    %2189 = vmatmul.mubr.f32.gmra.mrb[0].mxu0 %v2122
    %v2190 = vpop.f32.mrb[0].mxu0
    %v2191 = vadd.f32 0.0, %v2190
    %v2192 = vpop.f32.mrb[0].mxu0
    %2193 = vdwg.mxu0
    %2195 = vrot.lane.b32.xlu0 %v2191, 64
    %v2196 = vpop.permute.xlu0 %2195
    %v2198 = vadd.f32 %v1158, %v2196
    %v2199 = vmul.f32 %v2198, 0.5
    %v2200 = vtanh.pop %v2199
    %v2201 = vmul.f32 %v2200, 0.5
    %v2202 = vadd.f32 %v2201, 0.5
    %v2203 = vtanh.pop %v2198
    %v2204 = vmul.f32 %v2202, %v2116
    %2206 = vrot.lane.b32.xlu0 %v2203, 80
    %v2207 = vpop.permute.xlu0 %2206
    %v2209 = vmul.f32 %v2202, %v2207
    %2211 = vrot.lane.b32.xlu0 %v2209, 16
    %v2212 = vpop.permute.xlu0 %2211
    %v2214 = vadd.f32 %v2204, %v2212
    %v2215 = vtanh.pop %v2214
    %2217 = vrot.lane.b32.xlu0 %v2215, 16
    %v2218 = vpop.permute.xlu0 %2217
    %v2220 = vmul.f32 %v2202, %v2218
    %v2221 = vsel %vm1262, %v2220, %v2115
    %v2222 = vsel %vm1262, %v2214, %v2116
    %v2223 = vsel %vm1262, %v2220, 0.0
    %v2224 = vadd.f32 %v2118, %v2223
    %2226 = vrot.lane.b32.xlu0 %v2221, 32
    %v2227 = vpop.permute.xlu0 %2226
    %v2228 = vsel %vm399, %v2227, 0
    %2230 = vmatprep.subr.mxu0 0.0
    %2231 = vmatpush1.msra.mxu0 %v832
    %2232 = vmatprep.subr.mxu0 0.0
    %2233 = vmatpush1.msra.mxu0 %v833
    %2234 = vmatprep.subr.mxu0 0.0
    %2235 = vmatpush1.msra.mxu0 0.0
    %2236 = vmatprep.subr.mxu0 0.0
    %2237 = vmatpush1.msra.mxu0 0.0
    %2238 = vmatprep.subr.mxu0 0.0
    %2239 = vmatpush1.msra.mxu0 0.0
    %2240 = vmatprep.subr.mxu0 0.0
    %2241 = vmatpush1.msra.mxu0 0.0
    %2242 = vmatprep.subr.mxu0 0.0
    %2243 = vmatpush1.msra.mxu0 0.0
    %2244 = vmatprep.subr.mxu0 0.0
    %2245 = vmatpush1.msra.mxu0 0.0
    %2246 = vmatprep.subr.mxu0 0.0
    %2247 = vmatpush1.msra.mxu0 0.0
    %2248 = vmatprep.subr.mxu0 0.0
    %2249 = vmatpush1.msra.mxu0 0.0
    %2250 = vmatprep.subr.mxu0 0.0
    %2251 = vmatpush1.msra.mxu0 0.0
    %2252 = vmatprep.subr.mxu0 0.0
    %2253 = vmatpush1.msra.mxu0 0.0
    %2254 = vmatprep.subr.mxu0 0.0
    %2255 = vmatpush1.msra.mxu0 0.0
    %2256 = vmatprep.subr.mxu0 0.0
    %2257 = vmatpush1.msra.mxu0 0.0
    %2258 = vmatprep.subr.mxu0 0.0
    %2259 = vmatpush1.msra.mxu0 0.0
    %2260 = vmatprep.subr.mxu0 0.0
    %2261 = vmatpush1.msra.mxu0 0.0
    %2262 = vmatprep.subr.mxu0 0.0
    %2263 = vmatpush1.msra.mxu0 0.0
    %2264 = vmatprep.subr.mxu0 0.0
    %2265 = vmatpush1.msra.mxu0 0.0
    %2266 = vmatprep.subr.mxu0 0.0
    %2267 = vmatpush1.msra.mxu0 0.0
    %2268 = vmatprep.subr.mxu0 0.0
    %2269 = vmatpush1.msra.mxu0 0.0
    %2270 = vmatprep.subr.mxu0 0.0
    %2271 = vmatpush1.msra.mxu0 0.0
    %2272 = vmatprep.subr.mxu0 0.0
    %2273 = vmatpush1.msra.mxu0 0.0
    %2274 = vmatprep.subr.mxu0 0.0
    %2275 = vmatpush1.msra.mxu0 0.0
    %2276 = vmatprep.subr.mxu0 0.0
    %2277 = vmatpush1.msra.mxu0 0.0
    %2278 = vmatprep.subr.mxu0 0.0
    %2279 = vmatpush1.msra.mxu0 0.0
    %2280 = vmatprep.subr.mxu0 0.0
    %2281 = vmatpush1.msra.mxu0 0.0
    %2282 = vmatprep.subr.mxu0 0.0
    %2283 = vmatpush1.msra.mxu0 0.0
    %2284 = vmatprep.subr.mxu0 0.0
    %2285 = vmatpush1.msra.mxu0 0.0
    %2286 = vmatprep.subr.mxu0 0.0
    %2287 = vmatpush1.msra.mxu0 0.0
    %2288 = vmatprep.subr.mxu0 0.0
    %2289 = vmatpush1.msra.mxu0 0.0
    %2290 = vmatprep.subr.mxu0 0.0
    %2291 = vmatpush1.msra.mxu0 0.0
    %2292 = vmatprep.subr.mxu0 0.0
    %2293 = vmatpush1.msra.mxu0 0.0
    %2294 = vmatprep.mubr.f32.mxu0 0.0
    %2295 = vmatmul.mubr.f32.gmra.mrb[0].mxu0 %v2228
    %v2296 = vpop.f32.mrb[0].mxu0
    %v2297 = vadd.f32 0.0, %v2296
    %v2298 = vpop.f32.mrb[0].mxu0
    %2299 = vdwg.mxu0
    %2301 = vrot.lane.b32.xlu0 %v2297, 64
    %v2302 = vpop.permute.xlu0 %2301
    %v2304 = vadd.f32 %v1049, %v2302
    %v2305 = vmul.f32 %v2304, 0.5
    %v2306 = vtanh.pop %v2305
    %v2307 = vmul.f32 %v2306, 0.5
    %v2308 = vadd.f32 %v2307, 0.5
    %v2309 = vtanh.pop %v2304
    %v2310 = vmul.f32 %v2308, %v2222
    %2312 = vrot.lane.b32.xlu0 %v2309, 80
    %v2313 = vpop.permute.xlu0 %2312
    %v2315 = vmul.f32 %v2308, %v2313
    %2317 = vrot.lane.b32.xlu0 %v2315, 16
    %v2318 = vpop.permute.xlu0 %2317
    %v2320 = vadd.f32 %v2310, %v2318
    %v2321 = vtanh.pop %v2320
    %2323 = vrot.lane.b32.xlu0 %v2321, 16
    %v2324 = vpop.permute.xlu0 %2323
    %v2326 = vmul.f32 %v2308, %v2324
    %v2327 = vsel %vm1153, %v2326, %v2221
    %v2328 = vsel %vm1153, %v2320, %v2222
    %v2329 = vsel %vm1153, %v2326, 0.0
    %v2330 = vadd.f32 %v2224, %v2329
    %2332 = vrot.lane.b32.xlu0 %v2327, 32
    %v2333 = vpop.permute.xlu0 %2332
    %v2334 = vsel %vm399, %v2333, 0
    %2336 = vmatprep.subr.mxu0 0.0
    %2337 = vmatpush1.msra.mxu0 %v832
    %2338 = vmatprep.subr.mxu0 0.0
    %2339 = vmatpush1.msra.mxu0 %v833
    %2340 = vmatprep.subr.mxu0 0.0
    %2341 = vmatpush1.msra.mxu0 0.0
    %2342 = vmatprep.subr.mxu0 0.0
    %2343 = vmatpush1.msra.mxu0 0.0
    %2344 = vmatprep.subr.mxu0 0.0
    %2345 = vmatpush1.msra.mxu0 0.0
    %2346 = vmatprep.subr.mxu0 0.0
    %2347 = vmatpush1.msra.mxu0 0.0
    %2348 = vmatprep.subr.mxu0 0.0
    %2349 = vmatpush1.msra.mxu0 0.0
    %2350 = vmatprep.subr.mxu0 0.0
    %2351 = vmatpush1.msra.mxu0 0.0
    %2352 = vmatprep.subr.mxu0 0.0
    %2353 = vmatpush1.msra.mxu0 0.0
    %2354 = vmatprep.subr.mxu0 0.0
    %2355 = vmatpush1.msra.mxu0 0.0
    %2356 = vmatprep.subr.mxu0 0.0
    %2357 = vmatpush1.msra.mxu0 0.0
    %2358 = vmatprep.subr.mxu0 0.0
    %2359 = vmatpush1.msra.mxu0 0.0
    %2360 = vmatprep.subr.mxu0 0.0
    %2361 = vmatpush1.msra.mxu0 0.0
    %2362 = vmatprep.subr.mxu0 0.0
    %2363 = vmatpush1.msra.mxu0 0.0
    %2364 = vmatprep.subr.mxu0 0.0
    %2365 = vmatpush1.msra.mxu0 0.0
    %2366 = vmatprep.subr.mxu0 0.0
    %2367 = vmatpush1.msra.mxu0 0.0
    %2368 = vmatprep.subr.mxu0 0.0
    %2369 = vmatpush1.msra.mxu0 0.0
    %2370 = vmatprep.subr.mxu0 0.0
    %2371 = vmatpush1.msra.mxu0 0.0
    %2372 = vmatprep.subr.mxu0 0.0
    %2373 = vmatpush1.msra.mxu0 0.0
    %2374 = vmatprep.subr.mxu0 0.0
    %2375 = vmatpush1.msra.mxu0 0.0
    %2376 = vmatprep.subr.mxu0 0.0
    %2377 = vmatpush1.msra.mxu0 0.0
    %2378 = vmatprep.subr.mxu0 0.0
    %2379 = vmatpush1.msra.mxu0 0.0
    %2380 = vmatprep.subr.mxu0 0.0
    %2381 = vmatpush1.msra.mxu0 0.0
    %2382 = vmatprep.subr.mxu0 0.0
    %2383 = vmatpush1.msra.mxu0 0.0
    %2384 = vmatprep.subr.mxu0 0.0
    %2385 = vmatpush1.msra.mxu0 0.0
    %2386 = vmatprep.subr.mxu0 0.0
    %2387 = vmatpush1.msra.mxu0 0.0
    %2388 = vmatprep.subr.mxu0 0.0
    %2389 = vmatpush1.msra.mxu0 0.0
    %2390 = vmatprep.subr.mxu0 0.0
    %2391 = vmatpush1.msra.mxu0 0.0
    %2392 = vmatprep.subr.mxu0 0.0
    %2393 = vmatpush1.msra.mxu0 0.0
    %2394 = vmatprep.subr.mxu0 0.0
    %2395 = vmatpush1.msra.mxu0 0.0
    %2396 = vmatprep.subr.mxu0 0.0
    %2397 = vmatpush1.msra.mxu0 0.0
    %2398 = vmatprep.subr.mxu0 0.0
    %2399 = vmatpush1.msra.mxu0 0.0
    %2400 = vmatprep.mubr.f32.mxu0 0.0
    %2401 = vmatmul.mubr.f32.gmra.mrb[0].mxu0 %v2334
    %v2402 = vpop.f32.mrb[0].mxu0
    %v2403 = vadd.f32 0.0, %v2402
    %v2404 = vpop.f32.mrb[0].mxu0
    %2405 = vdwg.mxu0
    %2407 = vrot.lane.b32.xlu0 %v2403, 64
    %v2408 = vpop.permute.xlu0 %2407
    %v2410 = vadd.f32 %v940, %v2408
    %v2411 = vmul.f32 %v2410, 0.5
    %v2412 = vtanh.pop %v2411
    %v2413 = vmul.f32 %v2412, 0.5
    %v2414 = vadd.f32 %v2413, 0.5
    %v2415 = vtanh.pop %v2410
    %v2416 = vmul.f32 %v2414, %v2328
    %2418 = vrot.lane.b32.xlu0 %v2415, 80
    %v2419 = vpop.permute.xlu0 %2418
    %v2421 = vmul.f32 %v2414, %v2419
    %2423 = vrot.lane.b32.xlu0 %v2421, 16
    %v2424 = vpop.permute.xlu0 %2423
    %v2426 = vadd.f32 %v2416, %v2424
    %v2427 = vtanh.pop %v2426
    %2429 = vrot.lane.b32.xlu0 %v2427, 16
    %v2430 = vpop.permute.xlu0 %2429
    %v2432 = vmul.f32 %v2414, %v2430
    %v2433 = vsel %vm1044, %v2432, %v2327
    %v2434 = vsel %vm1044, %v2426, %v2328
    %v2435 = vsel %vm1044, %v2432, 0.0
    %v2436 = vadd.f32 %v2330, %v2435
    %2438 = vrot.lane.b32.xlu0 %v2433, 32
    %v2439 = vpop.permute.xlu0 %2438
    %v2440 = vsel %vm399, %v2439, 0
    %2442 = vmatprep.subr.mxu0 0.0
    %2443 = vmatpush1.msra.mxu0 %v832
    %2444 = vmatprep.subr.mxu0 0.0
    %2445 = vmatpush1.msra.mxu0 %v833
    %2446 = vmatprep.subr.mxu0 0.0
    %2447 = vmatpush1.msra.mxu0 0.0
    %2448 = vmatprep.subr.mxu0 0.0
    %2449 = vmatpush1.msra.mxu0 0.0
    %2450 = vmatprep.subr.mxu0 0.0
    %2451 = vmatpush1.msra.mxu0 0.0
    %2452 = vmatprep.subr.mxu0 0.0
    %2453 = vmatpush1.msra.mxu0 0.0
    %2454 = vmatprep.subr.mxu0 0.0
    %2455 = vmatpush1.msra.mxu0 0.0
    %2456 = vmatprep.subr.mxu0 0.0
    %2457 = vmatpush1.msra.mxu0 0.0
    %2458 = vmatprep.subr.mxu0 0.0
    %2459 = vmatpush1.msra.mxu0 0.0
    %2460 = vmatprep.subr.mxu0 0.0
    %2461 = vmatpush1.msra.mxu0 0.0
    %2462 = vmatprep.subr.mxu0 0.0
    %2463 = vmatpush1.msra.mxu0 0.0
    %2464 = vmatprep.subr.mxu0 0.0
    %2465 = vmatpush1.msra.mxu0 0.0
    %2466 = vmatprep.subr.mxu0 0.0
    %2467 = vmatpush1.msra.mxu0 0.0
    %2468 = vmatprep.subr.mxu0 0.0
    %2469 = vmatpush1.msra.mxu0 0.0
    %2470 = vmatprep.subr.mxu0 0.0
    %2471 = vmatpush1.msra.mxu0 0.0
    %2472 = vmatprep.subr.mxu0 0.0
    %2473 = vmatpush1.msra.mxu0 0.0
    %2474 = vmatprep.subr.mxu0 0.0
    %2475 = vmatpush1.msra.mxu0 0.0
    %2476 = vmatprep.subr.mxu0 0.0
    %2477 = vmatpush1.msra.mxu0 0.0
    %2478 = vmatprep.subr.mxu0 0.0
    %2479 = vmatpush1.msra.mxu0 0.0
    %2480 = vmatprep.subr.mxu0 0.0
    %2481 = vmatpush1.msra.mxu0 0.0
    %2482 = vmatprep.subr.mxu0 0.0
    %2483 = vmatpush1.msra.mxu0 0.0
    %2484 = vmatprep.subr.mxu0 0.0
    %2485 = vmatpush1.msra.mxu0 0.0
    %2486 = vmatprep.subr.mxu0 0.0
    %2487 = vmatpush1.msra.mxu0 0.0
    %2488 = vmatprep.subr.mxu0 0.0
    %2489 = vmatpush1.msra.mxu0 0.0
    %2490 = vmatprep.subr.mxu0 0.0
    %2491 = vmatpush1.msra.mxu0 0.0
    %2492 = vmatprep.subr.mxu0 0.0
    %2493 = vmatpush1.msra.mxu0 0.0
    %2494 = vmatprep.subr.mxu0 0.0
    %2495 = vmatpush1.msra.mxu0 0.0
    %2496 = vmatprep.subr.mxu0 0.0
    %2497 = vmatpush1.msra.mxu0 0.0
    %2498 = vmatprep.subr.mxu0 0.0
    %2499 = vmatpush1.msra.mxu0 0.0
    %2500 = vmatprep.subr.mxu0 0.0
    %2501 = vmatpush1.msra.mxu0 0.0
    %2502 = vmatprep.subr.mxu0 0.0
    %2503 = vmatpush1.msra.mxu0 0.0
    %2504 = vmatprep.subr.mxu0 0.0
    %2505 = vmatpush1.msra.mxu0 0.0
    %2506 = vmatprep.mubr.f32.mxu0 0.0
    %2507 = vmatmul.mubr.f32.gmra.mrb[0].mxu0 %v2440
    %v2508 = vpop.f32.mrb[0].mxu0
    %v2509 = vadd.f32 0.0, %v2508
    %v2510 = vpop.f32.mrb[0].mxu0
    %2511 = vdwg.mxu0
    %2513 = vrot.lane.b32.xlu0 %v2509, 64
    %v2514 = vpop.permute.xlu0 %2513
    %v2516 = vadd.f32 %v834, %v2514
    %v2517 = vmul.f32 %v2516, 0.5
    %v2518 = vtanh.pop %v2517
    %v2519 = vmul.f32 %v2518, 0.5
    %v2520 = vadd.f32 %v2519, 0.5
    %v2521 = vtanh.pop %v2516
    %v2522 = vmul.f32 %v2520, %v2434
    %2524 = vrot.lane.b32.xlu0 %v2521, 80
    %v2525 = vpop.permute.xlu0 %2524
    %v2527 = vmul.f32 %v2520, %v2525
    %2529 = vrot.lane.b32.xlu0 %v2527, 16
    %v2530 = vpop.permute.xlu0 %2529
    %v2532 = vadd.f32 %v2522, %v2530
    %v2533 = vtanh.pop %v2532
    %2535 = vrot.lane.b32.xlu0 %v2533, 16
    %v2536 = vpop.permute.xlu0 %2535
    %v2538 = vmul.f32 %v2520, %v2536
    %v2539 = vsel %vm936, %v2538, 0.0
    %v2540 = vadd.f32 %v2436, %v2539
    %2542 = vset.pattern.permute.xlu0 0
    %2543 = vperm.xlu0 %2542, %v829
    %v2544 = vpop.permute.xlu0 %2543
    %v2546 = vmul.f32 %v1700, %v2544
    %v2547 = vmul.f32 %v2540, %v2544
    %v2548 = vld [vmem:[%s31] sm:$0xff]
    %v2549 = vld [vmem:[%s31 + $0x8] sm:$0xff]
    %v2550 = vld [vmem:[%s33] sm:$0xff]
    %v2551 = vld [vmem:[%s33 + $0x8] sm:$0xff]
    %2553 = vrot.lane.b32.xlu0 %v2547, 32
    %v2554 = vpop.permute.xlu0 %2553
    %v2555 = vsel %vm399, %v2554, 0
    %2557 = vmatprep.subr.mxu0 0.0
    %2558 = vmatpush1.msra.mxu0 %v2550
    %2559 = vmatprep.subr.mxu0 0.0
    %2560 = vmatpush1.msra.mxu0 %v2551
    %2561 = vmatprep.subr.mxu0 0.0
    %2562 = vmatpush1.msra.mxu0 0.0
    %2563 = vmatprep.subr.mxu0 0.0
    %2564 = vmatpush1.msra.mxu0 0.0
    %2565 = vmatprep.subr.mxu0 0.0
    %2566 = vmatpush1.msra.mxu0 0.0
    %2567 = vmatprep.subr.mxu0 0.0
    %2568 = vmatpush1.msra.mxu0 0.0
    %2569 = vmatprep.subr.mxu0 0.0
    %2570 = vmatpush1.msra.mxu0 0.0
    %2571 = vmatprep.subr.mxu0 0.0
    %2572 = vmatpush1.msra.mxu0 0.0
    %2573 = vmatprep.subr.mxu0 0.0
    %2574 = vmatpush1.msra.mxu0 0.0
    %2575 = vmatprep.subr.mxu0 0.0
    %2576 = vmatpush1.msra.mxu0 0.0
    %2577 = vmatprep.subr.mxu0 0.0
    %2578 = vmatpush1.msra.mxu0 0.0
    %2579 = vmatprep.subr.mxu0 0.0
    %2580 = vmatpush1.msra.mxu0 0.0
    %2581 = vmatprep.subr.mxu0 0.0
    %2582 = vmatpush1.msra.mxu0 0.0
    %2583 = vmatprep.subr.mxu0 0.0
    %2584 = vmatpush1.msra.mxu0 0.0
    %2585 = vmatprep.subr.mxu0 0.0
    %2586 = vmatpush1.msra.mxu0 0.0
    %2587 = vmatprep.subr.mxu0 0.0
    %2588 = vmatpush1.msra.mxu0 0.0
    %2589 = vmatprep.subr.mxu0 0.0
    %2590 = vmatpush1.msra.mxu0 0.0
    %2591 = vmatprep.subr.mxu0 0.0
    %2592 = vmatpush1.msra.mxu0 0.0
    %2593 = vmatprep.subr.mxu0 0.0
    %2594 = vmatpush1.msra.mxu0 0.0
    %2595 = vmatprep.subr.mxu0 0.0
    %2596 = vmatpush1.msra.mxu0 0.0
    %2597 = vmatprep.subr.mxu0 0.0
    %2598 = vmatpush1.msra.mxu0 0.0
    %2599 = vmatprep.subr.mxu0 0.0
    %2600 = vmatpush1.msra.mxu0 0.0
    %2601 = vmatprep.subr.mxu0 0.0
    %2602 = vmatpush1.msra.mxu0 0.0
    %2603 = vmatprep.subr.mxu0 0.0
    %2604 = vmatpush1.msra.mxu0 0.0
    %2605 = vmatprep.subr.mxu0 0.0
    %2606 = vmatpush1.msra.mxu0 0.0
    %2607 = vmatprep.subr.mxu0 0.0
    %2608 = vmatpush1.msra.mxu0 0.0
    %2609 = vmatprep.subr.mxu0 0.0
    %2610 = vmatpush1.msra.mxu0 0.0
    %2611 = vmatprep.subr.mxu0 0.0
    %2612 = vmatpush1.msra.mxu0 0.0
    %2613 = vmatprep.subr.mxu0 0.0
    %2614 = vmatpush1.msra.mxu0 0.0
    %2615 = vmatprep.subr.mxu0 0.0
    %2616 = vmatpush1.msra.mxu0 0.0
    %2617 = vmatprep.subr.mxu0 0.0
    %2618 = vmatpush1.msra.mxu0 0.0
    %2619 = vmatprep.subr.mxu0 0.0
    %2620 = vmatpush1.msra.mxu0 0.0
    %2621 = vmatprep.mubr.f32.mxu0 0.0
    %2622 = vmatmul.mubr.f32.gmra.mrb[0].mxu0 %v2555
    %v2623 = vpop.f32.mrb[0].mxu0
    %v2624 = vadd.f32 0.0, %v2623
    %v2625 = vpop.f32.mrb[0].mxu0
    %2626 = vdwg.mxu0
    %2628 = vrot.lane.b32.xlu0 %v2546, 96
    %v2629 = vpop.permute.xlu0 %2628
    %v2630 = vsel %vm399, %v2629, 0
    %2632 = vmatprep.subr.mxu0 0.0
    %2633 = vmatpush1.msra.mxu0 %v2548
    %2634 = vmatprep.subr.mxu0 0.0
    %2635 = vmatpush1.msra.mxu0 %v2549
    %2636 = vmatprep.subr.mxu0 0.0
    %2637 = vmatpush1.msra.mxu0 0.0
    %2638 = vmatprep.subr.mxu0 0.0
    %2639 = vmatpush1.msra.mxu0 0.0
    %2640 = vmatprep.subr.mxu0 0.0
    %2641 = vmatpush1.msra.mxu0 0.0
    %2642 = vmatprep.subr.mxu0 0.0
    %2643 = vmatpush1.msra.mxu0 0.0
    %2644 = vmatprep.subr.mxu0 0.0
    %2645 = vmatpush1.msra.mxu0 0.0
    %2646 = vmatprep.subr.mxu0 0.0
    %2647 = vmatpush1.msra.mxu0 0.0
    %2648 = vmatprep.subr.mxu0 0.0
    %2649 = vmatpush1.msra.mxu0 0.0
    %2650 = vmatprep.subr.mxu0 0.0
    %2651 = vmatpush1.msra.mxu0 0.0
    %2652 = vmatprep.subr.mxu0 0.0
    %2653 = vmatpush1.msra.mxu0 0.0
    %2654 = vmatprep.subr.mxu0 0.0
    %2655 = vmatpush1.msra.mxu0 0.0
    %2656 = vmatprep.subr.mxu0 0.0
    %2657 = vmatpush1.msra.mxu0 0.0
    %2658 = vmatprep.subr.mxu0 0.0
    %2659 = vmatpush1.msra.mxu0 0.0
    %2660 = vmatprep.subr.mxu0 0.0
    %2661 = vmatpush1.msra.mxu0 0.0
    %2662 = vmatprep.subr.mxu0 0.0
    %2663 = vmatpush1.msra.mxu0 0.0
    %2664 = vmatprep.subr.mxu0 0.0
    %2665 = vmatpush1.msra.mxu0 0.0
    %2666 = vmatprep.subr.mxu0 0.0
    %2667 = vmatpush1.msra.mxu0 0.0
    %2668 = vmatprep.subr.mxu0 0.0
    %2669 = vmatpush1.msra.mxu0 0.0
    %2670 = vmatprep.subr.mxu0 0.0
    %2671 = vmatpush1.msra.mxu0 0.0
    %2672 = vmatprep.subr.mxu0 0.0
    %2673 = vmatpush1.msra.mxu0 0.0
    %2674 = vmatprep.subr.mxu0 0.0
    %2675 = vmatpush1.msra.mxu0 0.0
    %2676 = vmatprep.subr.mxu0 0.0
    %2677 = vmatpush1.msra.mxu0 0.0
    %2678 = vmatprep.subr.mxu0 0.0
    %2679 = vmatpush1.msra.mxu0 0.0
    %2680 = vmatprep.subr.mxu0 0.0
    %2681 = vmatpush1.msra.mxu0 0.0
    %2682 = vmatprep.subr.mxu0 0.0
    %2683 = vmatpush1.msra.mxu0 0.0
    %2684 = vmatprep.subr.mxu0 0.0
    %2685 = vmatpush1.msra.mxu0 0.0
    %2686 = vmatprep.subr.mxu0 0.0
    %2687 = vmatpush1.msra.mxu0 0.0
    %2688 = vmatprep.subr.mxu0 0.0
    %2689 = vmatpush1.msra.mxu0 0.0
    %2690 = vmatprep.subr.mxu0 0.0
    %2691 = vmatpush1.msra.mxu0 0.0
    %2692 = vmatprep.subr.mxu0 0.0
    %2693 = vmatpush1.msra.mxu0 0.0
    %2694 = vmatprep.subr.mxu0 0.0
    %2695 = vmatpush1.msra.mxu0 0.0
    %2696 = vmatprep.mubr.f32.mxu0 0.0
    %2697 = vmatmul.mubr.f32.gmra.mrb[0].mxu0 %v2630
    %v2698 = vpop.f32.mrb[0].mxu0
    %v2699 = vadd.f32 %v2624, %v2698
    %v2700 = vpop.f32.mrb[0].mxu0
    %2701 = vdwg.mxu0
    %v2702 = vld [vmem:[%s35] sm:$0x1]
    %v2704 = vlaneseq
    %v2705 = vshrl.u32 %v2704, 7
    %v2706 = vsub.s32 0, %v2705
    %v2707 = vrot.slane %v2702, %v2706
    %v2709 = vadd.f32 %v2699, %v2707
    %v2710 = vmax.f32 %v2709, 0.0
    %v2711 = vld [vmem:[%s37] sm:$0xff]
    %v2712 = vld [vmem:[%s37 + $0x8] sm:$0xff]
    %v2713 = vld [vmem:[%s37 + $0x10] sm:$0xff]
    %v2714 = vld [vmem:[%s37 + $0x18] sm:$0xff]
    %v2715 = vld [vmem:[%s39] sm:$0x1]
    %v2717 = vlaneseq
    %v2718 = vshrl.u32 %v2717, 7
    %v2719 = vsub.s32 0, %v2718
    %v2720 = vrot.slane %v2715, %v2719
    %vm2722 = vcmask 261120
    %v2724 = vsel %vm2722, %v2710, 0
    %2726 = vmatprep.subr.mxu0 0.0
    %2727 = vmatpush1.msra.mxu0 %v2711
    %2728 = vmatprep.subr.mxu0 0.0
    %2729 = vmatpush1.msra.mxu0 %v2712
    %2730 = vmatprep.subr.mxu0 0.0
    %2731 = vmatpush1.msra.mxu0 %v2713
    %2732 = vmatprep.subr.mxu0 0.0
    %2733 = vmatpush1.msra.mxu0 %v2714
    %2734 = vmatprep.subr.mxu0 0.0
    %2735 = vmatpush1.msra.mxu0 0.0
    %2736 = vmatprep.subr.mxu0 0.0
    %2737 = vmatpush1.msra.mxu0 0.0
    %2738 = vmatprep.subr.mxu0 0.0
    %2739 = vmatpush1.msra.mxu0 0.0
    %2740 = vmatprep.subr.mxu0 0.0
    %2741 = vmatpush1.msra.mxu0 0.0
    %2742 = vmatprep.subr.mxu0 0.0
    %2743 = vmatpush1.msra.mxu0 0.0
    %2744 = vmatprep.subr.mxu0 0.0
    %2745 = vmatpush1.msra.mxu0 0.0
    %2746 = vmatprep.subr.mxu0 0.0
    %2747 = vmatpush1.msra.mxu0 0.0
    %2748 = vmatprep.subr.mxu0 0.0
    %2749 = vmatpush1.msra.mxu0 0.0
    %2750 = vmatprep.subr.mxu0 0.0
    %2751 = vmatpush1.msra.mxu0 0.0
    %2752 = vmatprep.subr.mxu0 0.0
    %2753 = vmatpush1.msra.mxu0 0.0
    %2754 = vmatprep.subr.mxu0 0.0
    %2755 = vmatpush1.msra.mxu0 0.0
    %2756 = vmatprep.subr.mxu0 0.0
    %2757 = vmatpush1.msra.mxu0 0.0
    %2758 = vmatprep.subr.mxu0 0.0
    %2759 = vmatpush1.msra.mxu0 0.0
    %2760 = vmatprep.subr.mxu0 0.0
    %2761 = vmatpush1.msra.mxu0 0.0
    %2762 = vmatprep.subr.mxu0 0.0
    %2763 = vmatpush1.msra.mxu0 0.0
    %2764 = vmatprep.subr.mxu0 0.0
    %2765 = vmatpush1.msra.mxu0 0.0
    %2766 = vmatprep.subr.mxu0 0.0
    %2767 = vmatpush1.msra.mxu0 0.0
    %2768 = vmatprep.subr.mxu0 0.0
    %2769 = vmatpush1.msra.mxu0 0.0
    %2770 = vmatprep.subr.mxu0 0.0
    %2771 = vmatpush1.msra.mxu0 0.0
    %2772 = vmatprep.subr.mxu0 0.0
    %2773 = vmatpush1.msra.mxu0 0.0
    %2774 = vmatprep.subr.mxu0 0.0
    %2775 = vmatpush1.msra.mxu0 0.0
    %2776 = vmatprep.subr.mxu0 0.0
    %2777 = vmatpush1.msra.mxu0 0.0
    %2778 = vmatprep.subr.mxu0 0.0
    %2779 = vmatpush1.msra.mxu0 0.0
    %2780 = vmatprep.subr.mxu0 0.0
    %2781 = vmatpush1.msra.mxu0 0.0
    %2782 = vmatprep.subr.mxu0 0.0
    %2783 = vmatpush1.msra.mxu0 0.0
    %2784 = vmatprep.subr.mxu0 0.0
    %2785 = vmatpush1.msra.mxu0 0.0
    %2786 = vmatprep.subr.mxu0 0.0
    %2787 = vmatpush1.msra.mxu0 0.0
    %2788 = vmatprep.subr.mxu0 0.0
    %2789 = vmatpush1.msra.mxu0 0.0
    %2790 = vmatprep.mubr.f32.mxu0 0.0
    %2791 = vmatmul.mubr.f32.gmra.mrb[0].mxu0 %v2724
    %v2792 = vpop.f32.mrb[0].mxu0
    %v2793 = vadd.f32 %v2720, %v2792
    %v2794 = vpop.f32.mrb[0].mxu0
    %2795 = vdwg.mxu0
    %vm2796 = vcmask 123904
    %2797 = vst.msk [vmem:[%s63] sm:$0x3] %vm2796, %v2793
    %v2798 = vld [vmem:[%s7] sm:$0x3]
    %v2799 = vmul.f32 %v2793, 0.5
    %v2800 = vmul.f32 %v2799, 1.442695
    %v2801 = vpow.pop %v2800
    %2803 = vrot.lane.b32.xlu0 %v2801, 120
    %v2804 = vpop.permute.xlu0 %2803
    %v2806 = vmul.f32 %v2798, %v2804
    %v2807 = vadd.f32 %v2806, %v2793
    %vm2808 = vcmask 58368
    %2809 = vst.msk [vmem:[#allocation4] sm:$0x3] %vm2808, %v2807
    %v2810 = vld [vmem:[%s41] sm:$0xff]
    %v2811 = vld [vmem:[%s43] sm:$0xf]
    %v2813 = vsel %vm150, %v2811, 0
    %2815 = vmatprep.subr.mxu0 0.0
    %2816 = vmatpush1.msra.mxu0 %v2813
    %2817 = vmatprep.subr.mxu0 0.0
    %2818 = vmatpush1.msra.mxu0 0.0
    %2819 = vmatprep.subr.mxu0 0.0
    %2820 = vmatpush1.msra.mxu0 0.0
    %2821 = vmatprep.subr.mxu0 0.0
    %2822 = vmatpush1.msra.mxu0 0.0
    %2823 = vmatprep.subr.mxu0 0.0
    %2824 = vmatpush1.msra.mxu0 0.0
    %2825 = vmatprep.subr.mxu0 0.0
    %2826 = vmatpush1.msra.mxu0 0.0
    %2827 = vmatprep.subr.mxu0 0.0
    %2828 = vmatpush1.msra.mxu0 0.0
    %2829 = vmatprep.subr.mxu0 0.0
    %2830 = vmatpush1.msra.mxu0 0.0
    %2831 = vmatprep.subr.mxu0 0.0
    %2832 = vmatpush1.msra.mxu0 0.0
    %2833 = vmatprep.subr.mxu0 0.0
    %2834 = vmatpush1.msra.mxu0 0.0
    %2835 = vmatprep.subr.mxu0 0.0
    %2836 = vmatpush1.msra.mxu0 0.0
    %2837 = vmatprep.subr.mxu0 0.0
    %2838 = vmatpush1.msra.mxu0 0.0
    %2839 = vmatprep.subr.mxu0 0.0
    %2840 = vmatpush1.msra.mxu0 0.0
    %2841 = vmatprep.subr.mxu0 0.0
    %2842 = vmatpush1.msra.mxu0 0.0
    %2843 = vmatprep.subr.mxu0 0.0
    %2844 = vmatpush1.msra.mxu0 0.0
    %2845 = vmatprep.subr.mxu0 0.0
    %2846 = vmatpush1.msra.mxu0 0.0
    %2847 = vmatprep.subr.mxu0 0.0
    %2848 = vmatpush1.msra.mxu0 0.0
    %2849 = vmatprep.subr.mxu0 0.0
    %2850 = vmatpush1.msra.mxu0 0.0
    %2851 = vmatprep.subr.mxu0 0.0
    %2852 = vmatpush1.msra.mxu0 0.0
    %2853 = vmatprep.subr.mxu0 0.0
    %2854 = vmatpush1.msra.mxu0 0.0
    %2855 = vmatprep.subr.mxu0 0.0
    %2856 = vmatpush1.msra.mxu0 0.0
    %2857 = vmatprep.subr.mxu0 0.0
    %2858 = vmatpush1.msra.mxu0 0.0
    %2859 = vmatprep.subr.mxu0 0.0
    %2860 = vmatpush1.msra.mxu0 0.0
    %2861 = vmatprep.subr.mxu0 0.0
    %2862 = vmatpush1.msra.mxu0 0.0
    %2863 = vmatprep.subr.mxu0 0.0
    %2864 = vmatpush1.msra.mxu0 0.0
    %2865 = vmatprep.subr.mxu0 0.0
    %2866 = vmatpush1.msra.mxu0 0.0
    %2867 = vmatprep.subr.mxu0 0.0
    %2868 = vmatpush1.msra.mxu0 0.0
    %2869 = vmatprep.subr.mxu0 0.0
    %2870 = vmatpush1.msra.mxu0 0.0
    %2871 = vmatprep.subr.mxu0 0.0
    %2872 = vmatpush1.msra.mxu0 0.0
    %2873 = vmatprep.subr.mxu0 0.0
    %2874 = vmatpush1.msra.mxu0 0.0
    %2875 = vmatprep.subr.mxu0 0.0
    %2876 = vmatpush1.msra.mxu0 0.0
    %2877 = vmatprep.subr.mxu0 0.0
    %2878 = vmatpush1.msra.mxu0 0.0
    %2879 = vmatprep.mubr.f32.mxu0 0.0
    %2880 = vmatmul.mubr.f32.gmra.mrb[0].mxu0 %v148
    %v2881 = vpop.f32.mrb[0].mxu0
    %v2882 = vadd.f32 0.0, %v2881
    %v2883 = vpop.f32.mrb[0].mxu0
    %2884 = vdwg.mxu0
    %vm2885 = vcmask 64512
    %v2887 = vsel %vm2885, %v2807, 0
    %2889 = vmatprep.subr.mxu0 0.0
    %2890 = vmatpush1.msra.mxu0 %v2810
    %2891 = vmatprep.subr.mxu0 0.0
    %2892 = vmatpush1.msra.mxu0 0.0
    %2893 = vmatprep.subr.mxu0 0.0
    %2894 = vmatpush1.msra.mxu0 0.0
    %2895 = vmatprep.subr.mxu0 0.0
    %2896 = vmatpush1.msra.mxu0 0.0
    %2897 = vmatprep.subr.mxu0 0.0
    %2898 = vmatpush1.msra.mxu0 0.0
    %2899 = vmatprep.subr.mxu0 0.0
    %2900 = vmatpush1.msra.mxu0 0.0
    %2901 = vmatprep.subr.mxu0 0.0
    %2902 = vmatpush1.msra.mxu0 0.0
    %2903 = vmatprep.subr.mxu0 0.0
    %2904 = vmatpush1.msra.mxu0 0.0
    %2905 = vmatprep.subr.mxu0 0.0
    %2906 = vmatpush1.msra.mxu0 0.0
    %2907 = vmatprep.subr.mxu0 0.0
    %2908 = vmatpush1.msra.mxu0 0.0
    %2909 = vmatprep.subr.mxu0 0.0
    %2910 = vmatpush1.msra.mxu0 0.0
    %2911 = vmatprep.subr.mxu0 0.0
    %2912 = vmatpush1.msra.mxu0 0.0
    %2913 = vmatprep.subr.mxu0 0.0
    %2914 = vmatpush1.msra.mxu0 0.0
    %2915 = vmatprep.subr.mxu0 0.0
    %2916 = vmatpush1.msra.mxu0 0.0
    %2917 = vmatprep.subr.mxu0 0.0
    %2918 = vmatpush1.msra.mxu0 0.0
    %2919 = vmatprep.subr.mxu0 0.0
    %2920 = vmatpush1.msra.mxu0 0.0
    %2921 = vmatprep.subr.mxu0 0.0
    %2922 = vmatpush1.msra.mxu0 0.0
    %2923 = vmatprep.subr.mxu0 0.0
    %2924 = vmatpush1.msra.mxu0 0.0
    %2925 = vmatprep.subr.mxu0 0.0
    %2926 = vmatpush1.msra.mxu0 0.0
    %2927 = vmatprep.subr.mxu0 0.0
    %2928 = vmatpush1.msra.mxu0 0.0
    %2929 = vmatprep.subr.mxu0 0.0
    %2930 = vmatpush1.msra.mxu0 0.0
    %2931 = vmatprep.subr.mxu0 0.0
    %2932 = vmatpush1.msra.mxu0 0.0
    %2933 = vmatprep.subr.mxu0 0.0
    %2934 = vmatpush1.msra.mxu0 0.0
    %2935 = vmatprep.subr.mxu0 0.0
    %2936 = vmatpush1.msra.mxu0 0.0
    %2937 = vmatprep.subr.mxu0 0.0
    %2938 = vmatpush1.msra.mxu0 0.0
    %2939 = vmatprep.subr.mxu0 0.0
    %2940 = vmatpush1.msra.mxu0 0.0
    %2941 = vmatprep.subr.mxu0 0.0
    %2942 = vmatpush1.msra.mxu0 0.0
    %2943 = vmatprep.subr.mxu0 0.0
    %2944 = vmatpush1.msra.mxu0 0.0
    %2945 = vmatprep.subr.mxu0 0.0
    %2946 = vmatpush1.msra.mxu0 0.0
    %2947 = vmatprep.subr.mxu0 0.0
    %2948 = vmatpush1.msra.mxu0 0.0
    %2949 = vmatprep.subr.mxu0 0.0
    %2950 = vmatpush1.msra.mxu0 0.0
    %2951 = vmatprep.subr.mxu0 0.0
    %2952 = vmatpush1.msra.mxu0 0.0
    %2953 = vmatprep.mubr.f32.mxu0 0.0
    %2954 = vmatmul.mubr.f32.gmra.mrb[0].mxu0 %v2887
    %v2955 = vpop.f32.mrb[0].mxu0
    %v2956 = vadd.f32 %v2882, %v2955
    %v2957 = vpop.f32.mrb[0].mxu0
    %2958 = vdwg.mxu0
    %v2959 = vld [vmem:[%s45] sm:$0x1]
    %v2961 = vlaneseq
    %v2962 = vshrl.u32 %v2961, 7
    %v2963 = vsub.s32 0, %v2962
    %v2964 = vrot.slane %v2959, %v2963
    %v2966 = vadd.f32 %v2956, %v2964
    %v2967 = vmax.f32 %v2966, 0.0
    %v2968 = vld [vmem:[%s47] sm:$0xff]
    %v2969 = vld [vmem:[%s47 + $0x8] sm:$0xf]
    %v2970 = vld [vmem:[%s51] sm:$0x1]
    %v2972 = vlaneseq
    %v2973 = vshrl.u32 %v2972, 7
    %v2974 = vsub.s32 0, %v2973
    %v2975 = vrot.slane %v2970, %v2974
    %v2978 = vsel %vm312, %v2967, 0
    %v2981 = vsel %vm150, %v2969, 0
    %2983 = vmatprep.subr.mxu0 0.0
    %2984 = vmatpush1.msra.mxu0 %v2968
    %2985 = vmatprep.subr.mxu0 0.0
    %2986 = vmatpush1.msra.mxu0 %v2981
    %2987 = vmatprep.subr.mxu0 0.0
    %2988 = vmatpush1.msra.mxu0 0.0
    %2989 = vmatprep.subr.mxu0 0.0
    %2990 = vmatpush1.msra.mxu0 0.0
    %2991 = vmatprep.subr.mxu0 0.0
    %2992 = vmatpush1.msra.mxu0 0.0
    %2993 = vmatprep.subr.mxu0 0.0
    %2994 = vmatpush1.msra.mxu0 0.0
    %2995 = vmatprep.subr.mxu0 0.0
    %2996 = vmatpush1.msra.mxu0 0.0
    %2997 = vmatprep.subr.mxu0 0.0
    %2998 = vmatpush1.msra.mxu0 0.0
    %2999 = vmatprep.subr.mxu0 0.0
    %3000 = vmatpush1.msra.mxu0 0.0
    %3001 = vmatprep.subr.mxu0 0.0
    %3002 = vmatpush1.msra.mxu0 0.0
    %3003 = vmatprep.subr.mxu0 0.0
    %3004 = vmatpush1.msra.mxu0 0.0
    %3005 = vmatprep.subr.mxu0 0.0
    %3006 = vmatpush1.msra.mxu0 0.0
    %3007 = vmatprep.subr.mxu0 0.0
    %3008 = vmatpush1.msra.mxu0 0.0
    %3009 = vmatprep.subr.mxu0 0.0
    %3010 = vmatpush1.msra.mxu0 0.0
    %3011 = vmatprep.subr.mxu0 0.0
    %3012 = vmatpush1.msra.mxu0 0.0
    %3013 = vmatprep.subr.mxu0 0.0
    %3014 = vmatpush1.msra.mxu0 0.0
    %3015 = vmatprep.subr.mxu0 0.0
    %3016 = vmatpush1.msra.mxu0 0.0
    %3017 = vmatprep.subr.mxu0 0.0
    %3018 = vmatpush1.msra.mxu0 0.0
    %3019 = vmatprep.subr.mxu0 0.0
    %3020 = vmatpush1.msra.mxu0 0.0
    %3021 = vmatprep.subr.mxu0 0.0
    %3022 = vmatpush1.msra.mxu0 0.0
    %3023 = vmatprep.subr.mxu0 0.0
    %3024 = vmatpush1.msra.mxu0 0.0
    %3025 = vmatprep.subr.mxu0 0.0
    %3026 = vmatpush1.msra.mxu0 0.0
    %3027 = vmatprep.subr.mxu0 0.0
    %3028 = vmatpush1.msra.mxu0 0.0
    %3029 = vmatprep.subr.mxu0 0.0
    %3030 = vmatpush1.msra.mxu0 0.0
    %3031 = vmatprep.subr.mxu0 0.0
    %3032 = vmatpush1.msra.mxu0 0.0
    %3033 = vmatprep.subr.mxu0 0.0
    %3034 = vmatpush1.msra.mxu0 0.0
    %3035 = vmatprep.subr.mxu0 0.0
    %3036 = vmatpush1.msra.mxu0 0.0
    %3037 = vmatprep.subr.mxu0 0.0
    %3038 = vmatpush1.msra.mxu0 0.0
    %3039 = vmatprep.subr.mxu0 0.0
    %3040 = vmatpush1.msra.mxu0 0.0
    %3041 = vmatprep.subr.mxu0 0.0
    %3042 = vmatpush1.msra.mxu0 0.0
    %3043 = vmatprep.subr.mxu0 0.0
    %3044 = vmatpush1.msra.mxu0 0.0
    %3045 = vmatprep.subr.mxu0 0.0
    %3046 = vmatpush1.msra.mxu0 0.0
    %3047 = vmatprep.mubr.f32.mxu0 0.0
    %3048 = vmatmul.mubr.f32.gmra.mrb[0].mxu0 %v2978
    %v3049 = vpop.f32.mrb[0].mxu0
    %v3050 = vadd.f32 %v2975, %v3049
    %v3051 = vpop.f32.mrb[0].mxu0
    %3052 = vdwg.mxu0
    %v3053 = vld [vmem:[%s49] sm:$0xff]
    %v3054 = vld [vmem:[%s49 + $0x8] sm:$0xff]
    %3055 = vmatprep.subr.mxu0 0.0
    %3056 = vmatpush1.msra.mxu0 %v3053
    %3057 = vmatprep.subr.mxu0 0.0
    %3058 = vmatpush1.msra.mxu0 %v3054
    %3059 = vmatprep.subr.mxu0 0.0
    %3060 = vmatpush1.msra.mxu0 0.0
    %3061 = vmatprep.subr.mxu0 0.0
    %3062 = vmatpush1.msra.mxu0 0.0
    %3063 = vmatprep.subr.mxu0 0.0
    %3064 = vmatpush1.msra.mxu0 0.0
    %3065 = vmatprep.subr.mxu0 0.0
    %3066 = vmatpush1.msra.mxu0 0.0
    %3067 = vmatprep.subr.mxu0 0.0
    %3068 = vmatpush1.msra.mxu0 0.0
    %3069 = vmatprep.subr.mxu0 0.0
    %3070 = vmatpush1.msra.mxu0 0.0
    %3071 = vmatprep.subr.mxu0 0.0
    %3072 = vmatpush1.msra.mxu0 0.0
    %3073 = vmatprep.subr.mxu0 0.0
    %3074 = vmatpush1.msra.mxu0 0.0
    %3075 = vmatprep.subr.mxu0 0.0
    %3076 = vmatpush1.msra.mxu0 0.0
    %3077 = vmatprep.subr.mxu0 0.0
    %3078 = vmatpush1.msra.mxu0 0.0
    %3079 = vmatprep.subr.mxu0 0.0
    %3080 = vmatpush1.msra.mxu0 0.0
    %3081 = vmatprep.subr.mxu0 0.0
    %3082 = vmatpush1.msra.mxu0 0.0
    %3083 = vmatprep.subr.mxu0 0.0
    %3084 = vmatpush1.msra.mxu0 0.0
    %3085 = vmatprep.subr.mxu0 0.0
    %3086 = vmatpush1.msra.mxu0 0.0
    %3087 = vmatprep.subr.mxu0 0.0
    %3088 = vmatpush1.msra.mxu0 0.0
    %3089 = vmatprep.subr.mxu0 0.0
    %3090 = vmatpush1.msra.mxu0 0.0
    %3091 = vmatprep.subr.mxu0 0.0
    %3092 = vmatpush1.msra.mxu0 0.0
    %3093 = vmatprep.subr.mxu0 0.0
    %3094 = vmatpush1.msra.mxu0 0.0
    %3095 = vmatprep.subr.mxu0 0.0
    %3096 = vmatpush1.msra.mxu0 0.0
    %3097 = vmatprep.subr.mxu0 0.0
    %3098 = vmatpush1.msra.mxu0 0.0
    %3099 = vmatprep.subr.mxu0 0.0
    %3100 = vmatpush1.msra.mxu0 0.0
    %3101 = vmatprep.subr.mxu0 0.0
    %3102 = vmatpush1.msra.mxu0 0.0
    %3103 = vmatprep.subr.mxu0 0.0
    %3104 = vmatpush1.msra.mxu0 0.0
    %3105 = vmatprep.subr.mxu0 0.0
    %3106 = vmatpush1.msra.mxu0 0.0
    %3107 = vmatprep.subr.mxu0 0.0
    %3108 = vmatpush1.msra.mxu0 0.0
    %3109 = vmatprep.subr.mxu0 0.0
    %3110 = vmatpush1.msra.mxu0 0.0
    %3111 = vmatprep.subr.mxu0 0.0
    %3112 = vmatpush1.msra.mxu0 0.0
    %3113 = vmatprep.subr.mxu0 0.0
    %3114 = vmatpush1.msra.mxu0 0.0
    %3115 = vmatprep.subr.mxu0 0.0
    %3116 = vmatpush1.msra.mxu0 0.0
    %3117 = vmatprep.subr.mxu0 0.0
    %3118 = vmatpush1.msra.mxu0 0.0
    %3119 = vmatprep.mubr.f32.mxu0 0.0
    %3120 = vmatmul.mubr.f32.gmra.mrb[0].mxu0 %v836
    %v3121 = vpop.f32.mrb[0].mxu0
    %v3122 = vadd.f32 0.0, %v3121
    %v3123 = vpop.f32.mrb[0].mxu0
    %3124 = vdwg.mxu0
    %v3125 = vadd.f32 %v3050, %v3122
    %v3126 = vmul.f32 %v3125, 0.5
    %v3127 = vtanh.pop %v3126
    %v3128 = vmul.f32 %v3127, 0.5
    %v3129 = vadd.f32 %v3128, 0.5
    %v3130 = vtanh.pop %v3125
    %v3131 = vmul.f32 %v3129, 0.0
    %3133 = vrot.lane.b32.xlu0 %v3130, 80
    %v3134 = vpop.permute.xlu0 %3133
    %v3136 = vmul.f32 %v3129, %v3134
    %3138 = vrot.lane.b32.xlu0 %v3136, 16
    %v3139 = vpop.permute.xlu0 %3138
    %v3141 = vadd.f32 %v3131, %v3139
    %v3142 = vtanh.pop %v3141
    %3144 = vrot.lane.b32.xlu0 %v3142, 16
    %v3145 = vpop.permute.xlu0 %3144
    %v3147 = vmul.f32 %v3129, %v3145
    %3149 = vrot.lane.b32.xlu0 %v3147, 96
    %v3150 = vpop.permute.xlu0 %3149
    %3152 = vst.msk [vmem:[#allocation3] sm:$0x3] %vm2796, %v3150
    %v3153 = vsel %vm399, %v3150, 0
    %3155 = vmatprep.subr.mxu0 0.0
    %3156 = vmatpush1.msra.mxu0 %v3053
    %3157 = vmatprep.subr.mxu0 0.0
    %3158 = vmatpush1.msra.mxu0 %v3054
    %3159 = vmatprep.subr.mxu0 0.0
    %3160 = vmatpush1.msra.mxu0 0.0
    %3161 = vmatprep.subr.mxu0 0.0
    %3162 = vmatpush1.msra.mxu0 0.0
    %3163 = vmatprep.subr.mxu0 0.0
    %3164 = vmatpush1.msra.mxu0 0.0
    %3165 = vmatprep.subr.mxu0 0.0
    %3166 = vmatpush1.msra.mxu0 0.0
    %3167 = vmatprep.subr.mxu0 0.0
    %3168 = vmatpush1.msra.mxu0 0.0
    %3169 = vmatprep.subr.mxu0 0.0
    %3170 = vmatpush1.msra.mxu0 0.0
    %3171 = vmatprep.subr.mxu0 0.0
    %3172 = vmatpush1.msra.mxu0 0.0
    %3173 = vmatprep.subr.mxu0 0.0
    %3174 = vmatpush1.msra.mxu0 0.0
    %3175 = vmatprep.subr.mxu0 0.0
    %3176 = vmatpush1.msra.mxu0 0.0
    %3177 = vmatprep.subr.mxu0 0.0
    %3178 = vmatpush1.msra.mxu0 0.0
    %3179 = vmatprep.subr.mxu0 0.0
    %3180 = vmatpush1.msra.mxu0 0.0
    %3181 = vmatprep.subr.mxu0 0.0
    %3182 = vmatpush1.msra.mxu0 0.0
    %3183 = vmatprep.subr.mxu0 0.0
    %3184 = vmatpush1.msra.mxu0 0.0
    %3185 = vmatprep.subr.mxu0 0.0
    %3186 = vmatpush1.msra.mxu0 0.0
    %3187 = vmatprep.subr.mxu0 0.0
    %3188 = vmatpush1.msra.mxu0 0.0
    %3189 = vmatprep.subr.mxu0 0.0
    %3190 = vmatpush1.msra.mxu0 0.0
    %3191 = vmatprep.subr.mxu0 0.0
    %3192 = vmatpush1.msra.mxu0 0.0
    %3193 = vmatprep.subr.mxu0 0.0
    %3194 = vmatpush1.msra.mxu0 0.0
    %3195 = vmatprep.subr.mxu0 0.0
    %3196 = vmatpush1.msra.mxu0 0.0
    %3197 = vmatprep.subr.mxu0 0.0
    %3198 = vmatpush1.msra.mxu0 0.0
    %3199 = vmatprep.subr.mxu0 0.0
    %3200 = vmatpush1.msra.mxu0 0.0
    %3201 = vmatprep.subr.mxu0 0.0
    %3202 = vmatpush1.msra.mxu0 0.0
    %3203 = vmatprep.subr.mxu0 0.0
    %3204 = vmatpush1.msra.mxu0 0.0
    %3205 = vmatprep.subr.mxu0 0.0
    %3206 = vmatpush1.msra.mxu0 0.0
    %3207 = vmatprep.subr.mxu0 0.0
    %3208 = vmatpush1.msra.mxu0 0.0
    %3209 = vmatprep.subr.mxu0 0.0
    %3210 = vmatpush1.msra.mxu0 0.0
    %3211 = vmatprep.subr.mxu0 0.0
    %3212 = vmatpush1.msra.mxu0 0.0
    %3213 = vmatprep.subr.mxu0 0.0
    %3214 = vmatpush1.msra.mxu0 0.0
    %3215 = vmatprep.subr.mxu0 0.0
    %3216 = vmatpush1.msra.mxu0 0.0
    %3217 = vmatprep.subr.mxu0 0.0
    %3218 = vmatpush1.msra.mxu0 0.0
    %3219 = vmatprep.mubr.f32.mxu0 0.0
    %3220 = vmatmul.mubr.f32.gmra.mrb[0].mxu0 %v3153
    %v3221 = vpop.f32.mrb[0].mxu0
    %v3222 = vadd.f32 0.0, %v3221
    %v3223 = vpop.f32.mrb[0].mxu0
    %3224 = vdwg.mxu0
    %v3225 = vadd.f32 %v3050, %v3222
    %v3226 = vmul.f32 %v3225, 0.5
    %v3227 = vtanh.pop %v3226
    %v3228 = vmul.f32 %v3227, 0.5
    %v3229 = vadd.f32 %v3228, 0.5
    %v3230 = vtanh.pop %v3225
    %v3231 = vmul.f32 %v3229, %v3141
    %3233 = vrot.lane.b32.xlu0 %v3230, 80
    %v3234 = vpop.permute.xlu0 %3233
    %v3236 = vmul.f32 %v3229, %v3234
    %3238 = vrot.lane.b32.xlu0 %v3236, 16
    %v3239 = vpop.permute.xlu0 %3238
    %v3241 = vadd.f32 %v3231, %v3239
    %v3242 = vtanh.pop %v3241
    %3244 = vrot.lane.b32.xlu0 %v3242, 16
    %v3245 = vpop.permute.xlu0 %3244
    %v3247 = vmul.f32 %v3229, %v3245
    %3249 = vrot.lane.b32.xlu0 %v3247, 96
    %v3250 = vpop.permute.xlu0 %3249
    %3252 = vst.msk [vmem:[#allocation3 + $0x2] sm:$0x3] %vm2796, %v3250
    %v3253 = vsel %vm399, %v3250, 0
    %3255 = vmatprep.subr.mxu0 0.0
    %3256 = vmatpush1.msra.mxu0 %v3053
    %3257 = vmatprep.subr.mxu0 0.0
    %3258 = vmatpush1.msra.mxu0 %v3054
    %3259 = vmatprep.subr.mxu0 0.0
    %3260 = vmatpush1.msra.mxu0 0.0
    %3261 = vmatprep.subr.mxu0 0.0
    %3262 = vmatpush1.msra.mxu0 0.0
    %3263 = vmatprep.subr.mxu0 0.0
    %3264 = vmatpush1.msra.mxu0 0.0
    %3265 = vmatprep.subr.mxu0 0.0
    %3266 = vmatpush1.msra.mxu0 0.0
    %3267 = vmatprep.subr.mxu0 0.0
    %3268 = vmatpush1.msra.mxu0 0.0
    %3269 = vmatprep.subr.mxu0 0.0
    %3270 = vmatpush1.msra.mxu0 0.0
    %3271 = vmatprep.subr.mxu0 0.0
    %3272 = vmatpush1.msra.mxu0 0.0
    %3273 = vmatprep.subr.mxu0 0.0
    %3274 = vmatpush1.msra.mxu0 0.0
    %3275 = vmatprep.subr.mxu0 0.0
    %3276 = vmatpush1.msra.mxu0 0.0
    %3277 = vmatprep.subr.mxu0 0.0
    %3278 = vmatpush1.msra.mxu0 0.0
    %3279 = vmatprep.subr.mxu0 0.0
    %3280 = vmatpush1.msra.mxu0 0.0
    %3281 = vmatprep.subr.mxu0 0.0
    %3282 = vmatpush1.msra.mxu0 0.0
    %3283 = vmatprep.subr.mxu0 0.0
    %3284 = vmatpush1.msra.mxu0 0.0
    %3285 = vmatprep.subr.mxu0 0.0
    %3286 = vmatpush1.msra.mxu0 0.0
    %3287 = vmatprep.subr.mxu0 0.0
    %3288 = vmatpush1.msra.mxu0 0.0
    %3289 = vmatprep.subr.mxu0 0.0
    %3290 = vmatpush1.msra.mxu0 0.0
    %3291 = vmatprep.subr.mxu0 0.0
    %3292 = vmatpush1.msra.mxu0 0.0
    %3293 = vmatprep.subr.mxu0 0.0
    %3294 = vmatpush1.msra.mxu0 0.0
    %3295 = vmatprep.subr.mxu0 0.0
    %3296 = vmatpush1.msra.mxu0 0.0
    %3297 = vmatprep.subr.mxu0 0.0
    %3298 = vmatpush1.msra.mxu0 0.0
    %3299 = vmatprep.subr.mxu0 0.0
    %3300 = vmatpush1.msra.mxu0 0.0
    %3301 = vmatprep.subr.mxu0 0.0
    %3302 = vmatpush1.msra.mxu0 0.0
    %3303 = vmatprep.subr.mxu0 0.0
    %3304 = vmatpush1.msra.mxu0 0.0
    %3305 = vmatprep.subr.mxu0 0.0
    %3306 = vmatpush1.msra.mxu0 0.0
    %3307 = vmatprep.subr.mxu0 0.0
    %3308 = vmatpush1.msra.mxu0 0.0
    %3309 = vmatprep.subr.mxu0 0.0
    %3310 = vmatpush1.msra.mxu0 0.0
    %3311 = vmatprep.subr.mxu0 0.0
    %3312 = vmatpush1.msra.mxu0 0.0
    %3313 = vmatprep.subr.mxu0 0.0
    %3314 = vmatpush1.msra.mxu0 0.0
    %3315 = vmatprep.subr.mxu0 0.0
    %3316 = vmatpush1.msra.mxu0 0.0
    %3317 = vmatprep.subr.mxu0 0.0
    %3318 = vmatpush1.msra.mxu0 0.0
    %3319 = vmatprep.mubr.f32.mxu0 0.0
    %3320 = vmatmul.mubr.f32.gmra.mrb[0].mxu0 %v3253
    %v3321 = vpop.f32.mrb[0].mxu0
    %v3322 = vadd.f32 0.0, %v3321
    %v3323 = vpop.f32.mrb[0].mxu0
    %3324 = vdwg.mxu0
    %v3325 = vadd.f32 %v3050, %v3322
    %v3326 = vmul.f32 %v3325, 0.5
    %v3327 = vtanh.pop %v3326
    %v3328 = vmul.f32 %v3327, 0.5
    %v3329 = vadd.f32 %v3328, 0.5
    %v3330 = vtanh.pop %v3325
    %v3331 = vmul.f32 %v3329, %v3241
    %3333 = vrot.lane.b32.xlu0 %v3330, 80
    %v3334 = vpop.permute.xlu0 %3333
    %v3336 = vmul.f32 %v3329, %v3334
    %3338 = vrot.lane.b32.xlu0 %v3336, 16
    %v3339 = vpop.permute.xlu0 %3338
    %v3341 = vadd.f32 %v3331, %v3339
    %v3342 = vtanh.pop %v3341
    %3344 = vrot.lane.b32.xlu0 %v3342, 16
    %v3345 = vpop.permute.xlu0 %3344
    %v3347 = vmul.f32 %v3329, %v3345
    %3349 = vrot.lane.b32.xlu0 %v3347, 96
    %v3350 = vpop.permute.xlu0 %3349
    %3352 = vst.msk [vmem:[#allocation3 + $0x4] sm:$0x3] %vm2796, %v3350
    %v3353 = vsel %vm399, %v3350, 0
    %3355 = vmatprep.subr.mxu0 0.0
    %3356 = vmatpush1.msra.mxu0 %v3053
    %3357 = vmatprep.subr.mxu0 0.0
    %3358 = vmatpush1.msra.mxu0 %v3054
    %3359 = vmatprep.subr.mxu0 0.0
    %3360 = vmatpush1.msra.mxu0 0.0
    %3361 = vmatprep.subr.mxu0 0.0
    %3362 = vmatpush1.msra.mxu0 0.0
    %3363 = vmatprep.subr.mxu0 0.0
    %3364 = vmatpush1.msra.mxu0 0.0
    %3365 = vmatprep.subr.mxu0 0.0
    %3366 = vmatpush1.msra.mxu0 0.0
    %3367 = vmatprep.subr.mxu0 0.0
    %3368 = vmatpush1.msra.mxu0 0.0
    %3369 = vmatprep.subr.mxu0 0.0
    %3370 = vmatpush1.msra.mxu0 0.0
    %3371 = vmatprep.subr.mxu0 0.0
    %3372 = vmatpush1.msra.mxu0 0.0
    %3373 = vmatprep.subr.mxu0 0.0
    %3374 = vmatpush1.msra.mxu0 0.0
    %3375 = vmatprep.subr.mxu0 0.0
    %3376 = vmatpush1.msra.mxu0 0.0
    %3377 = vmatprep.subr.mxu0 0.0
    %3378 = vmatpush1.msra.mxu0 0.0
    %3379 = vmatprep.subr.mxu0 0.0
    %3380 = vmatpush1.msra.mxu0 0.0
    %3381 = vmatprep.subr.mxu0 0.0
    %3382 = vmatpush1.msra.mxu0 0.0
    %3383 = vmatprep.subr.mxu0 0.0
    %3384 = vmatpush1.msra.mxu0 0.0
    %3385 = vmatprep.subr.mxu0 0.0
    %3386 = vmatpush1.msra.mxu0 0.0
    %3387 = vmatprep.subr.mxu0 0.0
    %3388 = vmatpush1.msra.mxu0 0.0
    %3389 = vmatprep.subr.mxu0 0.0
    %3390 = vmatpush1.msra.mxu0 0.0
    %3391 = vmatprep.subr.mxu0 0.0
    %3392 = vmatpush1.msra.mxu0 0.0
    %3393 = vmatprep.subr.mxu0 0.0
    %3394 = vmatpush1.msra.mxu0 0.0
    %3395 = vmatprep.subr.mxu0 0.0
    %3396 = vmatpush1.msra.mxu0 0.0
    %3397 = vmatprep.subr.mxu0 0.0
    %3398 = vmatpush1.msra.mxu0 0.0
    %3399 = vmatprep.subr.mxu0 0.0
    %3400 = vmatpush1.msra.mxu0 0.0
    %3401 = vmatprep.subr.mxu0 0.0
    %3402 = vmatpush1.msra.mxu0 0.0
    %3403 = vmatprep.subr.mxu0 0.0
    %3404 = vmatpush1.msra.mxu0 0.0
    %3405 = vmatprep.subr.mxu0 0.0
    %3406 = vmatpush1.msra.mxu0 0.0
    %3407 = vmatprep.subr.mxu0 0.0
    %3408 = vmatpush1.msra.mxu0 0.0
    %3409 = vmatprep.subr.mxu0 0.0
    %3410 = vmatpush1.msra.mxu0 0.0
    %3411 = vmatprep.subr.mxu0 0.0
    %3412 = vmatpush1.msra.mxu0 0.0
    %3413 = vmatprep.subr.mxu0 0.0
    %3414 = vmatpush1.msra.mxu0 0.0
    %3415 = vmatprep.subr.mxu0 0.0
    %3416 = vmatpush1.msra.mxu0 0.0
    %3417 = vmatprep.subr.mxu0 0.0
    %3418 = vmatpush1.msra.mxu0 0.0
    %3419 = vmatprep.mubr.f32.mxu0 0.0
    %3420 = vmatmul.mubr.f32.gmra.mrb[0].mxu0 %v3353
    %v3421 = vpop.f32.mrb[0].mxu0
    %v3422 = vadd.f32 0.0, %v3421
    %v3423 = vpop.f32.mrb[0].mxu0
    %3424 = vdwg.mxu0
    %v3425 = vadd.f32 %v3050, %v3422
    %v3426 = vmul.f32 %v3425, 0.5
    %v3427 = vtanh.pop %v3426
    %v3428 = vmul.f32 %v3427, 0.5
    %v3429 = vadd.f32 %v3428, 0.5
    %v3430 = vtanh.pop %v3425
    %v3431 = vmul.f32 %v3429, %v3341
    %3433 = vrot.lane.b32.xlu0 %v3430, 80
    %v3434 = vpop.permute.xlu0 %3433
    %v3436 = vmul.f32 %v3429, %v3434
    %3438 = vrot.lane.b32.xlu0 %v3436, 16
    %v3439 = vpop.permute.xlu0 %3438
    %v3441 = vadd.f32 %v3431, %v3439
    %v3442 = vtanh.pop %v3441
    %3444 = vrot.lane.b32.xlu0 %v3442, 16
    %v3445 = vpop.permute.xlu0 %3444
    %v3447 = vmul.f32 %v3429, %v3445
    %3449 = vrot.lane.b32.xlu0 %v3447, 96
    %v3450 = vpop.permute.xlu0 %3449
    %3452 = vst.msk [vmem:[#allocation3 + $0x6] sm:$0x3] %vm2796, %v3450
    %v3453 = vsel %vm399, %v3450, 0
    %3455 = vmatprep.subr.mxu0 0.0
    %3456 = vmatpush1.msra.mxu0 %v3053
    %3457 = vmatprep.subr.mxu0 0.0
    %3458 = vmatpush1.msra.mxu0 %v3054
    %3459 = vmatprep.subr.mxu0 0.0
    %3460 = vmatpush1.msra.mxu0 0.0
    %3461 = vmatprep.subr.mxu0 0.0
    %3462 = vmatpush1.msra.mxu0 0.0
    %3463 = vmatprep.subr.mxu0 0.0
    %3464 = vmatpush1.msra.mxu0 0.0
    %3465 = vmatprep.subr.mxu0 0.0
    %3466 = vmatpush1.msra.mxu0 0.0
    %3467 = vmatprep.subr.mxu0 0.0
    %3468 = vmatpush1.msra.mxu0 0.0
    %3469 = vmatprep.subr.mxu0 0.0
    %3470 = vmatpush1.msra.mxu0 0.0
    %3471 = vmatprep.subr.mxu0 0.0
    %3472 = vmatpush1.msra.mxu0 0.0
    %3473 = vmatprep.subr.mxu0 0.0
    %3474 = vmatpush1.msra.mxu0 0.0
    %3475 = vmatprep.subr.mxu0 0.0
    %3476 = vmatpush1.msra.mxu0 0.0
    %3477 = vmatprep.subr.mxu0 0.0
    %3478 = vmatpush1.msra.mxu0 0.0
    %3479 = vmatprep.subr.mxu0 0.0
    %3480 = vmatpush1.msra.mxu0 0.0
    %3481 = vmatprep.subr.mxu0 0.0
    %3482 = vmatpush1.msra.mxu0 0.0
    %3483 = vmatprep.subr.mxu0 0.0
    %3484 = vmatpush1.msra.mxu0 0.0
    %3485 = vmatprep.subr.mxu0 0.0
    %3486 = vmatpush1.msra.mxu0 0.0
    %3487 = vmatprep.subr.mxu0 0.0
    %3488 = vmatpush1.msra.mxu0 0.0
    %3489 = vmatprep.subr.mxu0 0.0
    %3490 = vmatpush1.msra.mxu0 0.0
    %3491 = vmatprep.subr.mxu0 0.0
    %3492 = vmatpush1.msra.mxu0 0.0
    %3493 = vmatprep.subr.mxu0 0.0
    %3494 = vmatpush1.msra.mxu0 0.0
    %3495 = vmatprep.subr.mxu0 0.0
    %3496 = vmatpush1.msra.mxu0 0.0
    %3497 = vmatprep.subr.mxu0 0.0
    %3498 = vmatpush1.msra.mxu0 0.0
    %3499 = vmatprep.subr.mxu0 0.0
    %3500 = vmatpush1.msra.mxu0 0.0
    %3501 = vmatprep.subr.mxu0 0.0
    %3502 = vmatpush1.msra.mxu0 0.0
    %3503 = vmatprep.subr.mxu0 0.0
    %3504 = vmatpush1.msra.mxu0 0.0
    %3505 = vmatprep.subr.mxu0 0.0
    %3506 = vmatpush1.msra.mxu0 0.0
    %3507 = vmatprep.subr.mxu0 0.0
    %3508 = vmatpush1.msra.mxu0 0.0
    %3509 = vmatprep.subr.mxu0 0.0
    %3510 = vmatpush1.msra.mxu0 0.0
    %3511 = vmatprep.subr.mxu0 0.0
    %3512 = vmatpush1.msra.mxu0 0.0
    %3513 = vmatprep.subr.mxu0 0.0
    %3514 = vmatpush1.msra.mxu0 0.0
    %3515 = vmatprep.subr.mxu0 0.0
    %3516 = vmatpush1.msra.mxu0 0.0
    %3517 = vmatprep.subr.mxu0 0.0
    %3518 = vmatpush1.msra.mxu0 0.0
    %3519 = vmatprep.mubr.f32.mxu0 0.0
    %3520 = vmatmul.mubr.f32.gmra.mrb[0].mxu0 %v3453
    %v3521 = vpop.f32.mrb[0].mxu0
    %v3522 = vadd.f32 0.0, %v3521
    %v3523 = vpop.f32.mrb[0].mxu0
    %3524 = vdwg.mxu0
    %v3525 = vadd.f32 %v3050, %v3522
    %v3526 = vmul.f32 %v3525, 0.5
    %v3527 = vtanh.pop %v3526
    %v3528 = vmul.f32 %v3527, 0.5
    %v3529 = vadd.f32 %v3528, 0.5
    %v3530 = vtanh.pop %v3525
    %v3531 = vmul.f32 %v3529, %v3441
    %3533 = vrot.lane.b32.xlu0 %v3530, 80
    %v3534 = vpop.permute.xlu0 %3533
    %v3536 = vmul.f32 %v3529, %v3534
    %3538 = vrot.lane.b32.xlu0 %v3536, 16
    %v3539 = vpop.permute.xlu0 %3538
    %v3541 = vadd.f32 %v3531, %v3539
    %v3542 = vtanh.pop %v3541
    %3544 = vrot.lane.b32.xlu0 %v3542, 16
    %v3545 = vpop.permute.xlu0 %3544
    %v3547 = vmul.f32 %v3529, %v3545
    %3549 = vrot.lane.b32.xlu0 %v3547, 96
    %v3550 = vpop.permute.xlu0 %3549
    %3552 = vst.msk [vmem:[#allocation3 + $0x8] sm:$0x3] %vm2796, %v3550
    %v3553 = vsel %vm399, %v3550, 0
    %3555 = vmatprep.subr.mxu0 0.0
    %3556 = vmatpush1.msra.mxu0 %v3053
    %3557 = vmatprep.subr.mxu0 0.0
    %3558 = vmatpush1.msra.mxu0 %v3054
    %3559 = vmatprep.subr.mxu0 0.0
    %3560 = vmatpush1.msra.mxu0 0.0
    %3561 = vmatprep.subr.mxu0 0.0
    %3562 = vmatpush1.msra.mxu0 0.0
    %3563 = vmatprep.subr.mxu0 0.0
    %3564 = vmatpush1.msra.mxu0 0.0
    %3565 = vmatprep.subr.mxu0 0.0
    %3566 = vmatpush1.msra.mxu0 0.0
    %3567 = vmatprep.subr.mxu0 0.0
    %3568 = vmatpush1.msra.mxu0 0.0
    %3569 = vmatprep.subr.mxu0 0.0
    %3570 = vmatpush1.msra.mxu0 0.0
    %3571 = vmatprep.subr.mxu0 0.0
    %3572 = vmatpush1.msra.mxu0 0.0
    %3573 = vmatprep.subr.mxu0 0.0
    %3574 = vmatpush1.msra.mxu0 0.0
    %3575 = vmatprep.subr.mxu0 0.0
    %3576 = vmatpush1.msra.mxu0 0.0
    %3577 = vmatprep.subr.mxu0 0.0
    %3578 = vmatpush1.msra.mxu0 0.0
    %3579 = vmatprep.subr.mxu0 0.0
    %3580 = vmatpush1.msra.mxu0 0.0
    %3581 = vmatprep.subr.mxu0 0.0
    %3582 = vmatpush1.msra.mxu0 0.0
    %3583 = vmatprep.subr.mxu0 0.0
    %3584 = vmatpush1.msra.mxu0 0.0
    %3585 = vmatprep.subr.mxu0 0.0
    %3586 = vmatpush1.msra.mxu0 0.0
    %3587 = vmatprep.subr.mxu0 0.0
    %3588 = vmatpush1.msra.mxu0 0.0
    %3589 = vmatprep.subr.mxu0 0.0
    %3590 = vmatpush1.msra.mxu0 0.0
    %3591 = vmatprep.subr.mxu0 0.0
    %3592 = vmatpush1.msra.mxu0 0.0
    %3593 = vmatprep.subr.mxu0 0.0
    %3594 = vmatpush1.msra.mxu0 0.0
    %3595 = vmatprep.subr.mxu0 0.0
    %3596 = vmatpush1.msra.mxu0 0.0
    %3597 = vmatprep.subr.mxu0 0.0
    %3598 = vmatpush1.msra.mxu0 0.0
    %3599 = vmatprep.subr.mxu0 0.0
    %3600 = vmatpush1.msra.mxu0 0.0
    %3601 = vmatprep.subr.mxu0 0.0
    %3602 = vmatpush1.msra.mxu0 0.0
    %3603 = vmatprep.subr.mxu0 0.0
    %3604 = vmatpush1.msra.mxu0 0.0
    %3605 = vmatprep.subr.mxu0 0.0
    %3606 = vmatpush1.msra.mxu0 0.0
    %3607 = vmatprep.subr.mxu0 0.0
    %3608 = vmatpush1.msra.mxu0 0.0
    %3609 = vmatprep.subr.mxu0 0.0
    %3610 = vmatpush1.msra.mxu0 0.0
    %3611 = vmatprep.subr.mxu0 0.0
    %3612 = vmatpush1.msra.mxu0 0.0
    %3613 = vmatprep.subr.mxu0 0.0
    %3614 = vmatpush1.msra.mxu0 0.0
    %3615 = vmatprep.subr.mxu0 0.0
    %3616 = vmatpush1.msra.mxu0 0.0
    %3617 = vmatprep.subr.mxu0 0.0
    %3618 = vmatpush1.msra.mxu0 0.0
    %3619 = vmatprep.mubr.f32.mxu0 0.0
    %3620 = vmatmul.mubr.f32.gmra.mrb[0].mxu0 %v3553
    %v3621 = vpop.f32.mrb[0].mxu0
    %v3622 = vadd.f32 0.0, %v3621
    %v3623 = vpop.f32.mrb[0].mxu0
    %3624 = vdwg.mxu0
    %v3625 = vadd.f32 %v3050, %v3622
    %v3626 = vmul.f32 %v3625, 0.5
    %v3627 = vtanh.pop %v3626
    %v3628 = vmul.f32 %v3627, 0.5
    %v3629 = vadd.f32 %v3628, 0.5
    %v3630 = vtanh.pop %v3625
    %v3631 = vmul.f32 %v3629, %v3541
    %3633 = vrot.lane.b32.xlu0 %v3630, 80
    %v3634 = vpop.permute.xlu0 %3633
    %v3636 = vmul.f32 %v3629, %v3634
    %3638 = vrot.lane.b32.xlu0 %v3636, 16
    %v3639 = vpop.permute.xlu0 %3638
    %v3641 = vadd.f32 %v3631, %v3639
    %v3642 = vtanh.pop %v3641
    %3644 = vrot.lane.b32.xlu0 %v3642, 16
    %v3645 = vpop.permute.xlu0 %3644
    %v3647 = vmul.f32 %v3629, %v3645
    %3649 = vrot.lane.b32.xlu0 %v3647, 96
    %v3650 = vpop.permute.xlu0 %3649
    %3652 = vst.msk [vmem:[#allocation3 + $0xa] sm:$0x3] %vm2796, %v3650
    %v3653 = vsel %vm399, %v3650, 0
    %3655 = vmatprep.subr.mxu0 0.0
    %3656 = vmatpush1.msra.mxu0 %v3053
    %3657 = vmatprep.subr.mxu0 0.0
    %3658 = vmatpush1.msra.mxu0 %v3054
    %3659 = vmatprep.subr.mxu0 0.0
    %3660 = vmatpush1.msra.mxu0 0.0
    %3661 = vmatprep.subr.mxu0 0.0
    %3662 = vmatpush1.msra.mxu0 0.0
    %3663 = vmatprep.subr.mxu0 0.0
    %3664 = vmatpush1.msra.mxu0 0.0
    %3665 = vmatprep.subr.mxu0 0.0
    %3666 = vmatpush1.msra.mxu0 0.0
    %3667 = vmatprep.subr.mxu0 0.0
    %3668 = vmatpush1.msra.mxu0 0.0
    %3669 = vmatprep.subr.mxu0 0.0
    %3670 = vmatpush1.msra.mxu0 0.0
    %3671 = vmatprep.subr.mxu0 0.0
    %3672 = vmatpush1.msra.mxu0 0.0
    %3673 = vmatprep.subr.mxu0 0.0
    %3674 = vmatpush1.msra.mxu0 0.0
    %3675 = vmatprep.subr.mxu0 0.0
    %3676 = vmatpush1.msra.mxu0 0.0
    %3677 = vmatprep.subr.mxu0 0.0
    %3678 = vmatpush1.msra.mxu0 0.0
    %3679 = vmatprep.subr.mxu0 0.0
    %3680 = vmatpush1.msra.mxu0 0.0
    %3681 = vmatprep.subr.mxu0 0.0
    %3682 = vmatpush1.msra.mxu0 0.0
    %3683 = vmatprep.subr.mxu0 0.0
    %3684 = vmatpush1.msra.mxu0 0.0
    %3685 = vmatprep.subr.mxu0 0.0
    %3686 = vmatpush1.msra.mxu0 0.0
    %3687 = vmatprep.subr.mxu0 0.0
    %3688 = vmatpush1.msra.mxu0 0.0
    %3689 = vmatprep.subr.mxu0 0.0
    %3690 = vmatpush1.msra.mxu0 0.0
    %3691 = vmatprep.subr.mxu0 0.0
    %3692 = vmatpush1.msra.mxu0 0.0
    %3693 = vmatprep.subr.mxu0 0.0
    %3694 = vmatpush1.msra.mxu0 0.0
    %3695 = vmatprep.subr.mxu0 0.0
    %3696 = vmatpush1.msra.mxu0 0.0
    %3697 = vmatprep.subr.mxu0 0.0
    %3698 = vmatpush1.msra.mxu0 0.0
    %3699 = vmatprep.subr.mxu0 0.0
    %3700 = vmatpush1.msra.mxu0 0.0
    %3701 = vmatprep.subr.mxu0 0.0
    %3702 = vmatpush1.msra.mxu0 0.0
    %3703 = vmatprep.subr.mxu0 0.0
    %3704 = vmatpush1.msra.mxu0 0.0
    %3705 = vmatprep.subr.mxu0 0.0
    %3706 = vmatpush1.msra.mxu0 0.0
    %3707 = vmatprep.subr.mxu0 0.0
    %3708 = vmatpush1.msra.mxu0 0.0
    %3709 = vmatprep.subr.mxu0 0.0
    %3710 = vmatpush1.msra.mxu0 0.0
    %3711 = vmatprep.subr.mxu0 0.0
    %3712 = vmatpush1.msra.mxu0 0.0
    %3713 = vmatprep.subr.mxu0 0.0
    %3714 = vmatpush1.msra.mxu0 0.0
    %3715 = vmatprep.subr.mxu0 0.0
    %3716 = vmatpush1.msra.mxu0 0.0
    %3717 = vmatprep.subr.mxu0 0.0
    %3718 = vmatpush1.msra.mxu0 0.0
    %3719 = vmatprep.mubr.f32.mxu0 0.0
    %3720 = vmatmul.mubr.f32.gmra.mrb[0].mxu0 %v3653
    %v3721 = vpop.f32.mrb[0].mxu0
    %v3722 = vadd.f32 0.0, %v3721
    %v3723 = vpop.f32.mrb[0].mxu0
    %3724 = vdwg.mxu0
    %v3725 = vadd.f32 %v3050, %v3722
    %v3726 = vmul.f32 %v3725, 0.5
    %v3727 = vtanh.pop %v3726
    %v3728 = vmul.f32 %v3727, 0.5
    %v3729 = vadd.f32 %v3728, 0.5
    %v3730 = vtanh.pop %v3725
    %v3731 = vmul.f32 %v3729, %v3641
    %3733 = vrot.lane.b32.xlu0 %v3730, 80
    %v3734 = vpop.permute.xlu0 %3733
    %v3736 = vmul.f32 %v3729, %v3734
    %3738 = vrot.lane.b32.xlu0 %v3736, 16
    %v3739 = vpop.permute.xlu0 %3738
    %v3741 = vadd.f32 %v3731, %v3739
    %v3742 = vtanh.pop %v3741
    %3744 = vrot.lane.b32.xlu0 %v3742, 16
    %v3745 = vpop.permute.xlu0 %3744
    %v3747 = vmul.f32 %v3729, %v3745
    %3749 = vrot.lane.b32.xlu0 %v3747, 96
    %v3750 = vpop.permute.xlu0 %3749
    %3752 = vst.msk [vmem:[#allocation3 + $0xc] sm:$0x3] %vm2796, %v3750
    %v3753 = vsel %vm399, %v3750, 0
    %3755 = vmatprep.subr.mxu0 0.0
    %3756 = vmatpush1.msra.mxu0 %v3053
    %3757 = vmatprep.subr.mxu0 0.0
    %3758 = vmatpush1.msra.mxu0 %v3054
    %3759 = vmatprep.subr.mxu0 0.0
    %3760 = vmatpush1.msra.mxu0 0.0
    %3761 = vmatprep.subr.mxu0 0.0
    %3762 = vmatpush1.msra.mxu0 0.0
    %3763 = vmatprep.subr.mxu0 0.0
    %3764 = vmatpush1.msra.mxu0 0.0
    %3765 = vmatprep.subr.mxu0 0.0
    %3766 = vmatpush1.msra.mxu0 0.0
    %3767 = vmatprep.subr.mxu0 0.0
    %3768 = vmatpush1.msra.mxu0 0.0
    %3769 = vmatprep.subr.mxu0 0.0
    %3770 = vmatpush1.msra.mxu0 0.0
    %3771 = vmatprep.subr.mxu0 0.0
    %3772 = vmatpush1.msra.mxu0 0.0
    %3773 = vmatprep.subr.mxu0 0.0
    %3774 = vmatpush1.msra.mxu0 0.0
    %3775 = vmatprep.subr.mxu0 0.0
    %3776 = vmatpush1.msra.mxu0 0.0
    %3777 = vmatprep.subr.mxu0 0.0
    %3778 = vmatpush1.msra.mxu0 0.0
    %3779 = vmatprep.subr.mxu0 0.0
    %3780 = vmatpush1.msra.mxu0 0.0
    %3781 = vmatprep.subr.mxu0 0.0
    %3782 = vmatpush1.msra.mxu0 0.0
    %3783 = vmatprep.subr.mxu0 0.0
    %3784 = vmatpush1.msra.mxu0 0.0
    %3785 = vmatprep.subr.mxu0 0.0
    %3786 = vmatpush1.msra.mxu0 0.0
    %3787 = vmatprep.subr.mxu0 0.0
    %3788 = vmatpush1.msra.mxu0 0.0
    %3789 = vmatprep.subr.mxu0 0.0
    %3790 = vmatpush1.msra.mxu0 0.0
    %3791 = vmatprep.subr.mxu0 0.0
    %3792 = vmatpush1.msra.mxu0 0.0
    %3793 = vmatprep.subr.mxu0 0.0
    %3794 = vmatpush1.msra.mxu0 0.0
    %3795 = vmatprep.subr.mxu0 0.0
    %3796 = vmatpush1.msra.mxu0 0.0
    %3797 = vmatprep.subr.mxu0 0.0
    %3798 = vmatpush1.msra.mxu0 0.0
    %3799 = vmatprep.subr.mxu0 0.0
    %3800 = vmatpush1.msra.mxu0 0.0
    %3801 = vmatprep.subr.mxu0 0.0
    %3802 = vmatpush1.msra.mxu0 0.0
    %3803 = vmatprep.subr.mxu0 0.0
    %3804 = vmatpush1.msra.mxu0 0.0
    %3805 = vmatprep.subr.mxu0 0.0
    %3806 = vmatpush1.msra.mxu0 0.0
    %3807 = vmatprep.subr.mxu0 0.0
    %3808 = vmatpush1.msra.mxu0 0.0
    %3809 = vmatprep.subr.mxu0 0.0
    %3810 = vmatpush1.msra.mxu0 0.0
    %3811 = vmatprep.subr.mxu0 0.0
    %3812 = vmatpush1.msra.mxu0 0.0
    %3813 = vmatprep.subr.mxu0 0.0
    %3814 = vmatpush1.msra.mxu0 0.0
    %3815 = vmatprep.subr.mxu0 0.0
    %3816 = vmatpush1.msra.mxu0 0.0
    %3817 = vmatprep.subr.mxu0 0.0
    %3818 = vmatpush1.msra.mxu0 0.0
    %3819 = vmatprep.mubr.f32.mxu0 0.0
    %3820 = vmatmul.mubr.f32.gmra.mrb[0].mxu0 %v3753
    %v3821 = vpop.f32.mrb[0].mxu0
    %v3822 = vadd.f32 0.0, %v3821
    %v3823 = vpop.f32.mrb[0].mxu0
    %3824 = vdwg.mxu0
    %v3825 = vadd.f32 %v3050, %v3822
    %v3826 = vmul.f32 %v3825, 0.5
    %v3827 = vtanh.pop %v3826
    %v3828 = vmul.f32 %v3827, 0.5
    %v3829 = vadd.f32 %v3828, 0.5
    %v3830 = vtanh.pop %v3825
    %v3831 = vmul.f32 %v3829, %v3741
    %3833 = vrot.lane.b32.xlu0 %v3830, 80
    %v3834 = vpop.permute.xlu0 %3833
    %v3836 = vmul.f32 %v3829, %v3834
    %3838 = vrot.lane.b32.xlu0 %v3836, 16
    %v3839 = vpop.permute.xlu0 %3838
    %v3841 = vadd.f32 %v3831, %v3839
    %v3842 = vtanh.pop %v3841
    %3844 = vrot.lane.b32.xlu0 %v3842, 16
    %v3845 = vpop.permute.xlu0 %3844
    %v3847 = vmul.f32 %v3829, %v3845
    %3849 = vrot.lane.b32.xlu0 %v3847, 96
    %v3850 = vpop.permute.xlu0 %3849
    %3852 = vst.msk [vmem:[#allocation3 + $0xe] sm:$0x3] %vm2796, %v3850
    %v3853 = vld [vmem:[#allocation3] sm:$0xff]
    %v3854 = vld [vmem:[#allocation3 + $0x8] sm:$0xff]
    %v3855 = vld [vmem:[%s53] sm:$0xff]
    %v3856 = vld [vmem:[%s53 + $0x8] sm:$0xff]
    %v3857 = vld [vmem:[%s55] sm:$0x1]
    %v3859 = vlaneseq
    %v3860 = vshrl.u32 %v3859, 7
    %v3861 = vsub.s32 0, %v3860
    %v3862 = vrot.slane %v3857, %v3861
    %v3865 = vsel %vm399, %v3853, 0
    %v3868 = vsel %vm399, %v3854, 0
    %3870 = vmatprep.subr.mxu0 0.0
    %3871 = vmatpush1.msra.mxu0 %v3855
    %3872 = vmatprep.subr.mxu0 0.0
    %3873 = vmatpush1.msra.mxu0 %v3856
    %3874 = vmatprep.subr.mxu0 0.0
    %3875 = vmatpush1.msra.mxu0 0.0
    %3876 = vmatprep.subr.mxu0 0.0
    %3877 = vmatpush1.msra.mxu0 0.0
    %3878 = vmatprep.subr.mxu0 0.0
    %3879 = vmatpush1.msra.mxu0 0.0
    %3880 = vmatprep.subr.mxu0 0.0
    %3881 = vmatpush1.msra.mxu0 0.0
    %3882 = vmatprep.subr.mxu0 0.0
    %3883 = vmatpush1.msra.mxu0 0.0
    %3884 = vmatprep.subr.mxu0 0.0
    %3885 = vmatpush1.msra.mxu0 0.0
    %3886 = vmatprep.subr.mxu0 0.0
    %3887 = vmatpush1.msra.mxu0 0.0
    %3888 = vmatprep.subr.mxu0 0.0
    %3889 = vmatpush1.msra.mxu0 0.0
    %3890 = vmatprep.subr.mxu0 0.0
    %3891 = vmatpush1.msra.mxu0 0.0
    %3892 = vmatprep.subr.mxu0 0.0
    %3893 = vmatpush1.msra.mxu0 0.0
    %3894 = vmatprep.subr.mxu0 0.0
    %3895 = vmatpush1.msra.mxu0 0.0
    %3896 = vmatprep.subr.mxu0 0.0
    %3897 = vmatpush1.msra.mxu0 0.0
    %3898 = vmatprep.subr.mxu0 0.0
    %3899 = vmatpush1.msra.mxu0 0.0
    %3900 = vmatprep.subr.mxu0 0.0
    %3901 = vmatpush1.msra.mxu0 0.0
    %3902 = vmatprep.subr.mxu0 0.0
    %3903 = vmatpush1.msra.mxu0 0.0
    %3904 = vmatprep.subr.mxu0 0.0
    %3905 = vmatpush1.msra.mxu0 0.0
    %3906 = vmatprep.subr.mxu0 0.0
    %3907 = vmatpush1.msra.mxu0 0.0
    %3908 = vmatprep.subr.mxu0 0.0
    %3909 = vmatpush1.msra.mxu0 0.0
    %3910 = vmatprep.subr.mxu0 0.0
    %3911 = vmatpush1.msra.mxu0 0.0
    %3912 = vmatprep.subr.mxu0 0.0
    %3913 = vmatpush1.msra.mxu0 0.0
    %3914 = vmatprep.subr.mxu0 0.0
    %3915 = vmatpush1.msra.mxu0 0.0
    %3916 = vmatprep.subr.mxu0 0.0
    %3917 = vmatpush1.msra.mxu0 0.0
    %3918 = vmatprep.subr.mxu0 0.0
    %3919 = vmatpush1.msra.mxu0 0.0
    %3920 = vmatprep.subr.mxu0 0.0
    %3921 = vmatpush1.msra.mxu0 0.0
    %3922 = vmatprep.subr.mxu0 0.0
    %3923 = vmatpush1.msra.mxu0 0.0
    %3924 = vmatprep.subr.mxu0 0.0
    %3925 = vmatpush1.msra.mxu0 0.0
    %3926 = vmatprep.subr.mxu0 0.0
    %3927 = vmatpush1.msra.mxu0 0.0
    %3928 = vmatprep.subr.mxu0 0.0
    %3929 = vmatpush1.msra.mxu0 0.0
    %3930 = vmatprep.subr.mxu0 0.0
    %3931 = vmatpush1.msra.mxu0 0.0
    %3932 = vmatprep.subr.mxu0 0.0
    %3933 = vmatpush1.msra.mxu0 0.0
    %3934 = vmatprep.mubr.f32.mxu0 0.0
    %3935 = vmatmul.mubr.f32.gmra.mrb[0].mxu0 %v3865
    %v3936 = vpop.f32.mrb[0].mxu0
    %v3937 = vadd.f32 %v3862, %v3936
    %v3938 = vpop.f32.mrb[0].mxu0
    %3939 = vmatprep.mubr.f32.mxu0 0.0
    %3940 = vmatmul.mubr.f32.gmra.mrb[0].mxu0 %v3868
    %v3941 = vpop.f32.mrb[0].mxu0
    %v3942 = vadd.f32 %v3862, %v3941
    %v3943 = vpop.f32.mrb[0].mxu0
    %3944 = vdwg.mxu0
    %v3945 = vmax.f32 %v3937, 0.0
    %v3946 = vmax.f32 %v3942, 0.0
    %v3947 = vld [vmem:[%s57] sm:$0xff]
    %v3948 = vld [vmem:[%s59] sm:$0x1]
    %v3950 = vlaneseq
    %v3951 = vshrl.u32 %v3950, 7
    %v3952 = vsub.s32 0, %v3951
    %v3953 = vrot.slane %v3948, %v3952
    %v3956 = vsel %vm2885, %v3945, 0
    %v3959 = vsel %vm2885, %v3946, 0
    %3961 = vmatprep.subr.mxu0 0.0
    %3962 = vmatpush1.msra.mxu0 %v3947
    %3963 = vmatprep.subr.mxu0 0.0
    %3964 = vmatpush1.msra.mxu0 0.0
    %3965 = vmatprep.subr.mxu0 0.0
    %3966 = vmatpush1.msra.mxu0 0.0
    %3967 = vmatprep.subr.mxu0 0.0
    %3968 = vmatpush1.msra.mxu0 0.0
    %3969 = vmatprep.subr.mxu0 0.0
    %3970 = vmatpush1.msra.mxu0 0.0
    %3971 = vmatprep.subr.mxu0 0.0
    %3972 = vmatpush1.msra.mxu0 0.0
    %3973 = vmatprep.subr.mxu0 0.0
    %3974 = vmatpush1.msra.mxu0 0.0
    %3975 = vmatprep.subr.mxu0 0.0
    %3976 = vmatpush1.msra.mxu0 0.0
    %3977 = vmatprep.subr.mxu0 0.0
    %3978 = vmatpush1.msra.mxu0 0.0
    %3979 = vmatprep.subr.mxu0 0.0
    %3980 = vmatpush1.msra.mxu0 0.0
    %3981 = vmatprep.subr.mxu0 0.0
    %3982 = vmatpush1.msra.mxu0 0.0
    %3983 = vmatprep.subr.mxu0 0.0
    %3984 = vmatpush1.msra.mxu0 0.0
    %3985 = vmatprep.subr.mxu0 0.0
    %3986 = vmatpush1.msra.mxu0 0.0
    %3987 = vmatprep.subr.mxu0 0.0
    %3988 = vmatpush1.msra.mxu0 0.0
    %3989 = vmatprep.subr.mxu0 0.0
    %3990 = vmatpush1.msra.mxu0 0.0
    %3991 = vmatprep.subr.mxu0 0.0
    %3992 = vmatpush1.msra.mxu0 0.0
    %3993 = vmatprep.subr.mxu0 0.0
    %3994 = vmatpush1.msra.mxu0 0.0
    %3995 = vmatprep.subr.mxu0 0.0
    %3996 = vmatpush1.msra.mxu0 0.0
    %3997 = vmatprep.subr.mxu0 0.0
    %3998 = vmatpush1.msra.mxu0 0.0
    %3999 = vmatprep.subr.mxu0 0.0
    %4000 = vmatpush1.msra.mxu0 0.0
    %4001 = vmatprep.subr.mxu0 0.0
    %4002 = vmatpush1.msra.mxu0 0.0
    %4003 = vmatprep.subr.mxu0 0.0
    %4004 = vmatpush1.msra.mxu0 0.0
    %4005 = vmatprep.subr.mxu0 0.0
    %4006 = vmatpush1.msra.mxu0 0.0
    %4007 = vmatprep.subr.mxu0 0.0
    %4008 = vmatpush1.msra.mxu0 0.0
    %4009 = vmatprep.subr.mxu0 0.0
    %4010 = vmatpush1.msra.mxu0 0.0
    %4011 = vmatprep.subr.mxu0 0.0
    %4012 = vmatpush1.msra.mxu0 0.0
    %4013 = vmatprep.subr.mxu0 0.0
    %4014 = vmatpush1.msra.mxu0 0.0
    %4015 = vmatprep.subr.mxu0 0.0
    %4016 = vmatpush1.msra.mxu0 0.0
    %4017 = vmatprep.subr.mxu0 0.0
    %4018 = vmatpush1.msra.mxu0 0.0
    %4019 = vmatprep.subr.mxu0 0.0
    %4020 = vmatpush1.msra.mxu0 0.0
    %4021 = vmatprep.subr.mxu0 0.0
    %4022 = vmatpush1.msra.mxu0 0.0
    %4023 = vmatprep.subr.mxu0 0.0
    %4024 = vmatpush1.msra.mxu0 0.0
    %4025 = vmatprep.mubr.f32.mxu0 0.0
    %4026 = vmatmul.mubr.f32.gmra.mrb[0].mxu0 %v3956
    %v4027 = vpop.f32.mrb[0].mxu0
    %v4028 = vadd.f32 %v3953, %v4027
    %v4029 = vpop.f32.mrb[0].mxu0
    %4030 = vmatprep.mubr.f32.mxu0 0.0
    %4031 = vmatmul.mubr.f32.gmra.mrb[0].mxu0 %v3959
    %v4032 = vpop.f32.mrb[0].mxu0
    %v4033 = vadd.f32 %v3953, %v4032
    %v4034 = vpop.f32.mrb[0].mxu0
    %4035 = vdwg.mxu0
    %4036 = vst.msk [vmem:[%s61] sm:$0xff] %vm312, %v4028
    %4037 = vst.msk [vmem:[%s61 + $0x8] sm:$0xff] %vm312, %v4033
    // Predicated region
    $region122: #{lstm_cvae_forward.1} parent=1 // pred_check
      _
    $region123: #{lstm_cvae_forward.1} parent=1 // pred_check_branch
      %4039 = sbr.rel (0) target = $region125
    $region124: #{lstm_cvae_forward.1} parent=1 // pred_region
      _
    $region125: #{lstm_cvae_forward.1} parent=1 // pred_fallthru
      _
    // Predicated region
    $region126: #{lstm_cvae_forward.1} parent=1 // pred_check
      _
    $region127: #{lstm_cvae_forward.1} parent=1 // pred_check_branch
      %4041 = sbr.rel (0) target = $region129
    $region128: #{lstm_cvae_forward.1} parent=1 // pred_region
      _
    $region129: #{lstm_cvae_forward.1} parent=1 // pred_fallthru
      _
    // Predicated region
    $region130: #{lstm_cvae_forward.1} parent=1 // pred_check
      _
    $region131: #{lstm_cvae_forward.1} parent=1 // pred_check_branch
      %4043 = sbr.rel (0) target = $region133
    $region132: #{lstm_cvae_forward.1} parent=1 // pred_region
      %s4045 = ssub.s32 32, 32
      %4046 = vsyncadd [#allocation5], %s4045
      %s4048 = sshll.u32 [#allocation4], 4
      %s4049 = int_to_ptr.vmem [resolvable:$true] %s4048
      %4051 = dma.vmem_to_hbm [thread:$0]  %s4049, 32, %s65, [#allocation5]
    $region133: #{lstm_cvae_forward.1} parent=1 // pred_fallthru
      _
    // Predicated region
    $region134: #{lstm_cvae_forward.1} parent=1 // pred_check
      _
    $region135: #{lstm_cvae_forward.1} parent=1 // pred_check_branch
      %4053 = sbr.rel (0) target = $region137
    $region136: #{lstm_cvae_forward.1} parent=1 // pred_region
      _
    $region137: #{lstm_cvae_forward.1} parent=1 // pred_fallthru
      _
    // Predicated region
    $region138: #{lstm_cvae_forward.1} parent=1 // pred_check
      _
    $region139: #{lstm_cvae_forward.1} parent=1 // pred_check_branch
      %4055 = sbr.rel (0) target = $region141
    $region140: #{lstm_cvae_forward.1} parent=1 // pred_region
      _
    $region141: #{lstm_cvae_forward.1} parent=1 // pred_fallthru
      _
    // Predicated region
    $region142: #{lstm_cvae_forward.1} parent=1 // pred_check
      _
    $region143: #{lstm_cvae_forward.1} parent=1 // pred_check_branch
      %4057 = sbr.rel (0) target = $region145
    $region144: #{lstm_cvae_forward.1} parent=1 // pred_region
      %4058 = dma.done [#allocation5], 32
    $region145: #{lstm_cvae_forward.1} parent=1 // pred_fallthru
      _
    %4059 = vsyncpa [#allocation5], 1

</llo_original>
